<compile_context>
chip_gen: v6e
topology: v6e:2x2x1
jax: 0.10.0
libtpu: 0.0.40
codegen_flags: <defaults>
</compile_context>

<pallas_src>
import functools
import math

import jax
import jax.numpy as jnp
from jax import lax
from jax.experimental import pallas as pl
from jax.experimental.pallas import tpu as pltpu


# ----------------------------------------------------------------------------
# Kernel
# ----------------------------------------------------------------------------
def _layernorm(x, w, b, eps=1e-5):
    mu = jnp.mean(x, axis=-1, keepdims=True)
    var = jnp.mean((x - mu) ** 2, axis=-1, keepdims=True)
    return (x - mu) * lax.rsqrt(var + eps) * w + b


def clip_fused_kernel(tok_sref,                       # (B, T) int32 in SMEM (scalar prefetch)
                      emb_hbm,                        # (V, 1, D) f32, stays in HBM
                      pos_ref,                        # (T, D) f32 (resident)
                      wqkv_ref, bqkv_ref, wo_ref,     # per-layer attention weights
                      w1_ref, b1_ref, w2_ref,         # per-layer MLP weights
                      smallp_ref,                     # (1, 6, D) packed LN weights / biases
                      lnf_ref,                        # (2, D) final LayerNorm (resident)
                      out_ref,                        # (B, T, D) f32
                      x_sc, attn_sc, mask_sc, sem,    # scratch
                      *, n_heads, batch, seq):
    l = pl.program_id(0)
    n_layers = pl.num_programs(0)
    B, T, H = batch, seq, n_heads
    D = wo_ref.shape[-1]
    dh = D // H
    N = B * T
    scale = 1.0 / math.sqrt(dh)

    # ---- one-time init (layer 0): causal mask + fused embedding gather ------
    @pl.when(l == 0)
    def _init():
        r = lax.broadcasted_iota(jnp.int32, (T, T), 0)
        c = lax.broadcasted_iota(jnp.int32, (T, T), 1)
        mask_sc[...] = jnp.where(c <= r, 0.0, -1e30).astype(jnp.float32)

        # Token-embedding row gather straight from HBM: only B*T rows of the
        # (V, D) table ever move; the table never has to fit in VMEM.
        # TODO(synk): at real N = B*77 switch the static unroll to a fori_loop.
        copies = []
        for i in range(N):
            tok = tok_sref[i // T, i % T]
            cp = pltpu.make_async_copy(emb_hbm.at[tok],          # (1, D) HBM row
                                       x_sc.at[pl.ds(i, 1)],     # (1, D) VMEM row
                                       sem.at[0])
            cp.start()
            copies.append(cp)
        for cp in copies:
            cp.wait()
        # add positional embeddings (broadcast across the batch rows)
        x_sc[...] = x_sc[...] + jnp.tile(pos_ref[...], (B, 1))

    x = x_sc[...]                                    # (N, D) resident activations, f32
    mask = mask_sc[...]                              # (T, T) additive causal mask

    sp = smallp_ref[0]                               # (6, D) packed small params
    ln1w, ln1b = sp[0:1, :], sp[1:2, :]
    bo = sp[2:3, :]
    ln2w, ln2b = sp[3:4, :], sp[4:5, :]
    b2 = sp[5:6, :]

    # ---- self-attention sublayer (pre-LN) ------------------------------------
    wqkv = wqkv_ref[0]                               # (D, 3D) bf16
    wo = wo_ref[0]                                   # (D, D)  bf16
    h = _layernorm(x, ln1w, ln1b)                    # f32
    qkv = jnp.dot(h.astype(wqkv.dtype), wqkv,
                  preferred_element_type=jnp.float32) + bqkv_ref[0]   # (N, 3D) f32
    q_all = qkv[:, 0:D] * scale                      # fold softmax scale into q (mask stays unscaled)
    k_all = qkv[:, D:2 * D]
    v_all = qkv[:, 2 * D:3 * D]

    dn = (((1,), (1,)), ((), ()))                    # contract last dims; no kh.T / XLU transpose
    for b in range(B):                               # per-batch attention: (T,T) scores, not (B*T)^2
        r0 = b * T
        for hd in range(H):
            # TODO(synk): at real scale (D=768) process heads in pairs (128 lanes)
            # or put heads on a grid axis for lane-dense MXU matmuls.
            c0 = hd * dh
            qh = q_all[r0:r0 + T, c0:c0 + dh]        # (T, dh)
            kh = k_all[r0:r0 + T, c0:c0 + dh]
            vh = v_all[r0:r0 + T, c0:c0 + dh]
            s = lax.dot_general(qh, kh, dn,
                                preferred_element_type=jnp.float32)   # (T, T)
            s = s + mask
            m = jnp.max(s, axis=-1, keepdims=True)
            p = jnp.exp(s - m)
            p = p / jnp.sum(p, axis=-1, keepdims=True)                # exact softmax
            # write head output into its lane slice (no concat / relayout)
            attn_sc[pl.ds(r0, T), pl.ds(c0, dh)] = jnp.dot(
                p, vh, preferred_element_type=jnp.float32)

    # single batch-folded, lane-dense output projection
    attn = jnp.dot(attn_sc[...].astype(wo.dtype), wo,
                   preferred_element_type=jnp.float32) + bo
    x = x + attn

    # ---- feed-forward sublayer (QuickGELU), pre-LN ----------------------------
    w1 = w1_ref[0]                                   # (D, F) bf16
    w2 = w2_ref[0]                                   # (F, D) bf16
    res = x
    h2 = _layernorm(x, ln2w, ln2b)
    h2 = jnp.dot(h2.astype(w1.dtype), w1,
                 preferred_element_type=jnp.float32) + b1_ref[0]
    h2 = h2 * jax.nn.sigmoid(1.702 * h2)             # QuickGELU in f32
    h2 = jnp.dot(h2.astype(w2.dtype), w2,
                 preferred_element_type=jnp.float32) + b2
    x = res + h2

    x_sc[...] = x                                    # carry activations to next layer

    # ---- final LayerNorm folded into the last layer step ----------------------
    @pl.when(l == n_layers - 1)
    def _final():
        out_ref[...] = _layernorm(x, lnf_ref[0:1, :],
                                  lnf_ref[1:2, :]).reshape(B, T, D)


# ----------------------------------------------------------------------------
# pallas_call builder
# ----------------------------------------------------------------------------
def build_clip(B, T, D, H, V, L):
    F = 4 * D
    N = B * T

    stack_call = pl.pallas_call(
        functools.partial(clip_fused_kernel, n_heads=H, batch=B, seq=T),
        out_shape=jax.ShapeDtypeStruct((B, T, D), jnp.float32),
        grid_spec=pltpu.PrefetchScalarGridSpec(
            num_scalar_prefetch=1,                                # token ids -> SMEM
            grid=(L,),                                            # layer axis: weights pipelined
            in_specs=[
                pl.BlockSpec(memory_space=pl.ANY),                # token-embedding table stays in HBM
                pl.BlockSpec((T, D), lambda l, tok: (0, 0)),      # positional embedding (resident)
                pl.BlockSpec((1, D, 3 * D), lambda l, tok: (l, 0, 0)),  # wqkv  (bf16)
                pl.BlockSpec((1, 1, 3 * D), lambda l, tok: (l, 0, 0)),  # bqkv
                pl.BlockSpec((1, D, D), lambda l, tok: (l, 0, 0)),      # wo    (bf16)
                pl.BlockSpec((1, D, F), lambda l, tok: (l, 0, 0)),      # w1    (bf16)
                pl.BlockSpec((1, 1, F), lambda l, tok: (l, 0, 0)),      # b1
                pl.BlockSpec((1, F, D), lambda l, tok: (l, 0, 0)),      # w2    (bf16)
                pl.BlockSpec((1, 6, D), lambda l, tok: (l, 0, 0)),      # packed LN / bias rows
                pl.BlockSpec((2, D), lambda l, tok: (0, 0)),            # final LN w,b (resident)
            ],
            out_specs=pl.BlockSpec((B, T, D), lambda l, tok: (0, 0, 0)),
            scratch_shapes=[
                pltpu.VMEM((N, D), jnp.float32),    # resident activations
                pltpu.VMEM((N, D), jnp.float32),    # per-head attention assembly
                pltpu.VMEM((T, T), jnp.float32),    # (T,T) causal additive mask
                pltpu.SemaphoreType.DMA((1,)),      # embedding-gather DMA semaphore
            ],
        ),
        compiler_params=pltpu.CompilerParams(
            # layer axis carries the resident activations -> arbitrary
            dimension_semantics=("arbitrary",),
            # bf16 weight stacks keep the double-buffered per-layer set small;
            # TODO(synk): ~48 MB on v7x, can go higher on v5e/v6e at real scale.
            vmem_limit_bytes=32 * 1024 * 1024,
        ),
    )

    def forward(tokens, params):
        tok = tokens.astype(jnp.int32)
        return stack_call(
            tok,
            params["tok_emb"].reshape(V, 1, D),
            params["pos_emb"],
            params["wqkv"], params["bqkv"], params["wo"],
            params["w1"], params["b1"], params["w2"],
            params["smallp"], params["lnf"])

    return jax.jit(forward)


# ----------------------------------------------------------------------------
# Deterministic synthetic parameter init (stacked + packed per-layer weights)
# ----------------------------------------------------------------------------
def init_params(key, V, T, D, H, L, weight_dtype=jnp.bfloat16):
    F = 4 * D

    def nrm(k, shape, scale=0.02, dtype=jnp.float32):
        return (scale * jax.random.normal(k, shape)).astype(dtype)

    keys = jax.random.split(key, 6)
    ones = jnp.ones((L, 1, D), jnp.float32)
    zeros = jnp.zeros((L, 1, D), jnp.float32)
    params = {
        # f32: only gathered row-by-row, never matmul'd
        "tok_emb": nrm(keys[0], (V, D)),
        # nn.Parameter(torch.zeros(...)) originally; small random values so the
        # positional add is exercised numerically.
        "pos_emb": nrm(keys[1], (T, D)),
        # Linear weights stored (in, out) so the kernel computes x @ W.
        # Big matmul weights in bf16 (halves HBM traffic and buffered VMEM);
        # LN / softmax / QuickGELU math stays f32 in the kernel.
        "wqkv": nrm(keys[2], (L, D, 3 * D), dtype=weight_dtype),
        "bqkv": jnp.zeros((L, 1, 3 * D), jnp.float32),
        "wo":   nrm(keys[3], (L, D, D), dtype=weight_dtype),
        "w1":   nrm(keys[4], (L, D, F), dtype=weight_dtype),
        "b1":   jnp.zeros((L, 1, F), jnp.float32),
        "w2":   nrm(keys[5], (L, F, D), dtype=weight_dtype),
        # packed rows: [ln1_w, ln1_b, out_proj_b, ln2_w, ln2_b, linear2_b]
        "smallp": jnp.concatenate([ones, zeros, zeros, ones, zeros, zeros],
                                  axis=1),
        # final LayerNorm: row 0 = weight, row 1 = bias
        "lnf": jnp.concatenate([jnp.ones((1, D), jnp.float32),
                                jnp.zeros((1, D), jnp.float32)], axis=0),
    }
    return params


# ----------------------------------------------------------------------------
if __name__ == "__main__":
    B, T, D, H, V, L = 2, 8, 128, 4, 512, 12

    key = jax.random.PRNGKey(0)
    k_tok, k_params = jax.random.split(key)
    tokens = jax.random.randint(k_tok, (B, T), 0, V, dtype=jnp.int32)

    params = init_params(k_params, V, T, D, H, L)
    clip_forward = build_clip(B, T, D, H, V, L)

    out = clip_forward(tokens, params)
    out = jax.block_until_ready(out)
    assert out.shape == (B, T, D) and out.dtype == jnp.float32
    assert bool(jnp.all(jnp.isfinite(out)))
    print("KERNEL_OK")
</pallas_src>

<mosaic_0001>
module attributes {stable_mosaic.version = 11 : i64} {
  func.func @clip_fused_kernel(%arg0: i32, %arg1: memref<2x8xi32, #tpu.memory_space<smem>>, %arg2: memref<512x1x128xf32, #tpu.memory_space<any>>, %arg3: memref<8x128xf32, #tpu.memory_space<vmem>>, %arg4: memref<1x128x384xbf16, #tpu.memory_space<vmem>>, %arg5: memref<1x1x384xf32, #tpu.memory_space<vmem>>, %arg6: memref<1x128x128xbf16, #tpu.memory_space<vmem>>, %arg7: memref<1x128x512xbf16, #tpu.memory_space<vmem>>, %arg8: memref<1x1x512xf32, #tpu.memory_space<vmem>>, %arg9: memref<1x512x128xbf16, #tpu.memory_space<vmem>>, %arg10: memref<1x6x128xf32, #tpu.memory_space<vmem>>, %arg11: memref<2x128xf32, #tpu.memory_space<vmem>>, %arg12: memref<2x8x128xf32, #tpu.memory_space<vmem>>, %arg13: memref<16x128xf32, #tpu.memory_space<vmem>>, %arg14: memref<16x128xf32, #tpu.memory_space<vmem>>, %arg15: memref<8x8xf32, #tpu.memory_space<vmem>>, %arg16: memref<1x!tpu.dma_semaphore, #tpu.memory_space<semaphore_mem>>) attributes {dimension_semantics = [#tpu.dimension_semantics<arbitrary>], iteration_bounds = array<i64: 12>, scalar_prefetch = 1 : i64, scratch_operands = 4 : i64, tpu.core_type = #tpu.core_type<tc>, window_params = [{}, {pipeline_mode = #tpu.pipeline_mode<synchronous>, transform_indices = @transform_1, window_bounds = array<i64: 8, 128>}, {transform_indices = @transform_2, window_bounds = array<i64: 1, 128, 384>}, {transform_indices = @transform_3, window_bounds = array<i64: 1, 1, 384>}, {transform_indices = @transform_4, window_bounds = array<i64: 1, 128, 128>}, {transform_indices = @transform_5, window_bounds = array<i64: 1, 128, 512>}, {transform_indices = @transform_6, window_bounds = array<i64: 1, 1, 512>}, {transform_indices = @transform_7, window_bounds = array<i64: 1, 512, 128>}, {transform_indices = @transform_8, window_bounds = array<i64: 1, 6, 128>}, {pipeline_mode = #tpu.pipeline_mode<synchronous>, transform_indices = @transform_9, window_bounds = array<i64: 2, 128>}, {pipeline_mode = #tpu.pipeline_mode<synchronous>, transform_indices = @transform_10, window_bounds = array<i64: 2, 8, 128>}]} {
    %c0_i32 = arith.constant 0 : i32
    %0 = arith.cmpi eq, %arg0, %c0_i32 : i32
    %1 = arith.extui %0 : i1 to i32
    %c0_i32_0 = arith.constant 0 : i32
    %2 = arith.cmpi ne, %1, %c0_i32_0 : i32
    scf.if %2 {
      %233 = tpu.iota {dimensions = array<i32: 0>} : vector<8x8xi32>
      %234 = tpu.iota {dimensions = array<i32: 1>} : vector<8x8xi32>
      %235 = arith.cmpi sle, %234, %233 : vector<8x8xi32>
      %cst_90 = arith.constant 0.000000e+00 : f32
      %cst_91 = arith.constant -1.000000e+30 : f32
      %236 = vector.broadcast %cst_90 : f32 to vector<8x8xf32>
      %237 = vector.broadcast %cst_91 : f32 to vector<8x8xf32>
      %238 = arith.select %235, %236, %237 : vector<8x8xi1>, vector<8x8xf32>
      %c0_92 = arith.constant 0 : index
      %c0_93 = arith.constant 0 : index
      %239 = vector.load %arg15[%c0_92, %c0_93] : memref<8x8xf32, #tpu.memory_space<vmem>>, vector<8x8xf32>
      tpu.vector_store %arg15[%c0_92, %c0_93], %238 {strides = array<i32>} : memref<8x8xf32, #tpu.memory_space<vmem>>, vector<8x8xf32>,
      %c0_94 = arith.constant 0 : index
      %c0_95 = arith.constant 0 : index
      %240 = memref.load %arg1[%c0_94, %c0_95] : memref<2x8xi32, #tpu.memory_space<smem>>
      %c0_i32_96 = arith.constant 0 : i32
      %c0_i32_97 = arith.constant 0 : i32
      %c0_i32_98 = arith.constant 0 : i32
      %241 = tpu.memref_slice %arg2[%240, %c0_i32_97, %c0_i32_98] : memref<512x1x128xf32, #tpu.memory_space<any>> -> memref<1x1x128xf32, #tpu.memory_space<any>>
      %242 = tpu.memref_squeeze %241 : memref<1x1x128xf32, #tpu.memory_space<any>> -> memref<1x128xf32, #tpu.memory_space<any>>
      %c0_i32_99 = arith.constant 0 : i32
      %c0_i32_100 = arith.constant 0 : i32
      %243 = tpu.memref_slice %arg13[%c0_i32_99, %c0_i32_100] : memref<16x128xf32, #tpu.memory_space<vmem>> -> memref<1x128xf32, #tpu.memory_space<vmem>>
      %244 = tpu.memref_slice %arg16[%c0_i32_96] : memref<1x!tpu.dma_semaphore, #tpu.memory_space<semaphore_mem>> -> memref<1x!tpu.dma_semaphore, #tpu.memory_space<semaphore_mem>>
      %245 = tpu.memref_squeeze %244 : memref<1x!tpu.dma_semaphore, #tpu.memory_space<semaphore_mem>> -> memref<!tpu.dma_semaphore, #tpu.memory_space<semaphore_mem>>
      tpu.enqueue_dma source(%242 : memref<1x128xf32, #tpu.memory_space<any>>) target(%243 : memref<1x128xf32, #tpu.memory_space<vmem>>) target_semaphore(%245 : memref<!tpu.dma_semaphore, #tpu.memory_space<semaphore_mem>>)
      %c0_101 = arith.constant 0 : index
      %c1 = arith.constant 1 : index
      %246 = memref.load %arg1[%c0_101, %c1] : memref<2x8xi32, #tpu.memory_space<smem>>
      %c0_i32_102 = arith.constant 0 : i32
      %c0_i32_103 = arith.constant 0 : i32
      %c0_i32_104 = arith.constant 0 : i32
      %247 = tpu.memref_slice %arg2[%246, %c0_i32_103, %c0_i32_104] : memref<512x1x128xf32, #tpu.memory_space<any>> -> memref<1x1x128xf32, #tpu.memory_space<any>>
      %248 = tpu.memref_squeeze %247 : memref<1x1x128xf32, #tpu.memory_space<any>> -> memref<1x128xf32, #tpu.memory_space<any>>
      %c1_i32 = arith.constant 1 : i32
      %c0_i32_105 = arith.constant 0 : i32
      %249 = tpu.memref_slice %arg13[%c1_i32, %c0_i32_105] : memref<16x128xf32, #tpu.memory_space<vmem>> -> memref<1x128xf32, #tpu.memory_space<vmem>>
      %250 = tpu.memref_slice %arg16[%c0_i32_102] : memref<1x!tpu.dma_semaphore, #tpu.memory_space<semaphore_mem>> -> memref<1x!tpu.dma_semaphore, #tpu.memory_space<semaphore_mem>>
      %251 = tpu.memref_squeeze %250 : memref<1x!tpu.dma_semaphore, #tpu.memory_space<semaphore_mem>> -> memref<!tpu.dma_semaphore, #tpu.memory_space<semaphore_mem>>
      tpu.enqueue_dma source(%248 : memref<1x128xf32, #tpu.memory_space<any>>) target(%249 : memref<1x128xf32, #tpu.memory_space<vmem>>) target_semaphore(%251 : memref<!tpu.dma_semaphore, #tpu.memory_space<semaphore_mem>>)
      %c0_106 = arith.constant 0 : index
      %c2 = arith.constant 2 : index
      %252 = memref.load %arg1[%c0_106, %c2] : memref<2x8xi32, #tpu.memory_space<smem>>
      %c0_i32_107 = arith.constant 0 : i32
      %c0_i32_108 = arith.constant 0 : i32
      %c0_i32_109 = arith.constant 0 : i32
      %253 = tpu.memref_slice %arg2[%252, %c0_i32_108, %c0_i32_109] : memref<512x1x128xf32, #tpu.memory_space<any>> -> memref<1x1x128xf32, #tpu.memory_space<any>>
      %254 = tpu.memref_squeeze %253 : memref<1x1x128xf32, #tpu.memory_space<any>> -> memref<1x128xf32, #tpu.memory_space<any>>
      %c2_i32 = arith.constant 2 : i32
      %c0_i32_110 = arith.constant 0 : i32
      %255 = tpu.memref_slice %arg13[%c2_i32, %c0_i32_110] : memref<16x128xf32, #tpu.memory_space<vmem>> -> memref<1x128xf32, #tpu.memory_space<vmem>>
      %256 = tpu.memref_slice %arg16[%c0_i32_107] : memref<1x!tpu.dma_semaphore, #tpu.memory_space<semaphore_mem>> -> memref<1x!tpu.dma_semaphore, #tpu.memory_space<semaphore_mem>>
      %257 = tpu.memref_squeeze %256 : memref<1x!tpu.dma_semaphore, #tpu.memory_space<semaphore_mem>> -> memref<!tpu.dma_semaphore, #tpu.memory_space<semaphore_mem>>
      tpu.enqueue_dma source(%254 : memref<1x128xf32, #tpu.memory_space<any>>) target(%255 : memref<1x128xf32, #tpu.memory_space<vmem>>) target_semaphore(%257 : memref<!tpu.dma_semaphore, #tpu.memory_space<semaphore_mem>>)
      %c0_111 = arith.constant 0 : index
      %c3 = arith.constant 3 : index
      %258 = memref.load %arg1[%c0_111, %c3] : memref<2x8xi32, #tpu.memory_space<smem>>
      %c0_i32_112 = arith.constant 0 : i32
      %c0_i32_113 = arith.constant 0 : i32
      %c0_i32_114 = arith.constant 0 : i32
      %259 = tpu.memref_slice %arg2[%258, %c0_i32_113, %c0_i32_114] : memref<512x1x128xf32, #tpu.memory_space<any>> -> memref<1x1x128xf32, #tpu.memory_space<any>>
      %260 = tpu.memref_squeeze %259 : memref<1x1x128xf32, #tpu.memory_space<any>> -> memref<1x128xf32, #tpu.memory_space<any>>
      %c3_i32 = arith.constant 3 : i32
      %c0_i32_115 = arith.constant 0 : i32
      %261 = tpu.memref_slice %arg13[%c3_i32, %c0_i32_115] : memref<16x128xf32, #tpu.memory_space<vmem>> -> memref<1x128xf32, #tpu.memory_space<vmem>>
      %262 = tpu.memref_slice %arg16[%c0_i32_112] : memref<1x!tpu.dma_semaphore, #tpu.memory_space<semaphore_mem>> -> memref<1x!tpu.dma_semaphore, #tpu.memory_space<semaphore_mem>>
      %263 = tpu.memref_squeeze %262 : memref<1x!tpu.dma_semaphore, #tpu.memory_space<semaphore_mem>> -> memref<!tpu.dma_semaphore, #tpu.memory_space<semaphore_mem>>
      tpu.enqueue_dma source(%260 : memref<1x128xf32, #tpu.memory_space<any>>) target(%261 : memref<1x128xf32, #tpu.memory_space<vmem>>) target_semaphore(%263 : memref<!tpu.dma_semaphore, #tpu.memory_space<semaphore_mem>>)
      %c0_116 = arith.constant 0 : index
      %c4 = arith.constant 4 : index
      %264 = memref.load %arg1[%c0_116, %c4] : memref<2x8xi32, #tpu.memory_space<smem>>
      %c0_i32_117 = arith.constant 0 : i32
      %c0_i32_118 = arith.constant 0 : i32
      %c0_i32_119 = arith.constant 0 : i32
      %265 = tpu.memref_slice %arg2[%264, %c0_i32_118, %c0_i32_119] : memref<512x1x128xf32, #tpu.memory_space<any>> -> memref<1x1x128xf32, #tpu.memory_space<any>>
      %266 = tpu.memref_squeeze %265 : memref<1x1x128xf32, #tpu.memory_space<any>> -> memref<1x128xf32, #tpu.memory_space<any>>
      %c4_i32 = arith.constant 4 : i32
      %c0_i32_120 = arith.constant 0 : i32
      %267 = tpu.memref_slice %arg13[%c4_i32, %c0_i32_120] : memref<16x128xf32, #tpu.memory_space<vmem>> -> memref<1x128xf32, #tpu.memory_space<vmem>>
      %268 = tpu.memref_slice %arg16[%c0_i32_117] : memref<1x!tpu.dma_semaphore, #tpu.memory_space<semaphore_mem>> -> memref<1x!tpu.dma_semaphore, #tpu.memory_space<semaphore_mem>>
      %269 = tpu.memref_squeeze %268 : memref<1x!tpu.dma_semaphore, #tpu.memory_space<semaphore_mem>> -> memref<!tpu.dma_semaphore, #tpu.memory_space<semaphore_mem>>
      tpu.enqueue_dma source(%266 : memref<1x128xf32, #tpu.memory_space<any>>) target(%267 : memref<1x128xf32, #tpu.memory_space<vmem>>) target_semaphore(%269 : memref<!tpu.dma_semaphore, #tpu.memory_space<semaphore_mem>>)
      %c0_121 = arith.constant 0 : index
      %c5 = arith.constant 5 : index
      %270 = memref.load %arg1[%c0_121, %c5] : memref<2x8xi32, #tpu.memory_space<smem>>
      %c0_i32_122 = arith.constant 0 : i32
      %c0_i32_123 = arith.constant 0 : i32
      %c0_i32_124 = arith.constant 0 : i32
      %271 = tpu.memref_slice %arg2[%270, %c0_i32_123, %c0_i32_124] : memref<512x1x128xf32, #tpu.memory_space<any>> -> memref<1x1x128xf32, #tpu.memory_space<any>>
      %272 = tpu.memref_squeeze %271 : memref<1x1x128xf32, #tpu.memory_space<any>> -> memref<1x128xf32, #tpu.memory_space<any>>
      %c5_i32 = arith.constant 5 : i32
      %c0_i32_125 = arith.constant 0 : i32
      %273 = tpu.memref_slice %arg13[%c5_i32, %c0_i32_125] : memref<16x128xf32, #tpu.memory_space<vmem>> -> memref<1x128xf32, #tpu.memory_space<vmem>>
      %274 = tpu.memref_slice %arg16[%c0_i32_122] : memref<1x!tpu.dma_semaphore, #tpu.memory_space<semaphore_mem>> -> memref<1x!tpu.dma_semaphore, #tpu.memory_space<semaphore_mem>>
      %275 = tpu.memref_squeeze %274 : memref<1x!tpu.dma_semaphore, #tpu.memory_space<semaphore_mem>> -> memref<!tpu.dma_semaphore, #tpu.memory_space<semaphore_mem>>
      tpu.enqueue_dma source(%272 : memref<1x128xf32, #tpu.memory_space<any>>) target(%273 : memref<1x128xf32, #tpu.memory_space<vmem>>) target_semaphore(%275 : memref<!tpu.dma_semaphore, #tpu.memory_space<semaphore_mem>>)
      %c0_126 = arith.constant 0 : index
      %c6 = arith.constant 6 : index
      %276 = memref.load %arg1[%c0_126, %c6] : memref<2x8xi32, #tpu.memory_space<smem>>
      %c0_i32_127 = arith.constant 0 : i32
      %c0_i32_128 = arith.constant 0 : i32
      %c0_i32_129 = arith.constant 0 : i32
      %277 = tpu.memref_slice %arg2[%276, %c0_i32_128, %c0_i32_129] : memref<512x1x128xf32, #tpu.memory_space<any>> -> memref<1x1x128xf32, #tpu.memory_space<any>>
      %278 = tpu.memref_squeeze %277 : memref<1x1x128xf32, #tpu.memory_space<any>> -> memref<1x128xf32, #tpu.memory_space<any>>
      %c6_i32 = arith.constant 6 : i32
      %c0_i32_130 = arith.constant 0 : i32
      %279 = tpu.memref_slice %arg13[%c6_i32, %c0_i32_130] : memref<16x128xf32, #tpu.memory_space<vmem>> -> memref<1x128xf32, #tpu.memory_space<vmem>>
      %280 = tpu.memref_slice %arg16[%c0_i32_127] : memref<1x!tpu.dma_semaphore, #tpu.memory_space<semaphore_mem>> -> memref<1x!tpu.dma_semaphore, #tpu.memory_space<semaphore_mem>>
      %281 = tpu.memref_squeeze %280 : memref<1x!tpu.dma_semaphore, #tpu.memory_space<semaphore_mem>> -> memref<!tpu.dma_semaphore, #tpu.memory_space<semaphore_mem>>
      tpu.enqueue_dma source(%278 : memref<1x128xf32, #tpu.memory_space<any>>) target(%279 : memref<1x128xf32, #tpu.memory_space<vmem>>) target_semaphore(%281 : memref<!tpu.dma_semaphore, #tpu.memory_space<semaphore_mem>>)
      %c0_131 = arith.constant 0 : index
      %c7 = arith.constant 7 : index
      %282 = memref.load %arg1[%c0_131, %c7] : memref<2x8xi32, #tpu.memory_space<smem>>
      %c0_i32_132 = arith.constant 0 : i32
      %c0_i32_133 = arith.constant 0 : i32
      %c0_i32_134 = arith.constant 0 : i32
      %283 = tpu.memref_slice %arg2[%282, %c0_i32_133, %c0_i32_134] : memref<512x1x128xf32, #tpu.memory_space<any>> -> memref<1x1x128xf32, #tpu.memory_space<any>>
      %284 = tpu.memref_squeeze %283 : memref<1x1x128xf32, #tpu.memory_space<any>> -> memref<1x128xf32, #tpu.memory_space<any>>
      %c7_i32 = arith.constant 7 : i32
      %c0_i32_135 = arith.constant 0 : i32
      %285 = tpu.memref_slice %arg13[%c7_i32, %c0_i32_135] : memref<16x128xf32, #tpu.memory_space<vmem>> -> memref<1x128xf32, #tpu.memory_space<vmem>>
      %286 = tpu.memref_slice %arg16[%c0_i32_132] : memref<1x!tpu.dma_semaphore, #tpu.memory_space<semaphore_mem>> -> memref<1x!tpu.dma_semaphore, #tpu.memory_space<semaphore_mem>>
      %287 = tpu.memref_squeeze %286 : memref<1x!tpu.dma_semaphore, #tpu.memory_space<semaphore_mem>> -> memref<!tpu.dma_semaphore, #tpu.memory_space<semaphore_mem>>
      tpu.enqueue_dma source(%284 : memref<1x128xf32, #tpu.memory_space<any>>) target(%285 : memref<1x128xf32, #tpu.memory_space<vmem>>) target_semaphore(%287 : memref<!tpu.dma_semaphore, #tpu.memory_space<semaphore_mem>>)
      %c1_136 = arith.constant 1 : index
      %c0_137 = arith.constant 0 : index
      %288 = memref.load %arg1[%c1_136, %c0_137] : memref<2x8xi32, #tpu.memory_space<smem>>
      %c0_i32_138 = arith.constant 0 : i32
      %c0_i32_139 = arith.constant 0 : i32
      %c0_i32_140 = arith.constant 0 : i32
      %289 = tpu.memref_slice %arg2[%288, %c0_i32_139, %c0_i32_140] : memref<512x1x128xf32, #tpu.memory_space<any>> -> memref<1x1x128xf32, #tpu.memory_space<any>>
      %290 = tpu.memref_squeeze %289 : memref<1x1x128xf32, #tpu.memory_space<any>> -> memref<1x128xf32, #tpu.memory_space<any>>
      %c8_i32 = arith.constant 8 : i32
      %c0_i32_141 = arith.constant 0 : i32
      %291 = tpu.memref_slice %arg13[%c8_i32, %c0_i32_141] : memref<16x128xf32, #tpu.memory_space<vmem>> -> memref<1x128xf32, #tpu.memory_space<vmem>>
      %292 = tpu.memref_slice %arg16[%c0_i32_138] : memref<1x!tpu.dma_semaphore, #tpu.memory_space<semaphore_mem>> -> memref<1x!tpu.dma_semaphore, #tpu.memory_space<semaphore_mem>>
      %293 = tpu.memref_squeeze %292 : memref<1x!tpu.dma_semaphore, #tpu.memory_space<semaphore_mem>> -> memref<!tpu.dma_semaphore, #tpu.memory_space<semaphore_mem>>
      tpu.enqueue_dma source(%290 : memref<1x128xf32, #tpu.memory_space<any>>) target(%291 : memref<1x128xf32, #tpu.memory_space<vmem>>) target_semaphore(%293 : memref<!tpu.dma_semaphore, #tpu.memory_space<semaphore_mem>>)
      %c1_142 = arith.constant 1 : index
      %c1_143 = arith.constant 1 : index
      %294 = memref.load %arg1[%c1_142, %c1_143] : memref<2x8xi32, #tpu.memory_space<smem>>
      %c0_i32_144 = arith.constant 0 : i32
      %c0_i32_145 = arith.constant 0 : i32
      %c0_i32_146 = arith.constant 0 : i32
      %295 = tpu.memref_slice %arg2[%294, %c0_i32_145, %c0_i32_146] : memref<512x1x128xf32, #tpu.memory_space<any>> -> memref<1x1x128xf32, #tpu.memory_space<any>>
      %296 = tpu.memref_squeeze %295 : memref<1x1x128xf32, #tpu.memory_space<any>> -> memref<1x128xf32, #tpu.memory_space<any>>
      %c9_i32 = arith.constant 9 : i32
      %c0_i32_147 = arith.constant 0 : i32
      %297 = tpu.memref_slice %arg13[%c9_i32, %c0_i32_147] : memref<16x128xf32, #tpu.memory_space<vmem>> -> memref<1x128xf32, #tpu.memory_space<vmem>>
      %298 = tpu.memref_slice %arg16[%c0_i32_144] : memref<1x!tpu.dma_semaphore, #tpu.memory_space<semaphore_mem>> -> memref<1x!tpu.dma_semaphore, #tpu.memory_space<semaphore_mem>>
      %299 = tpu.memref_squeeze %298 : memref<1x!tpu.dma_semaphore, #tpu.memory_space<semaphore_mem>> -> memref<!tpu.dma_semaphore, #tpu.memory_space<semaphore_mem>>
      tpu.enqueue_dma source(%296 : memref<1x128xf32, #tpu.memory_space<any>>) target(%297 : memref<1x128xf32, #tpu.memory_space<vmem>>) target_semaphore(%299 : memref<!tpu.dma_semaphore, #tpu.memory_space<semaphore_mem>>)
      %c1_148 = arith.constant 1 : index
      %c2_149 = arith.constant 2 : index
      %300 = memref.load %arg1[%c1_148, %c2_149] : memref<2x8xi32, #tpu.memory_space<smem>>
      %c0_i32_150 = arith.constant 0 : i32
      %c0_i32_151 = arith.constant 0 : i32
      %c0_i32_152 = arith.constant 0 : i32
      %301 = tpu.memref_slice %arg2[%300, %c0_i32_151, %c0_i32_152] : memref<512x1x128xf32, #tpu.memory_space<any>> -> memref<1x1x128xf32, #tpu.memory_space<any>>
      %302 = tpu.memref_squeeze %301 : memref<1x1x128xf32, #tpu.memory_space<any>> -> memref<1x128xf32, #tpu.memory_space<any>>
      %c10_i32 = arith.constant 10 : i32
      %c0_i32_153 = arith.constant 0 : i32
      %303 = tpu.memref_slice %arg13[%c10_i32, %c0_i32_153] : memref<16x128xf32, #tpu.memory_space<vmem>> -> memref<1x128xf32, #tpu.memory_space<vmem>>
      %304 = tpu.memref_slice %arg16[%c0_i32_150] : memref<1x!tpu.dma_semaphore, #tpu.memory_space<semaphore_mem>> -> memref<1x!tpu.dma_semaphore, #tpu.memory_space<semaphore_mem>>
      %305 = tpu.memref_squeeze %304 : memref<1x!tpu.dma_semaphore, #tpu.memory_space<semaphore_mem>> -> memref<!tpu.dma_semaphore, #tpu.memory_space<semaphore_mem>>
      tpu.enqueue_dma source(%302 : memref<1x128xf32, #tpu.memory_space<any>>) target(%303 : memref<1x128xf32, #tpu.memory_space<vmem>>) target_semaphore(%305 : memref<!tpu.dma_semaphore, #tpu.memory_space<semaphore_mem>>)
      %c1_154 = arith.constant 1 : index
      %c3_155 = arith.constant 3 : index
      %306 = memref.load %arg1[%c1_154, %c3_155] : memref<2x8xi32, #tpu.memory_space<smem>>
      %c0_i32_156 = arith.constant 0 : i32
      %c0_i32_157 = arith.constant 0 : i32
      %c0_i32_158 = arith.constant 0 : i32
      %307 = tpu.memref_slice %arg2[%306, %c0_i32_157, %c0_i32_158] : memref<512x1x128xf32, #tpu.memory_space<any>> -> memref<1x1x128xf32, #tpu.memory_space<any>>
      %308 = tpu.memref_squeeze %307 : memref<1x1x128xf32, #tpu.memory_space<any>> -> memref<1x128xf32, #tpu.memory_space<any>>
      %c11_i32_159 = arith.constant 11 : i32
      %c0_i32_160 = arith.constant 0 : i32
      %309 = tpu.memref_slice %arg13[%c11_i32_159, %c0_i32_160] : memref<16x128xf32, #tpu.memory_space<vmem>> -> memref<1x128xf32, #tpu.memory_space<vmem>>
      %310 = tpu.memref_slice %arg16[%c0_i32_156] : memref<1x!tpu.dma_semaphore, #tpu.memory_space<semaphore_mem>> -> memref<1x!tpu.dma_semaphore, #tpu.memory_space<semaphore_mem>>
      %311 = tpu.memref_squeeze %310 : memref<1x!tpu.dma_semaphore, #tpu.memory_space<semaphore_mem>> -> memref<!tpu.dma_semaphore, #tpu.memory_space<semaphore_mem>>
      tpu.enqueue_dma source(%308 : memref<1x128xf32, #tpu.memory_space<any>>) target(%309 : memref<1x128xf32, #tpu.memory_space<vmem>>) target_semaphore(%311 : memref<!tpu.dma_semaphore, #tpu.memory_space<semaphore_mem>>)
      %c1_161 = arith.constant 1 : index
      %c4_162 = arith.constant 4 : index
      %312 = memref.load %arg1[%c1_161, %c4_162] : memref<2x8xi32, #tpu.memory_space<smem>>
      %c0_i32_163 = arith.constant 0 : i32
      %c0_i32_164 = arith.constant 0 : i32
      %c0_i32_165 = arith.constant 0 : i32
      %313 = tpu.memref_slice %arg2[%312, %c0_i32_164, %c0_i32_165] : memref<512x1x128xf32, #tpu.memory_space<any>> -> memref<1x1x128xf32, #tpu.memory_space<any>>
      %314 = tpu.memref_squeeze %313 : memref<1x1x128xf32, #tpu.memory_space<any>> -> memref<1x128xf32, #tpu.memory_space<any>>
      %c12_i32 = arith.constant 12 : i32
      %c0_i32_166 = arith.constant 0 : i32
      %315 = tpu.memref_slice %arg13[%c12_i32, %c0_i32_166] : memref<16x128xf32, #tpu.memory_space<vmem>> -> memref<1x128xf32, #tpu.memory_space<vmem>>
      %316 = tpu.memref_slice %arg16[%c0_i32_163] : memref<1x!tpu.dma_semaphore, #tpu.memory_space<semaphore_mem>> -> memref<1x!tpu.dma_semaphore, #tpu.memory_space<semaphore_mem>>
      %317 = tpu.memref_squeeze %316 : memref<1x!tpu.dma_semaphore, #tpu.memory_space<semaphore_mem>> -> memref<!tpu.dma_semaphore, #tpu.memory_space<semaphore_mem>>
      tpu.enqueue_dma source(%314 : memref<1x128xf32, #tpu.memory_space<any>>) target(%315 : memref<1x128xf32, #tpu.memory_space<vmem>>) target_semaphore(%317 : memref<!tpu.dma_semaphore, #tpu.memory_space<semaphore_mem>>)
      %c1_167 = arith.constant 1 : index
      %c5_168 = arith.constant 5 : index
      %318 = memref.load %arg1[%c1_167, %c5_168] : memref<2x8xi32, #tpu.memory_space<smem>>
      %c0_i32_169 = arith.constant 0 : i32
      %c0_i32_170 = arith.constant 0 : i32
      %c0_i32_171 = arith.constant 0 : i32
      %319 = tpu.memref_slice %arg2[%318, %c0_i32_170, %c0_i32_171] : memref<512x1x128xf32, #tpu.memory_space<any>> -> memref<1x1x128xf32, #tpu.memory_space<any>>
      %320 = tpu.memref_squeeze %319 : memref<1x1x128xf32, #tpu.memory_space<any>> -> memref<1x128xf32, #tpu.memory_space<any>>
      %c13_i32 = arith.constant 13 : i32
      %c0_i32_172 = arith.constant 0 : i32
      %321 = tpu.memref_slice %arg13[%c13_i32, %c0_i32_172] : memref<16x128xf32, #tpu.memory_space<vmem>> -> memref<1x128xf32, #tpu.memory_space<vmem>>
      %322 = tpu.memref_slice %arg16[%c0_i32_169] : memref<1x!tpu.dma_semaphore, #tpu.memory_space<semaphore_mem>> -> memref<1x!tpu.dma_semaphore, #tpu.memory_space<semaphore_mem>>
      %323 = tpu.memref_squeeze %322 : memref<1x!tpu.dma_semaphore, #tpu.memory_space<semaphore_mem>> -> memref<!tpu.dma_semaphore, #tpu.memory_space<semaphore_mem>>
      tpu.enqueue_dma source(%320 : memref<1x128xf32, #tpu.memory_space<any>>) target(%321 : memref<1x128xf32, #tpu.memory_space<vmem>>) target_semaphore(%323 : memref<!tpu.dma_semaphore, #tpu.memory_space<semaphore_mem>>)
      %c1_173 = arith.constant 1 : index
      %c6_174 = arith.constant 6 : index
      %324 = memref.load %arg1[%c1_173, %c6_174] : memref<2x8xi32, #tpu.memory_space<smem>>
      %c0_i32_175 = arith.constant 0 : i32
      %c0_i32_176 = arith.constant 0 : i32
      %c0_i32_177 = arith.constant 0 : i32
      %325 = tpu.memref_slice %arg2[%324, %c0_i32_176, %c0_i32_177] : memref<512x1x128xf32, #tpu.memory_space<any>> -> memref<1x1x128xf32, #tpu.memory_space<any>>
      %326 = tpu.memref_squeeze %325 : memref<1x1x128xf32, #tpu.memory_space<any>> -> memref<1x128xf32, #tpu.memory_space<any>>
      %c14_i32 = arith.constant 14 : i32
      %c0_i32_178 = arith.constant 0 : i32
      %327 = tpu.memref_slice %arg13[%c14_i32, %c0_i32_178] : memref<16x128xf32, #tpu.memory_space<vmem>> -> memref<1x128xf32, #tpu.memory_space<vmem>>
      %328 = tpu.memref_slice %arg16[%c0_i32_175] : memref<1x!tpu.dma_semaphore, #tpu.memory_space<semaphore_mem>> -> memref<1x!tpu.dma_semaphore, #tpu.memory_space<semaphore_mem>>
      %329 = tpu.memref_squeeze %328 : memref<1x!tpu.dma_semaphore, #tpu.memory_space<semaphore_mem>> -> memref<!tpu.dma_semaphore, #tpu.memory_space<semaphore_mem>>
      tpu.enqueue_dma source(%326 : memref<1x128xf32, #tpu.memory_space<any>>) target(%327 : memref<1x128xf32, #tpu.memory_space<vmem>>) target_semaphore(%329 : memref<!tpu.dma_semaphore, #tpu.memory_space<semaphore_mem>>)
      %c1_179 = arith.constant 1 : index
      %c7_180 = arith.constant 7 : index
      %330 = memref.load %arg1[%c1_179, %c7_180] : memref<2x8xi32, #tpu.memory_space<smem>>
      %c0_i32_181 = arith.constant 0 : i32
      %c0_i32_182 = arith.constant 0 : i32
      %c0_i32_183 = arith.constant 0 : i32
      %331 = tpu.memref_slice %arg2[%330, %c0_i32_182, %c0_i32_183] : memref<512x1x128xf32, #tpu.memory_space<any>> -> memref<1x1x128xf32, #tpu.memory_space<any>>
      %332 = tpu.memref_squeeze %331 : memref<1x1x128xf32, #tpu.memory_space<any>> -> memref<1x128xf32, #tpu.memory_space<any>>
      %c15_i32 = arith.constant 15 : i32
      %c0_i32_184 = arith.constant 0 : i32
      %333 = tpu.memref_slice %arg13[%c15_i32, %c0_i32_184] : memref<16x128xf32, #tpu.memory_space<vmem>> -> memref<1x128xf32, #tpu.memory_space<vmem>>
      %334 = tpu.memref_slice %arg16[%c0_i32_181] : memref<1x!tpu.dma_semaphore, #tpu.memory_space<semaphore_mem>> -> memref<1x!tpu.dma_semaphore, #tpu.memory_space<semaphore_mem>>
      %335 = tpu.memref_squeeze %334 : memref<1x!tpu.dma_semaphore, #tpu.memory_space<semaphore_mem>> -> memref<!tpu.dma_semaphore, #tpu.memory_space<semaphore_mem>>
      tpu.enqueue_dma source(%332 : memref<1x128xf32, #tpu.memory_space<any>>) target(%333 : memref<1x128xf32, #tpu.memory_space<vmem>>) target_semaphore(%335 : memref<!tpu.dma_semaphore, #tpu.memory_space<semaphore_mem>>)
      %c0_i32_185 = arith.constant 0 : i32
      %c0_i32_186 = arith.constant 0 : i32
      %c0_i32_187 = arith.constant 0 : i32
      %336 = tpu.memref_slice %arg2[%240, %c0_i32_186, %c0_i32_187] : memref<512x1x128xf32, #tpu.memory_space<any>> -> memref<1x1x128xf32, #tpu.memory_space<any>>
      %337 = tpu.memref_squeeze %336 : memref<1x1x128xf32, #tpu.memory_space<any>> -> memref<1x128xf32, #tpu.memory_space<any>>
      %c0_i32_188 = arith.constant 0 : i32
      %c0_i32_189 = arith.constant 0 : i32
      %338 = tpu.memref_slice %arg13[%c0_i32_188, %c0_i32_189] : memref<16x128xf32, #tpu.memory_space<vmem>> -> memref<1x128xf32, #tpu.memory_space<vmem>>
      %339 = tpu.memref_slice %arg16[%c0_i32_185] : memref<1x!tpu.dma_semaphore, #tpu.memory_space<semaphore_mem>> -> memref<1x!tpu.dma_semaphore, #tpu.memory_space<semaphore_mem>>
      %340 = tpu.memref_squeeze %339 : memref<1x!tpu.dma_semaphore, #tpu.memory_space<semaphore_mem>> -> memref<!tpu.dma_semaphore, #tpu.memory_space<semaphore_mem>>
      tpu.wait_dma2 semaphore(%340 : memref<!tpu.dma_semaphore, #tpu.memory_space<semaphore_mem>>) src(%337 : memref<1x128xf32, #tpu.memory_space<any>>) dst(%338 : memref<1x128xf32, #tpu.memory_space<vmem>>)
      %c0_i32_190 = arith.constant 0 : i32
      %c0_i32_191 = arith.constant 0 : i32
      %c0_i32_192 = arith.constant 0 : i32
      %341 = tpu.memref_slice %arg2[%246, %c0_i32_191, %c0_i32_192] : memref<512x1x128xf32, #tpu.memory_space<any>> -> memref<1x1x128xf32, #tpu.memory_space<any>>
      %342 = tpu.memref_squeeze %341 : memref<1x1x128xf32, #tpu.memory_space<any>> -> memref<1x128xf32, #tpu.memory_space<any>>
      %c1_i32_193 = arith.constant 1 : i32
      %c0_i32_194 = arith.constant 0 : i32
      %343 = tpu.memref_slice %arg13[%c1_i32_193, %c0_i32_194] : memref<16x128xf32, #tpu.memory_space<vmem>> -> memref<1x128xf32, #tpu.memory_space<vmem>>
      %344 = tpu.memref_slice %arg16[%c0_i32_190] : memref<1x!tpu.dma_semaphore, #tpu.memory_space<semaphore_mem>> -> memref<1x!tpu.dma_semaphore, #tpu.memory_space<semaphore_mem>>
      %345 = tpu.memref_squeeze %344 : memref<1x!tpu.dma_semaphore, #tpu.memory_space<semaphore_mem>> -> memref<!tpu.dma_semaphore, #tpu.memory_space<semaphore_mem>>
      tpu.wait_dma2 semaphore(%345 : memref<!tpu.dma_semaphore, #tpu.memory_space<semaphore_mem>>) src(%342 : memref<1x128xf32, #tpu.memory_space<any>>) dst(%343 : memref<1x128xf32, #tpu.memory_space<vmem>>)
      %c0_i32_195 = arith.constant 0 : i32
      %c0_i32_196 = arith.constant 0 : i32
      %c0_i32_197 = arith.constant 0 : i32
      %346 = tpu.memref_slice %arg2[%252, %c0_i32_196, %c0_i32_197] : memref<512x1x128xf32, #tpu.memory_space<any>> -> memref<1x1x128xf32, #tpu.memory_space<any>>
      %347 = tpu.memref_squeeze %346 : memref<1x1x128xf32, #tpu.memory_space<any>> -> memref<1x128xf32, #tpu.memory_space<any>>
      %c2_i32_198 = arith.constant 2 : i32
      %c0_i32_199 = arith.constant 0 : i32
      %348 = tpu.memref_slice %arg13[%c2_i32_198, %c0_i32_199] : memref<16x128xf32, #tpu.memory_space<vmem>> -> memref<1x128xf32, #tpu.memory_space<vmem>>
      %349 = tpu.memref_slice %arg16[%c0_i32_195] : memref<1x!tpu.dma_semaphore, #tpu.memory_space<semaphore_mem>> -> memref<1x!tpu.dma_semaphore, #tpu.memory_space<semaphore_mem>>
      %350 = tpu.memref_squeeze %349 : memref<1x!tpu.dma_semaphore, #tpu.memory_space<semaphore_mem>> -> memref<!tpu.dma_semaphore, #tpu.memory_space<semaphore_mem>>
      tpu.wait_dma2 semaphore(%350 : memref<!tpu.dma_semaphore, #tpu.memory_space<semaphore_mem>>) src(%347 : memref<1x128xf32, #tpu.memory_space<any>>) dst(%348 : memref<1x128xf32, #tpu.memory_space<vmem>>)
      %c0_i32_200 = arith.constant 0 : i32
      %c0_i32_201 = arith.constant 0 : i32
      %c0_i32_202 = arith.constant 0 : i32
      %351 = tpu.memref_slice %arg2[%258, %c0_i32_201, %c0_i32_202] : memref<512x1x128xf32, #tpu.memory_space<any>> -> memref<1x1x128xf32, #tpu.memory_space<any>>
      %352 = tpu.memref_squeeze %351 : memref<1x1x128xf32, #tpu.memory_space<any>> -> memref<1x128xf32, #tpu.memory_space<any>>
      %c3_i32_203 = arith.constant 3 : i32
      %c0_i32_204 = arith.constant 0 : i32
      %353 = tpu.memref_slice %arg13[%c3_i32_203, %c0_i32_204] : memref<16x128xf32, #tpu.memory_space<vmem>> -> memref<1x128xf32, #tpu.memory_space<vmem>>
      %354 = tpu.memref_slice %arg16[%c0_i32_200] : memref<1x!tpu.dma_semaphore, #tpu.memory_space<semaphore_mem>> -> memref<1x!tpu.dma_semaphore, #tpu.memory_space<semaphore_mem>>
      %355 = tpu.memref_squeeze %354 : memref<1x!tpu.dma_semaphore, #tpu.memory_space<semaphore_mem>> -> memref<!tpu.dma_semaphore, #tpu.memory_space<semaphore_mem>>
      tpu.wait_dma2 semaphore(%355 : memref<!tpu.dma_semaphore, #tpu.memory_space<semaphore_mem>>) src(%352 : memref<1x128xf32, #tpu.memory_space<any>>) dst(%353 : memref<1x128xf32, #tpu.memory_space<vmem>>)
      %c0_i32_205 = arith.constant 0 : i32
      %c0_i32_206 = arith.constant 0 : i32
      %c0_i32_207 = arith.constant 0 : i32
      %356 = tpu.memref_slice %arg2[%264, %c0_i32_206, %c0_i32_207] : memref<512x1x128xf32, #tpu.memory_space<any>> -> memref<1x1x128xf32, #tpu.memory_space<any>>
      %357 = tpu.memref_squeeze %356 : memref<1x1x128xf32, #tpu.memory_space<any>> -> memref<1x128xf32, #tpu.memory_space<any>>
      %c4_i32_208 = arith.constant 4 : i32
      %c0_i32_209 = arith.constant 0 : i32
      %358 = tpu.memref_slice %arg13[%c4_i32_208, %c0_i32_209] : memref<16x128xf32, #tpu.memory_space<vmem>> -> memref<1x128xf32, #tpu.memory_space<vmem>>
      %359 = tpu.memref_slice %arg16[%c0_i32_205] : memref<1x!tpu.dma_semaphore, #tpu.memory_space<semaphore_mem>> -> memref<1x!tpu.dma_semaphore, #tpu.memory_space<semaphore_mem>>
      %360 = tpu.memref_squeeze %359 : memref<1x!tpu.dma_semaphore, #tpu.memory_space<semaphore_mem>> -> memref<!tpu.dma_semaphore, #tpu.memory_space<semaphore_mem>>
      tpu.wait_dma2 semaphore(%360 : memref<!tpu.dma_semaphore, #tpu.memory_space<semaphore_mem>>) src(%357 : memref<1x128xf32, #tpu.memory_space<any>>) dst(%358 : memref<1x128xf32, #tpu.memory_space<vmem>>)
      %c0_i32_210 = arith.constant 0 : i32
      %c0_i32_211 = arith.constant 0 : i32
      %c0_i32_212 = arith.constant 0 : i32
      %361 = tpu.memref_slice %arg2[%270, %c0_i32_211, %c0_i32_212] : memref<512x1x128xf32, #tpu.memory_space<any>> -> memref<1x1x128xf32, #tpu.memory_space<any>>
      %362 = tpu.memref_squeeze %361 : memref<1x1x128xf32, #tpu.memory_space<any>> -> memref<1x128xf32, #tpu.memory_space<any>>
      %c5_i32_213 = arith.constant 5 : i32
      %c0_i32_214 = arith.constant 0 : i32
      %363 = tpu.memref_slice %arg13[%c5_i32_213, %c0_i32_214] : memref<16x128xf32, #tpu.memory_space<vmem>> -> memref<1x128xf32, #tpu.memory_space<vmem>>
      %364 = tpu.memref_slice %arg16[%c0_i32_210] : memref<1x!tpu.dma_semaphore, #tpu.memory_space<semaphore_mem>> -> memref<1x!tpu.dma_semaphore, #tpu.memory_space<semaphore_mem>>
      %365 = tpu.memref_squeeze %364 : memref<1x!tpu.dma_semaphore, #tpu.memory_space<semaphore_mem>> -> memref<!tpu.dma_semaphore, #tpu.memory_space<semaphore_mem>>
      tpu.wait_dma2 semaphore(%365 : memref<!tpu.dma_semaphore, #tpu.memory_space<semaphore_mem>>) src(%362 : memref<1x128xf32, #tpu.memory_space<any>>) dst(%363 : memref<1x128xf32, #tpu.memory_space<vmem>>)
      %c0_i32_215 = arith.constant 0 : i32
      %c0_i32_216 = arith.constant 0 : i32
      %c0_i32_217 = arith.constant 0 : i32
      %366 = tpu.memref_slice %arg2[%276, %c0_i32_216, %c0_i32_217] : memref<512x1x128xf32, #tpu.memory_space<any>> -> memref<1x1x128xf32, #tpu.memory_space<any>>
      %367 = tpu.memref_squeeze %366 : memref<1x1x128xf32, #tpu.memory_space<any>> -> memref<1x128xf32, #tpu.memory_space<any>>
      %c6_i32_218 = arith.constant 6 : i32
      %c0_i32_219 = arith.constant 0 : i32
      %368 = tpu.memref_slice %arg13[%c6_i32_218, %c0_i32_219] : memref<16x128xf32, #tpu.memory_space<vmem>> -> memref<1x128xf32, #tpu.memory_space<vmem>>
      %369 = tpu.memref_slice %arg16[%c0_i32_215] : memref<1x!tpu.dma_semaphore, #tpu.memory_space<semaphore_mem>> -> memref<1x!tpu.dma_semaphore, #tpu.memory_space<semaphore_mem>>
      %370 = tpu.memref_squeeze %369 : memref<1x!tpu.dma_semaphore, #tpu.memory_space<semaphore_mem>> -> memref<!tpu.dma_semaphore, #tpu.memory_space<semaphore_mem>>
      tpu.wait_dma2 semaphore(%370 : memref<!tpu.dma_semaphore, #tpu.memory_space<semaphore_mem>>) src(%367 : memref<1x128xf32, #tpu.memory_space<any>>) dst(%368 : memref<1x128xf32, #tpu.memory_space<vmem>>)
      %c0_i32_220 = arith.constant 0 : i32
      %c0_i32_221 = arith.constant 0 : i32
      %c0_i32_222 = arith.constant 0 : i32
      %371 = tpu.memref_slice %arg2[%282, %c0_i32_221, %c0_i32_222] : memref<512x1x128xf32, #tpu.memory_space<any>> -> memref<1x1x128xf32, #tpu.memory_space<any>>
      %372 = tpu.memref_squeeze %371 : memref<1x1x128xf32, #tpu.memory_space<any>> -> memref<1x128xf32, #tpu.memory_space<any>>
      %c7_i32_223 = arith.constant 7 : i32
      %c0_i32_224 = arith.constant 0 : i32
      %373 = tpu.memref_slice %arg13[%c7_i32_223, %c0_i32_224] : memref<16x128xf32, #tpu.memory_space<vmem>> -> memref<1x128xf32, #tpu.memory_space<vmem>>
      %374 = tpu.memref_slice %arg16[%c0_i32_220] : memref<1x!tpu.dma_semaphore, #tpu.memory_space<semaphore_mem>> -> memref<1x!tpu.dma_semaphore, #tpu.memory_space<semaphore_mem>>
      %375 = tpu.memref_squeeze %374 : memref<1x!tpu.dma_semaphore, #tpu.memory_space<semaphore_mem>> -> memref<!tpu.dma_semaphore, #tpu.memory_space<semaphore_mem>>
      tpu.wait_dma2 semaphore(%375 : memref<!tpu.dma_semaphore, #tpu.memory_space<semaphore_mem>>) src(%372 : memref<1x128xf32, #tpu.memory_space<any>>) dst(%373 : memref<1x128xf32, #tpu.memory_space<vmem>>)
      %c0_i32_225 = arith.constant 0 : i32
      %c0_i32_226 = arith.constant 0 : i32
      %c0_i32_227 = arith.constant 0 : i32
      %376 = tpu.memref_slice %arg2[%288, %c0_i32_226, %c0_i32_227] : memref<512x1x128xf32, #tpu.memory_space<any>> -> memref<1x1x128xf32, #tpu.memory_space<any>>
      %377 = tpu.memref_squeeze %376 : memref<1x1x128xf32, #tpu.memory_space<any>> -> memref<1x128xf32, #tpu.memory_space<any>>
      %c8_i32_228 = arith.constant 8 : i32
      %c0_i32_229 = arith.constant 0 : i32
      %378 = tpu.memref_slice %arg13[%c8_i32_228, %c0_i32_229] : memref<16x128xf32, #tpu.memory_space<vmem>> -> memref<1x128xf32, #tpu.memory_space<vmem>>
      %379 = tpu.memref_slice %arg16[%c0_i32_225] : memref<1x!tpu.dma_semaphore, #tpu.memory_space<semaphore_mem>> -> memref<1x!tpu.dma_semaphore, #tpu.memory_space<semaphore_mem>>
      %380 = tpu.memref_squeeze %379 : memref<1x!tpu.dma_semaphore, #tpu.memory_space<semaphore_mem>> -> memref<!tpu.dma_semaphore, #tpu.memory_space<semaphore_mem>>
      tpu.wait_dma2 semaphore(%380 : memref<!tpu.dma_semaphore, #tpu.memory_space<semaphore_mem>>) src(%377 : memref<1x128xf32, #tpu.memory_space<any>>) dst(%378 : memref<1x128xf32, #tpu.memory_space<vmem>>)
      %c0_i32_230 = arith.constant 0 : i32
      %c0_i32_231 = arith.constant 0 : i32
      %c0_i32_232 = arith.constant 0 : i32
      %381 = tpu.memref_slice %arg2[%294, %c0_i32_231, %c0_i32_232] : memref<512x1x128xf32, #tpu.memory_space<any>> -> memref<1x1x128xf32, #tpu.memory_space<any>>
      %382 = tpu.memref_squeeze %381 : memref<1x1x128xf32, #tpu.memory_space<any>> -> memref<1x128xf32, #tpu.memory_space<any>>
      %c9_i32_233 = arith.constant 9 : i32
      %c0_i32_234 = arith.constant 0 : i32
      %383 = tpu.memref_slice %arg13[%c9_i32_233, %c0_i32_234] : memref<16x128xf32, #tpu.memory_space<vmem>> -> memref<1x128xf32, #tpu.memory_space<vmem>>
      %384 = tpu.memref_slice %arg16[%c0_i32_230] : memref<1x!tpu.dma_semaphore, #tpu.memory_space<semaphore_mem>> -> memref<1x!tpu.dma_semaphore, #tpu.memory_space<semaphore_mem>>
      %385 = tpu.memref_squeeze %384 : memref<1x!tpu.dma_semaphore, #tpu.memory_space<semaphore_mem>> -> memref<!tpu.dma_semaphore, #tpu.memory_space<semaphore_mem>>
      tpu.wait_dma2 semaphore(%385 : memref<!tpu.dma_semaphore, #tpu.memory_space<semaphore_mem>>) src(%382 : memref<1x128xf32, #tpu.memory_space<any>>) dst(%383 : memref<1x128xf32, #tpu.memory_space<vmem>>)
      %c0_i32_235 = arith.constant 0 : i32
      %c0_i32_236 = arith.constant 0 : i32
      %c0_i32_237 = arith.constant 0 : i32
      %386 = tpu.memref_slice %arg2[%300, %c0_i32_236, %c0_i32_237] : memref<512x1x128xf32, #tpu.memory_space<any>> -> memref<1x1x128xf32, #tpu.memory_space<any>>
      %387 = tpu.memref_squeeze %386 : memref<1x1x128xf32, #tpu.memory_space<any>> -> memref<1x128xf32, #tpu.memory_space<any>>
      %c10_i32_238 = arith.constant 10 : i32
      %c0_i32_239 = arith.constant 0 : i32
      %388 = tpu.memref_slice %arg13[%c10_i32_238, %c0_i32_239] : memref<16x128xf32, #tpu.memory_space<vmem>> -> memref<1x128xf32, #tpu.memory_space<vmem>>
      %389 = tpu.memref_slice %arg16[%c0_i32_235] : memref<1x!tpu.dma_semaphore, #tpu.memory_space<semaphore_mem>> -> memref<1x!tpu.dma_semaphore, #tpu.memory_space<semaphore_mem>>
      %390 = tpu.memref_squeeze %389 : memref<1x!tpu.dma_semaphore, #tpu.memory_space<semaphore_mem>> -> memref<!tpu.dma_semaphore, #tpu.memory_space<semaphore_mem>>
      tpu.wait_dma2 semaphore(%390 : memref<!tpu.dma_semaphore, #tpu.memory_space<semaphore_mem>>) src(%387 : memref<1x128xf32, #tpu.memory_space<any>>) dst(%388 : memref<1x128xf32, #tpu.memory_space<vmem>>)
      %c0_i32_240 = arith.constant 0 : i32
      %c0_i32_241 = arith.constant 0 : i32
      %c0_i32_242 = arith.constant 0 : i32
      %391 = tpu.memref_slice %arg2[%306, %c0_i32_241, %c0_i32_242] : memref<512x1x128xf32, #tpu.memory_space<any>> -> memref<1x1x128xf32, #tpu.memory_space<any>>
      %392 = tpu.memref_squeeze %391 : memref<1x1x128xf32, #tpu.memory_space<any>> -> memref<1x128xf32, #tpu.memory_space<any>>
      %c11_i32_243 = arith.constant 11 : i32
      %c0_i32_244 = arith.constant 0 : i32
      %393 = tpu.memref_slice %arg13[%c11_i32_243, %c0_i32_244] : memref<16x128xf32, #tpu.memory_space<vmem>> -> memref<1x128xf32, #tpu.memory_space<vmem>>
      %394 = tpu.memref_slice %arg16[%c0_i32_240] : memref<1x!tpu.dma_semaphore, #tpu.memory_space<semaphore_mem>> -> memref<1x!tpu.dma_semaphore, #tpu.memory_space<semaphore_mem>>
      %395 = tpu.memref_squeeze %394 : memref<1x!tpu.dma_semaphore, #tpu.memory_space<semaphore_mem>> -> memref<!tpu.dma_semaphore, #tpu.memory_space<semaphore_mem>>
      tpu.wait_dma2 semaphore(%395 : memref<!tpu.dma_semaphore, #tpu.memory_space<semaphore_mem>>) src(%392 : memref<1x128xf32, #tpu.memory_space<any>>) dst(%393 : memref<1x128xf32, #tpu.memory_space<vmem>>)
      %c0_i32_245 = arith.constant 0 : i32
      %c0_i32_246 = arith.constant 0 : i32
      %c0_i32_247 = arith.constant 0 : i32
      %396 = tpu.memref_slice %arg2[%312, %c0_i32_246, %c0_i32_247] : memref<512x1x128xf32, #tpu.memory_space<any>> -> memref<1x1x128xf32, #tpu.memory_space<any>>
      %397 = tpu.memref_squeeze %396 : memref<1x1x128xf32, #tpu.memory_space<any>> -> memref<1x128xf32, #tpu.memory_space<any>>
      %c12_i32_248 = arith.constant 12 : i32
      %c0_i32_249 = arith.constant 0 : i32
      %398 = tpu.memref_slice %arg13[%c12_i32_248, %c0_i32_249] : memref<16x128xf32, #tpu.memory_space<vmem>> -> memref<1x128xf32, #tpu.memory_space<vmem>>
      %399 = tpu.memref_slice %arg16[%c0_i32_245] : memref<1x!tpu.dma_semaphore, #tpu.memory_space<semaphore_mem>> -> memref<1x!tpu.dma_semaphore, #tpu.memory_space<semaphore_mem>>
      %400 = tpu.memref_squeeze %399 : memref<1x!tpu.dma_semaphore, #tpu.memory_space<semaphore_mem>> -> memref<!tpu.dma_semaphore, #tpu.memory_space<semaphore_mem>>
      tpu.wait_dma2 semaphore(%400 : memref<!tpu.dma_semaphore, #tpu.memory_space<semaphore_mem>>) src(%397 : memref<1x128xf32, #tpu.memory_space<any>>) dst(%398 : memref<1x128xf32, #tpu.memory_space<vmem>>)
      %c0_i32_250 = arith.constant 0 : i32
      %c0_i32_251 = arith.constant 0 : i32
      %c0_i32_252 = arith.constant 0 : i32
      %401 = tpu.memref_slice %arg2[%318, %c0_i32_251, %c0_i32_252] : memref<512x1x128xf32, #tpu.memory_space<any>> -> memref<1x1x128xf32, #tpu.memory_space<any>>
      %402 = tpu.memref_squeeze %401 : memref<1x1x128xf32, #tpu.memory_space<any>> -> memref<1x128xf32, #tpu.memory_space<any>>
      %c13_i32_253 = arith.constant 13 : i32
      %c0_i32_254 = arith.constant 0 : i32
      %403 = tpu.memref_slice %arg13[%c13_i32_253, %c0_i32_254] : memref<16x128xf32, #tpu.memory_space<vmem>> -> memref<1x128xf32, #tpu.memory_space<vmem>>
      %404 = tpu.memref_slice %arg16[%c0_i32_250] : memref<1x!tpu.dma_semaphore, #tpu.memory_space<semaphore_mem>> -> memref<1x!tpu.dma_semaphore, #tpu.memory_space<semaphore_mem>>
      %405 = tpu.memref_squeeze %404 : memref<1x!tpu.dma_semaphore, #tpu.memory_space<semaphore_mem>> -> memref<!tpu.dma_semaphore, #tpu.memory_space<semaphore_mem>>
      tpu.wait_dma2 semaphore(%405 : memref<!tpu.dma_semaphore, #tpu.memory_space<semaphore_mem>>) src(%402 : memref<1x128xf32, #tpu.memory_space<any>>) dst(%403 : memref<1x128xf32, #tpu.memory_space<vmem>>)
      %c0_i32_255 = arith.constant 0 : i32
      %c0_i32_256 = arith.constant 0 : i32
      %c0_i32_257 = arith.constant 0 : i32
      %406 = tpu.memref_slice %arg2[%324, %c0_i32_256, %c0_i32_257] : memref<512x1x128xf32, #tpu.memory_space<any>> -> memref<1x1x128xf32, #tpu.memory_space<any>>
      %407 = tpu.memref_squeeze %406 : memref<1x1x128xf32, #tpu.memory_space<any>> -> memref<1x128xf32, #tpu.memory_space<any>>
      %c14_i32_258 = arith.constant 14 : i32
      %c0_i32_259 = arith.constant 0 : i32
      %408 = tpu.memref_slice %arg13[%c14_i32_258, %c0_i32_259] : memref<16x128xf32, #tpu.memory_space<vmem>> -> memref<1x128xf32, #tpu.memory_space<vmem>>
      %409 = tpu.memref_slice %arg16[%c0_i32_255] : memref<1x!tpu.dma_semaphore, #tpu.memory_space<semaphore_mem>> -> memref<1x!tpu.dma_semaphore, #tpu.memory_space<semaphore_mem>>
      %410 = tpu.memref_squeeze %409 : memref<1x!tpu.dma_semaphore, #tpu.memory_space<semaphore_mem>> -> memref<!tpu.dma_semaphore, #tpu.memory_space<semaphore_mem>>
      tpu.wait_dma2 semaphore(%410 : memref<!tpu.dma_semaphore, #tpu.memory_space<semaphore_mem>>) src(%407 : memref<1x128xf32, #tpu.memory_space<any>>) dst(%408 : memref<1x128xf32, #tpu.memory_space<vmem>>)
      %c0_i32_260 = arith.constant 0 : i32
      %c0_i32_261 = arith.constant 0 : i32
      %c0_i32_262 = arith.constant 0 : i32
      %411 = tpu.memref_slice %arg2[%330, %c0_i32_261, %c0_i32_262] : memref<512x1x128xf32, #tpu.memory_space<any>> -> memref<1x1x128xf32, #tpu.memory_space<any>>
      %412 = tpu.memref_squeeze %411 : memref<1x1x128xf32, #tpu.memory_space<any>> -> memref<1x128xf32, #tpu.memory_space<any>>
      %c15_i32_263 = arith.constant 15 : i32
      %c0_i32_264 = arith.constant 0 : i32
      %413 = tpu.memref_slice %arg13[%c15_i32_263, %c0_i32_264] : memref<16x128xf32, #tpu.memory_space<vmem>> -> memref<1x128xf32, #tpu.memory_space<vmem>>
      %414 = tpu.memref_slice %arg16[%c0_i32_260] : memref<1x!tpu.dma_semaphore, #tpu.memory_space<semaphore_mem>> -> memref<1x!tpu.dma_semaphore, #tpu.memory_space<semaphore_mem>>
      %415 = tpu.memref_squeeze %414 : memref<1x!tpu.dma_semaphore, #tpu.memory_space<semaphore_mem>> -> memref<!tpu.dma_semaphore, #tpu.memory_space<semaphore_mem>>
      tpu.wait_dma2 semaphore(%415 : memref<!tpu.dma_semaphore, #tpu.memory_space<semaphore_mem>>) src(%412 : memref<1x128xf32, #tpu.memory_space<any>>) dst(%413 : memref<1x128xf32, #tpu.memory_space<vmem>>)
      %c0_265 = arith.constant 0 : index
      %c0_266 = arith.constant 0 : index
      %416 = vector.load %arg13[%c0_265, %c0_266] : memref<16x128xf32, #tpu.memory_space<vmem>>, vector<16x128xf32>
      %c0_267 = arith.constant 0 : index
      %c0_268 = arith.constant 0 : index
      %417 = vector.load %arg3[%c0_267, %c0_268] : memref<8x128xf32, #tpu.memory_space<vmem>>, vector<8x128xf32>
      %418 = tpu.concatenate %417, %417 in 0 : vector<8x128xf32>, vector<8x128xf32> -> vector<16x128xf32>
      %419 = arith.addf %416, %418 : vector<16x128xf32>
      %c0_269 = arith.constant 0 : index
      %c0_270 = arith.constant 0 : index
      %420 = vector.load %arg13[%c0_269, %c0_270] : memref<16x128xf32, #tpu.memory_space<vmem>>, vector<16x128xf32>
      tpu.vector_store %arg13[%c0_269, %c0_270], %419 {strides = array<i32>} : memref<16x128xf32, #tpu.memory_space<vmem>>, vector<16x128xf32>,
    } else {
    }
    %c0 = arith.constant 0 : index
    %c0_1 = arith.constant 0 : index
    %3 = vector.load %arg13[%c0, %c0_1] : memref<16x128xf32, #tpu.memory_space<vmem>>, vector<16x128xf32>
    %c0_2 = arith.constant 0 : index
    %c0_3 = arith.constant 0 : index
    %4 = vector.load %arg15[%c0_2, %c0_3] : memref<8x8xf32, #tpu.memory_space<vmem>>, vector<8x8xf32>
    %c0_4 = arith.constant 0 : index
    %c0_5 = arith.constant 0 : index
    %c0_6 = arith.constant 0 : index
    %5 = vector.load %arg10[%c0_4, %c0_5, %c0_6] : memref<1x6x128xf32, #tpu.memory_space<vmem>>, vector<1x6x128xf32>
    %6 = vector.shape_cast %5 : vector<1x6x128xf32> to vector<6x128xf32>
    %7 = vector.extract_strided_slice %6 {offsets = [0, 0], sizes = [1, 128], strides = [1, 1]} : vector<6x128xf32> to vector<1x128xf32>
    %8 = vector.extract_strided_slice %6 {offsets = [1, 0], sizes = [1, 128], strides = [1, 1]} : vector<6x128xf32> to vector<1x128xf32>
    %9 = vector.extract_strided_slice %6 {offsets = [2, 0], sizes = [1, 128], strides = [1, 1]} : vector<6x128xf32> to vector<1x128xf32>
    %10 = vector.extract_strided_slice %6 {offsets = [3, 0], sizes = [1, 128], strides = [1, 1]} : vector<6x128xf32> to vector<1x128xf32>
    %11 = vector.extract_strided_slice %6 {offsets = [4, 0], sizes = [1, 128], strides = [1, 1]} : vector<6x128xf32> to vector<1x128xf32>
    %12 = vector.extract_strided_slice %6 {offsets = [5, 0], sizes = [1, 128], strides = [1, 1]} : vector<6x128xf32> to vector<1x128xf32>
    %c0_7 = arith.constant 0 : index
    %c0_8 = arith.constant 0 : index
    %c0_9 = arith.constant 0 : index
    %13 = vector.load %arg4[%c0_7, %c0_8, %c0_9] : memref<1x128x384xbf16, #tpu.memory_space<vmem>>, vector<1x128x384xbf16>
    %14 = vector.shape_cast %13 : vector<1x128x384xbf16> to vector<128x384xbf16>
    %c0_10 = arith.constant 0 : index
    %c0_11 = arith.constant 0 : index
    %c0_12 = arith.constant 0 : index
    %15 = vector.load %arg6[%c0_10, %c0_11, %c0_12] : memref<1x128x128xbf16, #tpu.memory_space<vmem>>, vector<1x128x128xbf16>
    %16 = vector.shape_cast %15 : vector<1x128x128xbf16> to vector<128x128xbf16>
    %cst = arith.constant dense<0.000000e+00> : vector<16xf32>
    %17 = vector.multi_reduction <add>, %3, %cst [1] : vector<16x128xf32> to vector<16xf32>
    %18 = vector.shape_cast %17 : vector<16xf32> to vector<16x1xf32>
    %cst_13 = arith.constant 1.280000e+02 : f32
    %19 = vector.broadcast %cst_13 : f32 to vector<16x1xf32>
    %20 = arith.divf %18, %19 : vector<16x1xf32>
    %21 = vector.broadcast %20 : vector<16x1xf32> to vector<16x128xf32>
    %22 = arith.subf %3, %21 : vector<16x128xf32>
    %23 = arith.mulf %22, %22 : vector<16x128xf32>
    %cst_14 = arith.constant dense<0.000000e+00> : vector<16xf32>
    %24 = vector.multi_reduction <add>, %23, %cst_14 [1] : vector<16x128xf32> to vector<16xf32>
    %25 = vector.shape_cast %24 : vector<16xf32> to vector<16x1xf32>
    %cst_15 = arith.constant 1.280000e+02 : f32
    %26 = vector.broadcast %cst_15 : f32 to vector<16x1xf32>
    %27 = arith.divf %25, %26 : vector<16x1xf32>
    %28 = vector.broadcast %20 : vector<16x1xf32> to vector<16x128xf32>
    %29 = arith.subf %3, %28 : vector<16x128xf32>
    %cst_16 = arith.constant 9.99999974E-6 : f32
    %30 = vector.broadcast %cst_16 : f32 to vector<16x1xf32>
    %31 = arith.addf %27, %30 : vector<16x1xf32>
    %32 = math.rsqrt %31 : vector<16x1xf32>
    %33 = vector.broadcast %32 : vector<16x1xf32> to vector<16x128xf32>
    %34 = arith.mulf %29, %33 : vector<16x128xf32>
    %35 = vector.broadcast %7 : vector<1x128xf32> to vector<16x128xf32>
    %36 = arith.mulf %34, %35 : vector<16x128xf32>
    %37 = vector.broadcast %8 : vector<1x128xf32> to vector<16x128xf32>
    %38 = arith.addf %36, %37 : vector<16x128xf32>
    %39 = arith.truncf %38 : vector<16x128xf32> to vector<16x128xbf16>
    %cst_17 = arith.constant dense<0.000000e+00> : vector<16x384xf32>
    %40 = tpu.matmul %39, %14, %cst_17 {dimension_numbers = #tpu.dot_dimension_numbers<[1], [0], [0], [1], [0, 0, 1, 1], [], []>} : vector<16x128xbf16>, vector<128x384xbf16>, vector<16x384xf32> -> vector<16x384xf32>
    %c0_18 = arith.constant 0 : index
    %c0_19 = arith.constant 0 : index
    %c0_20 = arith.constant 0 : index
    %41 = vector.load %arg5[%c0_18, %c0_19, %c0_20] : memref<1x1x384xf32, #tpu.memory_space<vmem>>, vector<1x1x384xf32>
    %42 = vector.shape_cast %41 : vector<1x1x384xf32> to vector<1x384xf32>
    %43 = vector.broadcast %42 : vector<1x384xf32> to vector<16x384xf32>
    %44 = arith.addf %40, %43 : vector<16x384xf32>
    %45 = vector.extract_strided_slice %44 {offsets = [0, 0], sizes = [16, 128], strides = [1, 1]} : vector<16x384xf32> to vector<16x128xf32>
    %cst_21 = arith.constant 0.176776692 : f32
    %46 = vector.broadcast %cst_21 : f32 to vector<16x128xf32>
    %47 = arith.mulf %45, %46 : vector<16x128xf32>
    %48 = vector.extract_strided_slice %44 {offsets = [0, 128], sizes = [16, 128], strides = [1, 1]} : vector<16x384xf32> to vector<16x128xf32>
    %49 = vector.extract_strided_slice %44 {offsets = [0, 256], sizes = [16, 128], strides = [1, 1]} : vector<16x384xf32> to vector<16x128xf32>
    %50 = vector.extract_strided_slice %47 {offsets = [0, 0], sizes = [8, 32], strides = [1, 1]} : vector<16x128xf32> to vector<8x32xf32>
    %51 = vector.extract_strided_slice %48 {offsets = [0, 0], sizes = [8, 32], strides = [1, 1]} : vector<16x128xf32> to vector<8x32xf32>
    %52 = vector.extract_strided_slice %49 {offsets = [0, 0], sizes = [8, 32], strides = [1, 1]} : vector<16x128xf32> to vector<8x32xf32>
    %cst_22 = arith.constant dense<0.000000e+00> : vector<8x8xf32>
    %53 = tpu.matmul %50, %51, %cst_22 {dimension_numbers = #tpu.dot_dimension_numbers<[1], [1], [0], [0], [0, 0, 1, 0], [], []>} : vector<8x32xf32>, vector<8x32xf32>, vector<8x8xf32> -> vector<8x8xf32>
    %54 = arith.addf %53, %4 : vector<8x8xf32>
    %cst_23 = arith.constant dense<0xFF800000> : vector<8xf32>
    %55 = vector.multi_reduction <maximumf>, %54, %cst_23 [1] : vector<8x8xf32> to vector<8xf32>
    %56 = vector.shape_cast %55 : vector<8xf32> to vector<8x1xf32>
    %57 = vector.broadcast %56 : vector<8x1xf32> to vector<8x8xf32>
    %58 = arith.subf %54, %57 : vector<8x8xf32>
    %59 = math.exp %58 : vector<8x8xf32>
    %cst_24 = arith.constant dense<0.000000e+00> : vector<8xf32>
    %60 = vector.multi_reduction <add>, %59, %cst_24 [1] : vector<8x8xf32> to vector<8xf32>
    %61 = vector.shape_cast %60 : vector<8xf32> to vector<8x1xf32>
    %62 = vector.broadcast %61 : vector<8x1xf32> to vector<8x8xf32>
    %63 = arith.divf %59, %62 : vector<8x8xf32>
    %cst_25 = arith.constant dense<0.000000e+00> : vector<8x32xf32>
    %64 = tpu.matmul %63, %52, %cst_25 {dimension_numbers = #tpu.dot_dimension_numbers<[1], [0], [0], [1], [0, 0, 1, 1], [], []>} : vector<8x8xf32>, vector<8x32xf32>, vector<8x32xf32> -> vector<8x32xf32>
    %c0_26 = arith.constant 0 : index
    %c0_27 = arith.constant 0 : index
    %65 = vector.load %arg14[%c0_26, %c0_27] : memref<16x128xf32, #tpu.memory_space<vmem>>, vector<8x32xf32>
    tpu.vector_store %arg14[%c0_26, %c0_27], %64 {strides = array<i32>} : memref<16x128xf32, #tpu.memory_space<vmem>>, vector<8x32xf32>,
    %66 = vector.extract_strided_slice %47 {offsets = [0, 32], sizes = [8, 32], strides = [1, 1]} : vector<16x128xf32> to vector<8x32xf32>
    %67 = vector.extract_strided_slice %48 {offsets = [0, 32], sizes = [8, 32], strides = [1, 1]} : vector<16x128xf32> to vector<8x32xf32>
    %68 = vector.extract_strided_slice %49 {offsets = [0, 32], sizes = [8, 32], strides = [1, 1]} : vector<16x128xf32> to vector<8x32xf32>
    %cst_28 = arith.constant dense<0.000000e+00> : vector<8x8xf32>
    %69 = tpu.matmul %66, %67, %cst_28 {dimension_numbers = #tpu.dot_dimension_numbers<[1], [1], [0], [0], [0, 0, 1, 0], [], []>} : vector<8x32xf32>, vector<8x32xf32>, vector<8x8xf32> -> vector<8x8xf32>
    %70 = arith.addf %69, %4 : vector<8x8xf32>
    %cst_29 = arith.constant dense<0xFF800000> : vector<8xf32>
    %71 = vector.multi_reduction <maximumf>, %70, %cst_29 [1] : vector<8x8xf32> to vector<8xf32>
    %72 = vector.shape_cast %71 : vector<8xf32> to vector<8x1xf32>
    %73 = vector.broadcast %72 : vector<8x1xf32> to vector<8x8xf32>
    %74 = arith.subf %70, %73 : vector<8x8xf32>
    %75 = math.exp %74 : vector<8x8xf32>
    %cst_30 = arith.constant dense<0.000000e+00> : vector<8xf32>
    %76 = vector.multi_reduction <add>, %75, %cst_30 [1] : vector<8x8xf32> to vector<8xf32>
    %77 = vector.shape_cast %76 : vector<8xf32> to vector<8x1xf32>
    %78 = vector.broadcast %77 : vector<8x1xf32> to vector<8x8xf32>
    %79 = arith.divf %75, %78 : vector<8x8xf32>
    %cst_31 = arith.constant dense<0.000000e+00> : vector<8x32xf32>
    %80 = tpu.matmul %79, %68, %cst_31 {dimension_numbers = #tpu.dot_dimension_numbers<[1], [0], [0], [1], [0, 0, 1, 1], [], []>} : vector<8x8xf32>, vector<8x32xf32>, vector<8x32xf32> -> vector<8x32xf32>
    %c0_32 = arith.constant 0 : index
    %c32 = arith.constant 32 : index
    %81 = vector.load %arg14[%c0_32, %c32] : memref<16x128xf32, #tpu.memory_space<vmem>>, vector<8x32xf32>
    tpu.vector_store %arg14[%c0_32, %c32], %80 {strides = array<i32>} : memref<16x128xf32, #tpu.memory_space<vmem>>, vector<8x32xf32>,
    %82 = vector.extract_strided_slice %47 {offsets = [0, 64], sizes = [8, 32], strides = [1, 1]} : vector<16x128xf32> to vector<8x32xf32>
    %83 = vector.extract_strided_slice %48 {offsets = [0, 64], sizes = [8, 32], strides = [1, 1]} : vector<16x128xf32> to vector<8x32xf32>
    %84 = vector.extract_strided_slice %49 {offsets = [0, 64], sizes = [8, 32], strides = [1, 1]} : vector<16x128xf32> to vector<8x32xf32>
    %cst_33 = arith.constant dense<0.000000e+00> : vector<8x8xf32>
    %85 = tpu.matmul %82, %83, %cst_33 {dimension_numbers = #tpu.dot_dimension_numbers<[1], [1], [0], [0], [0, 0, 1, 0], [], []>} : vector<8x32xf32>, vector<8x32xf32>, vector<8x8xf32> -> vector<8x8xf32>
    %86 = arith.addf %85, %4 : vector<8x8xf32>
    %cst_34 = arith.constant dense<0xFF800000> : vector<8xf32>
    %87 = vector.multi_reduction <maximumf>, %86, %cst_34 [1] : vector<8x8xf32> to vector<8xf32>
    %88 = vector.shape_cast %87 : vector<8xf32> to vector<8x1xf32>
    %89 = vector.broadcast %88 : vector<8x1xf32> to vector<8x8xf32>
    %90 = arith.subf %86, %89 : vector<8x8xf32>
    %91 = math.exp %90 : vector<8x8xf32>
    %cst_35 = arith.constant dense<0.000000e+00> : vector<8xf32>
    %92 = vector.multi_reduction <add>, %91, %cst_35 [1] : vector<8x8xf32> to vector<8xf32>
    %93 = vector.shape_cast %92 : vector<8xf32> to vector<8x1xf32>
    %94 = vector.broadcast %93 : vector<8x1xf32> to vector<8x8xf32>
    %95 = arith.divf %91, %94 : vector<8x8xf32>
    %cst_36 = arith.constant dense<0.000000e+00> : vector<8x32xf32>
    %96 = tpu.matmul %95, %84, %cst_36 {dimension_numbers = #tpu.dot_dimension_numbers<[1], [0], [0], [1], [0, 0, 1, 1], [], []>} : vector<8x8xf32>, vector<8x32xf32>, vector<8x32xf32> -> vector<8x32xf32>
    %c0_37 = arith.constant 0 : index
    %c64 = arith.constant 64 : index
    %97 = vector.load %arg14[%c0_37, %c64] : memref<16x128xf32, #tpu.memory_space<vmem>>, vector<8x32xf32>
    tpu.vector_store %arg14[%c0_37, %c64], %96 {strides = array<i32>} : memref<16x128xf32, #tpu.memory_space<vmem>>, vector<8x32xf32>,
    %98 = vector.extract_strided_slice %47 {offsets = [0, 96], sizes = [8, 32], strides = [1, 1]} : vector<16x128xf32> to vector<8x32xf32>
    %99 = vector.extract_strided_slice %48 {offsets = [0, 96], sizes = [8, 32], strides = [1, 1]} : vector<16x128xf32> to vector<8x32xf32>
    %100 = vector.extract_strided_slice %49 {offsets = [0, 96], sizes = [8, 32], strides = [1, 1]} : vector<16x128xf32> to vector<8x32xf32>
    %cst_38 = arith.constant dense<0.000000e+00> : vector<8x8xf32>
    %101 = tpu.matmul %98, %99, %cst_38 {dimension_numbers = #tpu.dot_dimension_numbers<[1], [1], [0], [0], [0, 0, 1, 0], [], []>} : vector<8x32xf32>, vector<8x32xf32>, vector<8x8xf32> -> vector<8x8xf32>
    %102 = arith.addf %101, %4 : vector<8x8xf32>
    %cst_39 = arith.constant dense<0xFF800000> : vector<8xf32>
    %103 = vector.multi_reduction <maximumf>, %102, %cst_39 [1] : vector<8x8xf32> to vector<8xf32>
    %104 = vector.shape_cast %103 : vector<8xf32> to vector<8x1xf32>
    %105 = vector.broadcast %104 : vector<8x1xf32> to vector<8x8xf32>
    %106 = arith.subf %102, %105 : vector<8x8xf32>
    %107 = math.exp %106 : vector<8x8xf32>
    %cst_40 = arith.constant dense<0.000000e+00> : vector<8xf32>
    %108 = vector.multi_reduction <add>, %107, %cst_40 [1] : vector<8x8xf32> to vector<8xf32>
    %109 = vector.shape_cast %108 : vector<8xf32> to vector<8x1xf32>
    %110 = vector.broadcast %109 : vector<8x1xf32> to vector<8x8xf32>
    %111 = arith.divf %107, %110 : vector<8x8xf32>
    %cst_41 = arith.constant dense<0.000000e+00> : vector<8x32xf32>
    %112 = tpu.matmul %111, %100, %cst_41 {dimension_numbers = #tpu.dot_dimension_numbers<[1], [0], [0], [1], [0, 0, 1, 1], [], []>} : vector<8x8xf32>, vector<8x32xf32>, vector<8x32xf32> -> vector<8x32xf32>
    %c0_42 = arith.constant 0 : index
    %c96 = arith.constant 96 : index
    %113 = vector.load %arg14[%c0_42, %c96] : memref<16x128xf32, #tpu.memory_space<vmem>>, vector<8x32xf32>
    tpu.vector_store %arg14[%c0_42, %c96], %112 {strides = array<i32>} : memref<16x128xf32, #tpu.memory_space<vmem>>, vector<8x32xf32>,
    %114 = vector.extract_strided_slice %47 {offsets = [8, 0], sizes = [8, 32], strides = [1, 1]} : vector<16x128xf32> to vector<8x32xf32>
    %115 = vector.extract_strided_slice %48 {offsets = [8, 0], sizes = [8, 32], strides = [1, 1]} : vector<16x128xf32> to vector<8x32xf32>
    %116 = vector.extract_strided_slice %49 {offsets = [8, 0], sizes = [8, 32], strides = [1, 1]} : vector<16x128xf32> to vector<8x32xf32>
    %cst_43 = arith.constant dense<0.000000e+00> : vector<8x8xf32>
    %117 = tpu.matmul %114, %115, %cst_43 {dimension_numbers = #tpu.dot_dimension_numbers<[1], [1], [0], [0], [0, 0, 1, 0], [], []>} : vector<8x32xf32>, vector<8x32xf32>, vector<8x8xf32> -> vector<8x8xf32>
    %118 = arith.addf %117, %4 : vector<8x8xf32>
    %cst_44 = arith.constant dense<0xFF800000> : vector<8xf32>
    %119 = vector.multi_reduction <maximumf>, %118, %cst_44 [1] : vector<8x8xf32> to vector<8xf32>
    %120 = vector.shape_cast %119 : vector<8xf32> to vector<8x1xf32>
    %121 = vector.broadcast %120 : vector<8x1xf32> to vector<8x8xf32>
    %122 = arith.subf %118, %121 : vector<8x8xf32>
    %123 = math.exp %122 : vector<8x8xf32>
    %cst_45 = arith.constant dense<0.000000e+00> : vector<8xf32>
    %124 = vector.multi_reduction <add>, %123, %cst_45 [1] : vector<8x8xf32> to vector<8xf32>
    %125 = vector.shape_cast %124 : vector<8xf32> to vector<8x1xf32>
    %126 = vector.broadcast %125 : vector<8x1xf32> to vector<8x8xf32>
    %127 = arith.divf %123, %126 : vector<8x8xf32>
    %cst_46 = arith.constant dense<0.000000e+00> : vector<8x32xf32>
    %128 = tpu.matmul %127, %116, %cst_46 {dimension_numbers = #tpu.dot_dimension_numbers<[1], [0], [0], [1], [0, 0, 1, 1], [], []>} : vector<8x8xf32>, vector<8x32xf32>, vector<8x32xf32> -> vector<8x32xf32>
    %c8 = arith.constant 8 : index
    %c0_47 = arith.constant 0 : index
    %129 = vector.load %arg14[%c8, %c0_47] : memref<16x128xf32, #tpu.memory_space<vmem>>, vector<8x32xf32>
    tpu.vector_store %arg14[%c8, %c0_47], %128 {strides = array<i32>} : memref<16x128xf32, #tpu.memory_space<vmem>>, vector<8x32xf32>,
    %130 = vector.extract_strided_slice %47 {offsets = [8, 32], sizes = [8, 32], strides = [1, 1]} : vector<16x128xf32> to vector<8x32xf32>
    %131 = vector.extract_strided_slice %48 {offsets = [8, 32], sizes = [8, 32], strides = [1, 1]} : vector<16x128xf32> to vector<8x32xf32>
    %132 = vector.extract_strided_slice %49 {offsets = [8, 32], sizes = [8, 32], strides = [1, 1]} : vector<16x128xf32> to vector<8x32xf32>
    %cst_48 = arith.constant dense<0.000000e+00> : vector<8x8xf32>
    %133 = tpu.matmul %130, %131, %cst_48 {dimension_numbers = #tpu.dot_dimension_numbers<[1], [1], [0], [0], [0, 0, 1, 0], [], []>} : vector<8x32xf32>, vector<8x32xf32>, vector<8x8xf32> -> vector<8x8xf32>
    %134 = arith.addf %133, %4 : vector<8x8xf32>
    %cst_49 = arith.constant dense<0xFF800000> : vector<8xf32>
    %135 = vector.multi_reduction <maximumf>, %134, %cst_49 [1] : vector<8x8xf32> to vector<8xf32>
    %136 = vector.shape_cast %135 : vector<8xf32> to vector<8x1xf32>
    %137 = vector.broadcast %136 : vector<8x1xf32> to vector<8x8xf32>
    %138 = arith.subf %134, %137 : vector<8x8xf32>
    %139 = math.exp %138 : vector<8x8xf32>
    %cst_50 = arith.constant dense<0.000000e+00> : vector<8xf32>
    %140 = vector.multi_reduction <add>, %139, %cst_50 [1] : vector<8x8xf32> to vector<8xf32>
    %141 = vector.shape_cast %140 : vector<8xf32> to vector<8x1xf32>
    %142 = vector.broadcast %141 : vector<8x1xf32> to vector<8x8xf32>
    %143 = arith.divf %139, %142 : vector<8x8xf32>
    %cst_51 = arith.constant dense<0.000000e+00> : vector<8x32xf32>
    %144 = tpu.matmul %143, %132, %cst_51 {dimension_numbers = #tpu.dot_dimension_numbers<[1], [0], [0], [1], [0, 0, 1, 1], [], []>} : vector<8x8xf32>, vector<8x32xf32>, vector<8x32xf32> -> vector<8x32xf32>
    %c8_52 = arith.constant 8 : index
    %c32_53 = arith.constant 32 : index
    %145 = vector.load %arg14[%c8_52, %c32_53] : memref<16x128xf32, #tpu.memory_space<vmem>>, vector<8x32xf32>
    tpu.vector_store %arg14[%c8_52, %c32_53], %144 {strides = array<i32>} : memref<16x128xf32, #tpu.memory_space<vmem>>, vector<8x32xf32>,
    %146 = vector.extract_strided_slice %47 {offsets = [8, 64], sizes = [8, 32], strides = [1, 1]} : vector<16x128xf32> to vector<8x32xf32>
    %147 = vector.extract_strided_slice %48 {offsets = [8, 64], sizes = [8, 32], strides = [1, 1]} : vector<16x128xf32> to vector<8x32xf32>
    %148 = vector.extract_strided_slice %49 {offsets = [8, 64], sizes = [8, 32], strides = [1, 1]} : vector<16x128xf32> to vector<8x32xf32>
    %cst_54 = arith.constant dense<0.000000e+00> : vector<8x8xf32>
    %149 = tpu.matmul %146, %147, %cst_54 {dimension_numbers = #tpu.dot_dimension_numbers<[1], [1], [0], [0], [0, 0, 1, 0], [], []>} : vector<8x32xf32>, vector<8x32xf32>, vector<8x8xf32> -> vector<8x8xf32>
    %150 = arith.addf %149, %4 : vector<8x8xf32>
    %cst_55 = arith.constant dense<0xFF800000> : vector<8xf32>
    %151 = vector.multi_reduction <maximumf>, %150, %cst_55 [1] : vector<8x8xf32> to vector<8xf32>
    %152 = vector.shape_cast %151 : vector<8xf32> to vector<8x1xf32>
    %153 = vector.broadcast %152 : vector<8x1xf32> to vector<8x8xf32>
    %154 = arith.subf %150, %153 : vector<8x8xf32>
    %155 = math.exp %154 : vector<8x8xf32>
    %cst_56 = arith.constant dense<0.000000e+00> : vector<8xf32>
    %156 = vector.multi_reduction <add>, %155, %cst_56 [1] : vector<8x8xf32> to vector<8xf32>
    %157 = vector.shape_cast %156 : vector<8xf32> to vector<8x1xf32>
    %158 = vector.broadcast %157 : vector<8x1xf32> to vector<8x8xf32>
    %159 = arith.divf %155, %158 : vector<8x8xf32>
    %cst_57 = arith.constant dense<0.000000e+00> : vector<8x32xf32>
    %160 = tpu.matmul %159, %148, %cst_57 {dimension_numbers = #tpu.dot_dimension_numbers<[1], [0], [0], [1], [0, 0, 1, 1], [], []>} : vector<8x8xf32>, vector<8x32xf32>, vector<8x32xf32> -> vector<8x32xf32>
    %c8_58 = arith.constant 8 : index
    %c64_59 = arith.constant 64 : index
    %161 = vector.load %arg14[%c8_58, %c64_59] : memref<16x128xf32, #tpu.memory_space<vmem>>, vector<8x32xf32>
    tpu.vector_store %arg14[%c8_58, %c64_59], %160 {strides = array<i32>} : memref<16x128xf32, #tpu.memory_space<vmem>>, vector<8x32xf32>,
    %162 = vector.extract_strided_slice %47 {offsets = [8, 96], sizes = [8, 32], strides = [1, 1]} : vector<16x128xf32> to vector<8x32xf32>
    %163 = vector.extract_strided_slice %48 {offsets = [8, 96], sizes = [8, 32], strides = [1, 1]} : vector<16x128xf32> to vector<8x32xf32>
    %164 = vector.extract_strided_slice %49 {offsets = [8, 96], sizes = [8, 32], strides = [1, 1]} : vector<16x128xf32> to vector<8x32xf32>
    %cst_60 = arith.constant dense<0.000000e+00> : vector<8x8xf32>
    %165 = tpu.matmul %162, %163, %cst_60 {dimension_numbers = #tpu.dot_dimension_numbers<[1], [1], [0], [0], [0, 0, 1, 0], [], []>} : vector<8x32xf32>, vector<8x32xf32>, vector<8x8xf32> -> vector<8x8xf32>
    %166 = arith.addf %165, %4 : vector<8x8xf32>
    %cst_61 = arith.constant dense<0xFF800000> : vector<8xf32>
    %167 = vector.multi_reduction <maximumf>, %166, %cst_61 [1] : vector<8x8xf32> to vector<8xf32>
    %168 = vector.shape_cast %167 : vector<8xf32> to vector<8x1xf32>
    %169 = vector.broadcast %168 : vector<8x1xf32> to vector<8x8xf32>
    %170 = arith.subf %166, %169 : vector<8x8xf32>
    %171 = math.exp %170 : vector<8x8xf32>
    %cst_62 = arith.constant dense<0.000000e+00> : vector<8xf32>
    %172 = vector.multi_reduction <add>, %171, %cst_62 [1] : vector<8x8xf32> to vector<8xf32>
    %173 = vector.shape_cast %172 : vector<8xf32> to vector<8x1xf32>
    %174 = vector.broadcast %173 : vector<8x1xf32> to vector<8x8xf32>
    %175 = arith.divf %171, %174 : vector<8x8xf32>
    %cst_63 = arith.constant dense<0.000000e+00> : vector<8x32xf32>
    %176 = tpu.matmul %175, %164, %cst_63 {dimension_numbers = #tpu.dot_dimension_numbers<[1], [0], [0], [1], [0, 0, 1, 1], [], []>} : vector<8x8xf32>, vector<8x32xf32>, vector<8x32xf32> -> vector<8x32xf32>
    %c8_64 = arith.constant 8 : index
    %c96_65 = arith.constant 96 : index
    %177 = vector.load %arg14[%c8_64, %c96_65] : memref<16x128xf32, #tpu.memory_space<vmem>>, vector<8x32xf32>
    tpu.vector_store %arg14[%c8_64, %c96_65], %176 {strides = array<i32>} : memref<16x128xf32, #tpu.memory_space<vmem>>, vector<8x32xf32>,
    %c0_66 = arith.constant 0 : index
    %c0_67 = arith.constant 0 : index
    %178 = vector.load %arg14[%c0_66, %c0_67] : memref<16x128xf32, #tpu.memory_space<vmem>>, vector<16x128xf32>
    %179 = arith.truncf %178 : vector<16x128xf32> to vector<16x128xbf16>
    %cst_68 = arith.constant dense<0.000000e+00> : vector<16x128xf32>
    %180 = tpu.matmul %179, %16, %cst_68 {dimension_numbers = #tpu.dot_dimension_numbers<[1], [0], [0], [1], [0, 0, 1, 1], [], []>} : vector<16x128xbf16>, vector<128x128xbf16>, vector<16x128xf32> -> vector<16x128xf32>
    %181 = vector.broadcast %9 : vector<1x128xf32> to vector<16x128xf32>
    %182 = arith.addf %180, %181 : vector<16x128xf32>
    %183 = arith.addf %3, %182 : vector<16x128xf32>
    %c0_69 = arith.constant 0 : index
    %c0_70 = arith.constant 0 : index
    %c0_71 = arith.constant 0 : index
    %184 = vector.load %arg7[%c0_69, %c0_70, %c0_71] : memref<1x128x512xbf16, #tpu.memory_space<vmem>>, vector<1x128x512xbf16>
    %185 = vector.shape_cast %184 : vector<1x128x512xbf16> to vector<128x512xbf16>
    %c0_72 = arith.constant 0 : index
    %c0_73 = arith.constant 0 : index
    %c0_74 = arith.constant 0 : index
    %186 = vector.load %arg9[%c0_72, %c0_73, %c0_74] : memref<1x512x128xbf16, #tpu.memory_space<vmem>>, vector<1x512x128xbf16>
    %187 = vector.shape_cast %186 : vector<1x512x128xbf16> to vector<512x128xbf16>
    %cst_75 = arith.constant dense<0.000000e+00> : vector<16xf32>
    %188 = vector.multi_reduction <add>, %183, %cst_75 [1] : vector<16x128xf32> to vector<16xf32>
    %189 = vector.shape_cast %188 : vector<16xf32> to vector<16x1xf32>
    %cst_76 = arith.constant 1.280000e+02 : f32
    %190 = vector.broadcast %cst_76 : f32 to vector<16x1xf32>
    %191 = arith.divf %189, %190 : vector<16x1xf32>
    %192 = vector.broadcast %191 : vector<16x1xf32> to vector<16x128xf32>
    %193 = arith.subf %183, %192 : vector<16x128xf32>
    %194 = arith.mulf %193, %193 : vector<16x128xf32>
    %cst_77 = arith.constant dense<0.000000e+00> : vector<16xf32>
    %195 = vector.multi_reduction <add>, %194, %cst_77 [1] : vector<16x128xf32> to vector<16xf32>
    %196 = vector.shape_cast %195 : vector<16xf32> to vector<16x1xf32>
    %cst_78 = arith.constant 1.280000e+02 : f32
    %197 = vector.broadcast %cst_78 : f32 to vector<16x1xf32>
    %198 = arith.divf %196, %197 : vector<16x1xf32>
    %199 = vector.broadcast %191 : vector<16x1xf32> to vector<16x128xf32>
    %200 = arith.subf %183, %199 : vector<16x128xf32>
    %cst_79 = arith.constant 9.99999974E-6 : f32
    %201 = vector.broadcast %cst_79 : f32 to vector<16x1xf32>
    %202 = arith.addf %198, %201 : vector<16x1xf32>
    %203 = math.rsqrt %202 : vector<16x1xf32>
    %204 = vector.broadcast %203 : vector<16x1xf32> to vector<16x128xf32>
    %205 = arith.mulf %200, %204 : vector<16x128xf32>
    %206 = vector.broadcast %10 : vector<1x128xf32> to vector<16x128xf32>
    %207 = arith.mulf %205, %206 : vector<16x128xf32>
    %208 = vector.broadcast %11 : vector<1x128xf32> to vector<16x128xf32>
    %209 = arith.addf %207, %208 : vector<16x128xf32>
    %210 = arith.truncf %209 : vector<16x128xf32> to vector<16x128xbf16>
    %cst_80 = arith.constant dense<0.000000e+00> : vector<16x512xf32>
    %211 = tpu.matmul %210, %185, %cst_80 {dimension_numbers = #tpu.dot_dimension_numbers<[1], [0], [0], [1], [0, 0, 1, 1], [], []>} : vector<16x128xbf16>, vector<128x512xbf16>, vector<16x512xf32> -> vector<16x512xf32>
    %c0_81 = arith.constant 0 : index
    %c0_82 = arith.constant 0 : index
    %c0_83 = arith.constant 0 : index
    %212 = vector.load %arg8[%c0_81, %c0_82, %c0_83] : memref<1x1x512xf32, #tpu.memory_space<vmem>>, vector<1x1x512xf32>
    %213 = vector.shape_cast %212 : vector<1x1x512xf32> to vector<1x512xf32>
    %214 = vector.broadcast %213 : vector<1x512xf32> to vector<16x512xf32>
    %215 = arith.addf %211, %214 : vector<16x512xf32>
    %cst_84 = arith.constant 1.702000e+00 : f32
    %216 = vector.broadcast %cst_84 : f32 to vector<16x512xf32>
    %217 = arith.mulf %216, %215 : vector<16x512xf32>
    %218 = arith.negf %217 : vector<16x512xf32>
    %219 = math.exp %218 : vector<16x512xf32>
    %cst_85 = arith.constant 1.000000e+00 : f32
    %220 = vector.broadcast %cst_85 : f32 to vector<16x512xf32>
    %221 = arith.addf %220, %219 : vector<16x512xf32>
    %222 = arith.divf %220, %221 : vector<16x512xf32>
    %223 = arith.mulf %215, %222 : vector<16x512xf32>
    %224 = arith.truncf %223 : vector<16x512xf32> to vector<16x512xbf16>
    %cst_86 = arith.constant dense<0.000000e+00> : vector<16x128xf32>
    %225 = tpu.matmul %224, %187, %cst_86 {dimension_numbers = #tpu.dot_dimension_numbers<[1], [0], [0], [1], [0, 0, 1, 1], [], []>} : vector<16x512xbf16>, vector<512x128xbf16>, vector<16x128xf32> -> vector<16x128xf32>
    %226 = vector.broadcast %12 : vector<1x128xf32> to vector<16x128xf32>
    %227 = arith.addf %225, %226 : vector<16x128xf32>
    %228 = arith.addf %183, %227 : vector<16x128xf32>
    %c0_87 = arith.constant 0 : index
    %c0_88 = arith.constant 0 : index
    %229 = vector.load %arg13[%c0_87, %c0_88] : memref<16x128xf32, #tpu.memory_space<vmem>>, vector<16x128xf32>
    tpu.vector_store %arg13[%c0_87, %c0_88], %228 {strides = array<i32>} : memref<16x128xf32, #tpu.memory_space<vmem>>, vector<16x128xf32>,
    %c11_i32 = arith.constant 11 : i32
    %230 = arith.cmpi eq, %arg0, %c11_i32 : i32
    %231 = arith.extui %230 : i1 to i32
    %c0_i32_89 = arith.constant 0 : i32
    %232 = arith.cmpi ne, %231, %c0_i32_89 : i32
    scf.if %232 {
      %c0_90 = arith.constant 0 : index
      %c0_91 = arith.constant 0 : index
      %233 = vector.load %arg11[%c0_90, %c0_91] : memref<2x128xf32, #tpu.memory_space<vmem>>, vector<1x128xf32>
      %c1 = arith.constant 1 : index
      %c0_92 = arith.constant 0 : index
      %234 = vector.load %arg11[%c1, %c0_92] : memref<2x128xf32, #tpu.memory_space<vmem>>, vector<1x128xf32>
      %cst_93 = arith.constant dense<0.000000e+00> : vector<16xf32>
      %235 = vector.multi_reduction <add>, %228, %cst_93 [1] : vector<16x128xf32> to vector<16xf32>
      %236 = vector.shape_cast %235 : vector<16xf32> to vector<16x1xf32>
      %cst_94 = arith.constant 1.280000e+02 : f32
      %237 = vector.broadcast %cst_94 : f32 to vector<16x1xf32>
      %238 = arith.divf %236, %237 : vector<16x1xf32>
      %239 = vector.broadcast %238 : vector<16x1xf32> to vector<16x128xf32>
      %240 = arith.subf %228, %239 : vector<16x128xf32>
      %241 = arith.mulf %240, %240 : vector<16x128xf32>
      %cst_95 = arith.constant dense<0.000000e+00> : vector<16xf32>
      %242 = vector.multi_reduction <add>, %241, %cst_95 [1] : vector<16x128xf32> to vector<16xf32>
      %243 = vector.shape_cast %242 : vector<16xf32> to vector<16x1xf32>
      %cst_96 = arith.constant 1.280000e+02 : f32
      %244 = vector.broadcast %cst_96 : f32 to vector<16x1xf32>
      %245 = arith.divf %243, %244 : vector<16x1xf32>
      %246 = vector.broadcast %238 : vector<16x1xf32> to vector<16x128xf32>
      %247 = arith.subf %228, %246 : vector<16x128xf32>
      %cst_97 = arith.constant 9.99999974E-6 : f32
      %248 = vector.broadcast %cst_97 : f32 to vector<16x1xf32>
      %249 = arith.addf %245, %248 : vector<16x1xf32>
      %250 = math.rsqrt %249 : vector<16x1xf32>
      %251 = vector.broadcast %250 : vector<16x1xf32> to vector<16x128xf32>
      %252 = arith.mulf %247, %251 : vector<16x128xf32>
      %253 = vector.broadcast %233 : vector<1x128xf32> to vector<16x128xf32>
      %254 = arith.mulf %252, %253 : vector<16x128xf32>
      %255 = vector.broadcast %234 : vector<1x128xf32> to vector<16x128xf32>
      %256 = arith.addf %254, %255 : vector<16x128xf32>
      %257 = vector.shape_cast %256 : vector<16x128xf32> to vector<2x8x128xf32>
      %c0_98 = arith.constant 0 : index
      %c0_99 = arith.constant 0 : index
      %c0_100 = arith.constant 0 : index
      %258 = vector.load %arg12[%c0_98, %c0_99, %c0_100] : memref<2x8x128xf32, #tpu.memory_space<vmem>>, vector<2x8x128xf32>
      tpu.vector_store %arg12[%c0_98, %c0_99, %c0_100], %257 {strides = array<i32>} : memref<2x8x128xf32, #tpu.memory_space<vmem>>, vector<2x8x128xf32>,
    } else {
    }
    return
  }
  func.func @transform_1(%arg0: i32, %arg1: memref<2x8xi32, #tpu.memory_space<smem>>) -> (i32, i32) {
    %c0_i32 = arith.constant 0 : i32
    %c0_i32_0 = arith.constant 0 : i32
    %c0_i32_1 = arith.constant 0 : i32
    return %c0_i32, %c0_i32_0 : i32, i32
  }
  func.func @transform_2(%arg0: i32, %arg1: memref<2x8xi32, #tpu.memory_space<smem>>) -> (i32, i32, i32) {
    %c0_i32 = arith.constant 0 : i32
    %c0_i32_0 = arith.constant 0 : i32
    %c0_i32_1 = arith.constant 0 : i32
    return %arg0, %c0_i32, %c0_i32_0 : i32, i32, i32
  }
  func.func @transform_3(%arg0: i32, %arg1: memref<2x8xi32, #tpu.memory_space<smem>>) -> (i32, i32, i32) {
    %c0_i32 = arith.constant 0 : i32
    %c0_i32_0 = arith.constant 0 : i32
    %c0_i32_1 = arith.constant 0 : i32
    return %arg0, %c0_i32, %c0_i32_0 : i32, i32, i32
  }
  func.func @transform_4(%arg0: i32, %arg1: memref<2x8xi32, #tpu.memory_space<smem>>) -> (i32, i32, i32) {
    %c0_i32 = arith.constant 0 : i32
    %c0_i32_0 = arith.constant 0 : i32
    %c0_i32_1 = arith.constant 0 : i32
    return %arg0, %c0_i32, %c0_i32_0 : i32, i32, i32
  }
  func.func @transform_5(%arg0: i32, %arg1: memref<2x8xi32, #tpu.memory_space<smem>>) -> (i32, i32, i32) {
    %c0_i32 = arith.constant 0 : i32
    %c0_i32_0 = arith.constant 0 : i32
    %c0_i32_1 = arith.constant 0 : i32
    return %arg0, %c0_i32, %c0_i32_0 : i32, i32, i32
  }
  func.func @transform_6(%arg0: i32, %arg1: memref<2x8xi32, #tpu.memory_space<smem>>) -> (i32, i32, i32) {
    %c0_i32 = arith.constant 0 : i32
    %c0_i32_0 = arith.constant 0 : i32
    %c0_i32_1 = arith.constant 0 : i32
    return %arg0, %c0_i32, %c0_i32_0 : i32, i32, i32
  }
  func.func @transform_7(%arg0: i32, %arg1: memref<2x8xi32, #tpu.memory_space<smem>>) -> (i32, i32, i32) {
    %c0_i32 = arith.constant 0 : i32
    %c0_i32_0 = arith.constant 0 : i32
    %c0_i32_1 = arith.constant 0 : i32
    return %arg0, %c0_i32, %c0_i32_0 : i32, i32, i32
  }
  func.func @transform_8(%arg0: i32, %arg1: memref<2x8xi32, #tpu.memory_space<smem>>) -> (i32, i32, i32) {
    %c0_i32 = arith.constant 0 : i32
    %c0_i32_0 = arith.constant 0 : i32
    %c0_i32_1 = arith.constant 0 : i32
    return %arg0, %c0_i32, %c0_i32_0 : i32, i32, i32
  }
  func.func @transform_9(%arg0: i32, %arg1: memref<2x8xi32, #tpu.memory_space<smem>>) -> (i32, i32) {
    %c0_i32 = arith.constant 0 : i32
    %c0_i32_0 = arith.constant 0 : i32
    %c0_i32_1 = arith.constant 0 : i32
    return %c0_i32, %c0_i32_0 : i32, i32
  }
  func.func @transform_10(%arg0: i32, %arg1: memref<2x8xi32, #tpu.memory_space<smem>>) -> (i32, i32, i32) {
    %c0_i32 = arith.constant 0 : i32
    %c0_i32_0 = arith.constant 0 : i32
    %c0_i32_1 = arith.constant 0 : i32
    %c0_i32_2 = arith.constant 0 : i32
    return %c0_i32, %c0_i32_0, %c0_i32_1 : i32, i32, i32
  }
}

</mosaic_0001>

<llo_original>
// kernel: forward.1
$region0: #{forward.1}
  #allocation0 [shape = 'u32[]', space=smem, size = 0x4, offset = 0x4, fixed_abs, tag = 'smem constant byte address 0x4 - core index']
  #allocation1 [shape = 'u32[144,128]{1,0:T(1,128)}', space=vmem, size = 0x12000, scoped, tag = 'internal scratch']
  #allocation2 [shape = 'f32[16,128]{1,0:T(8,128)}', space=vmem, size = 0x2000, scoped, tag = 'scratch operand']
  #allocation3 [shape = 'f32[16,128]{1,0:T(8,128)}', space=vmem, size = 0x2000, scoped, tag = 'scratch operand']
  #allocation4 [shape = 'f32[8,8]{1,0:T(8,128)}', space=vmem, size = 0x1000, scoped, tag = 'scratch operand']
  #allocation5 [shape = 's32[1]{0}', space=sflag, size = 0x4, scoped, tag = 'scratch operand']
  #allocation6 [shape = 's32[1]{0}', space=sflag, size = 0x4, scoped, tag = 'scoped memory for forward.1']
  #allocation7 [shape = 'u8[1024]{0}', space=smem, size = 0x400, scoped, tag = 'prefetched SMEM operand 0']
  #allocation24 [shape = 's32[]', space=sflag, size = 0x4, offset = 0, fixed_abs, tag = 'sflag constant byte address 0x0 - dummy sync flag']
  #allocation25 [shape = 's32[]', space=sflag, size = 0x4, offset = 0, fixed_abs, tag = 'sflag constant byte address 0x0 - dummy sync flag']
  #allocation26 [shape = 'u32[]', space=smem, size = 0x4, offset = 0x44, fixed_abs, tag = 'smem constant byte address 0x44 - assertion arg 0']
  #allocation27 [shape = 'u32[]', space=smem, size = 0x4, offset = 0x48, fixed_abs, tag = 'smem constant byte address 0x48 - assertion arg 1']
  #allocation28 [shape = 's32[]', space=sflag, size = 0x4, offset = 0, fixed_abs, tag = 'sflag constant byte address 0x0 - dummy sync flag']
  #allocation29 [shape = 's32[]', space=sflag, size = 0x4, offset = 0, fixed_abs, tag = 'sflag constant byte address 0x0 - dummy sync flag']
  #allocation30 [shape = 's32[]', space=sflag, size = 0x4, offset = 0, fixed_abs, tag = 'sflag constant byte address 0x0 - dummy sync flag']
  #allocation31 [shape = 's32[]', space=sflag, size = 0x4, offset = 0, fixed_abs, tag = 'sflag constant byte address 0x0 - dummy sync flag']
  #allocation32 [shape = 's32[]', space=sflag, size = 0x4, offset = 0, fixed_abs, tag = 'sflag constant byte address 0x0 - dummy sync flag']
  #allocation33 [shape = 's32[]', space=sflag, size = 0x4, offset = 0, fixed_abs, tag = 'sflag constant byte address 0x0 - dummy sync flag']
  #allocation34 [shape = 's32[]', space=sflag, size = 0x4, offset = 0, fixed_abs, tag = 'sflag constant byte address 0x0 - dummy sync flag']
  #allocation35 [shape = 's32[]', space=sflag, size = 0x4, offset = 0, fixed_abs, tag = 'sflag constant byte address 0x0 - dummy sync flag']
  #allocation36 [shape = 's32[]', space=sflag, size = 0x4, offset = 0, fixed_abs, tag = 'sflag constant byte address 0x0 - dummy sync flag']
  #allocation37 [shape = 's32[]', space=sflag, size = 0x4, offset = 0, fixed_abs, tag = 'sflag constant byte address 0x0 - dummy sync flag']
  #allocation38 [shape = 's32[]', space=sflag, size = 0x4, offset = 0, fixed_abs, tag = 'sflag constant byte address 0x0 - dummy sync flag']
  #allocation39 [shape = 's32[]', space=sflag, size = 0x4, offset = 0, fixed_abs, tag = 'sflag constant byte address 0x0 - dummy sync flag']
  #allocation40 [shape = 's32[]', space=sflag, size = 0x4, offset = 0, fixed_abs, tag = 'sflag constant byte address 0x0 - dummy sync flag']
  #allocation41 [shape = 's32[]', space=sflag, size = 0x4, offset = 0, fixed_abs, tag = 'sflag constant byte address 0x0 - dummy sync flag']
  #allocation42 [shape = 's32[]', space=sflag, size = 0x4, offset = 0, fixed_abs, tag = 'sflag constant byte address 0x0 - dummy sync flag']
  #allocation43 [shape = 's32[]', space=sflag, size = 0x4, offset = 0, fixed_abs, tag = 'sflag constant byte address 0x0 - dummy sync flag']
  #allocation44 [shape = 's32[]', space=sflag, size = 0x4, offset = 0, fixed_abs, tag = 'sflag constant byte address 0x0 - dummy sync flag']
  #allocation45 [shape = 's32[]', space=sflag, size = 0x4, offset = 0, fixed_abs, tag = 'sflag constant byte address 0x0 - dummy sync flag']
  #allocation46 [shape = 's32[]', space=sflag, size = 0x4, offset = 0, fixed_abs, tag = 'sflag constant byte address 0x0 - dummy sync flag']
  #allocation47 [shape = 's32[]', space=sflag, size = 0x4, offset = 0, fixed_abs, tag = 'sflag constant byte address 0x0 - dummy sync flag']
  #allocation48 [shape = 's32[]', space=sflag, size = 0x4, offset = 0, fixed_abs, tag = 'sflag constant byte address 0x0 - dummy sync flag']
  #allocation49 [shape = 's32[]', space=sflag, size = 0x4, offset = 0, fixed_abs, tag = 'sflag constant byte address 0x0 - dummy sync flag']
  #allocation50 [shape = 's32[]', space=sflag, size = 0x4, offset = 0, fixed_abs, tag = 'sflag constant byte address 0x0 - dummy sync flag']
  #allocation51 [shape = 's32[]', space=sflag, size = 0x4, offset = 0, fixed_abs, tag = 'sflag constant byte address 0x0 - dummy sync flag']
  #allocation52 [shape = 's32[]', space=sflag, size = 0x4, offset = 0, fixed_abs, tag = 'sflag constant byte address 0x0 - dummy sync flag']
  #allocation53 [shape = 's32[]', space=sflag, size = 0x4, offset = 0, fixed_abs, tag = 'sflag constant byte address 0x0 - dummy sync flag']
  #allocation54 [shape = 's32[]', space=sflag, size = 0x4, offset = 0, fixed_abs, tag = 'sflag constant byte address 0x0 - dummy sync flag']
  #allocation55 [shape = 's32[]', space=sflag, size = 0x4, offset = 0, fixed_abs, tag = 'sflag constant byte address 0x0 - dummy sync flag']
  #allocation56 [shape = 's32[]', space=sflag, size = 0x4, offset = 0, fixed_abs, tag = 'sflag constant byte address 0x0 - dummy sync flag']
  #allocation57 [shape = 's32[]', space=sflag, size = 0x4, offset = 0, fixed_abs, tag = 'sflag constant byte address 0x0 - dummy sync flag']
  %s0 = inlined_call_operand.hbm [shape: s32[2,8], index: 0, kind: input, shape index: {}]
  %s1 = inlined_call_operand.hbm [shape: f32[512,1,128], index: 1, kind: input, shape index: {}]
  %s2 = inlined_call_operand.hbm [shape: f32[8,128], index: 2, kind: input, shape index: {}]
  %s3 = inlined_call_operand.hbm [shape: bf16[12,128,384], index: 3, kind: input, shape index: {}]
  %s4 = inlined_call_operand.hbm [shape: f32[12,1,384], index: 4, kind: input, shape index: {}]
  %s5 = inlined_call_operand.hbm [shape: bf16[12,128,128], index: 5, kind: input, shape index: {}]
  %s6 = inlined_call_operand.hbm [shape: bf16[12,128,512], index: 6, kind: input, shape index: {}]
  %s7 = inlined_call_operand.hbm [shape: f32[12,1,512], index: 7, kind: input, shape index: {}]
  %s8 = inlined_call_operand.hbm [shape: bf16[12,512,128], index: 8, kind: input, shape index: {}]
  %s9 = inlined_call_operand.hbm [shape: f32[12,6,128], index: 9, kind: input, shape index: {}]
  %s10 = inlined_call_operand.hbm [shape: f32[2,128], index: 10, kind: input, shape index: {}]
  %s11 = inlined_call_operand.hbm [shape: f32[2,8,128], index: 11, kind: output, shape index: {}]
  %s12 = sld [smem:[#allocation0]]
  $region177: #{forward.1} parent=0
    _
  %s14 = ssub.s32 1, %s12
  %s15 = scalar_select 0, %s14, %s12
  %17 = dma.hbm_to_smem %s0, 32, [#allocation7], [#allocation6]
  %18 = dma.done [#allocation6], 32
  %19 = sfence
  $region1: #{forward.1} parent=0
    #allocation8 [shape = 'u8[4096]{0}', space=vmem, size = 0x1000, scoped, tag = 'input window, operand 2, single buffered']
    #allocation9 [shape = 's32[2]{0}', space=sflag, size = 0x8, scoped, tag = 'scoped memory for forward.1']
    #allocation10 [shape = 's32[2]{0}', space=sflag, size = 0x8, scoped, tag = 'scoped memory for forward.1']
    #allocation11 [shape = 'u8[196608]{0}', space=vmem, size = 0x30000, scoped, tag = 'input window, operand 3']
    #allocation12 [shape = 's32[2]{0}', space=sflag, size = 0x8, scoped, tag = 'scoped memory for forward.1']
    #allocation13 [shape = 'u8[3072]{0}', space=vmem, size = 0xc00, scoped, tag = 'input window, operand 4']
    #allocation14 [shape = 'u8[65536]{0}', space=vmem, size = 0x10000, scoped, tag = 'input window, operand 5']
    #allocation15 [shape = 's32[2]{0}', space=sflag, size = 0x8, scoped, tag = 'scoped memory for forward.1']
    #allocation16 [shape = 'u8[262144]{0}', space=vmem, size = 0x40000, scoped, tag = 'input window, operand 6']
    #allocation17 [shape = 'u8[4096]{0}', space=vmem, size = 0x1000, scoped, tag = 'input window, operand 7']
    #allocation18 [shape = 's32[2]{0}', space=sflag, size = 0x8, scoped, tag = 'scoped memory for forward.1']
    #allocation19 [shape = 'u8[262144]{0}', space=vmem, size = 0x40000, scoped, tag = 'input window, operand 8']
    #allocation20 [shape = 'u8[8192]{0}', space=vmem, size = 0x2000, scoped, tag = 'input window, operand 9']
    #allocation21 [shape = 's32[2]{0}', space=sflag, size = 0x8, scoped, tag = 'scoped memory for forward.1']
    #allocation22 [shape = 'u8[1024]{0}', space=vmem, size = 0x400, scoped, tag = 'input window, operand 10, single buffered']
    #allocation23 [shape = 'u8[8192]{0}', space=vmem, size = 0x2000, scoped, tag = 'output window, operand 0, single buffered']
    %20 = vsyncpa [#allocation9], 0
    %21 = vsyncpa [#allocation12], 0
    %s22 = scalar_lea.sflag [#allocation12], 1
    %23 = vsyncpa %s22, 0
    %24 = vsyncpa [#allocation15], 0
    %s25 = scalar_lea.sflag [#allocation15], 1
    %26 = vsyncpa %s25, 0
    %27 = vsyncpa [#allocation18], 0
    %s28 = scalar_lea.sflag [#allocation18], 1
    %29 = vsyncpa %s28, 0
    %30 = vsyncpa [#allocation21], 0
    %s31 = scalar_lea.sflag [#allocation21], 1
    %32 = vsyncpa %s31, 0
    %33 = vsyncpa [#allocation10], 0
    loop: start=0, step=1, limit=14
    $region2: #{forward.1} parent=1 // loop_pre_header
      _
    $region3: #{forward.1} parent=1 // loop_header
      %s35 = sphi 0, %s39
      %p36 = scmp.ge.s32.totalorder %s35, 14
      %s43 = sphi 0, %s43
      %s45 = sphi 0, %s43
      %s46 = sphi 0, %s45
      %s60 = sphi 0, %s46
      %s66 = sphi 0, %s68
      %s69 = sphi 0, %s66
      %s70 = sphi 0, %s69
      %s86 = sphi 0, %s70
      %s92 = sphi 0, %s94
      %s95 = sphi 0, %s92
      %s96 = sphi 0, %s95
      %s112 = sphi 0, %s96
      %s118 = sphi 0, %s120
      %s121 = sphi 0, %s118
      %s122 = sphi 0, %s121
      %s138 = sphi 0, %s122
      %s144 = sphi 0, %s146
      %s147 = sphi 0, %s144
      %s148 = sphi 0, %s147
      %s164 = sphi 0, %s148
      %s170 = sphi 0, %s172
      %s173 = sphi 0, %s170
      %s174 = sphi 0, %s173
      %s190 = sphi 0, %s174
      %s196 = sphi 0, %s198
      %s199 = sphi 0, %s196
      %s200 = sphi 0, %s199
      %s216 = sphi 0, %s200
      %s222 = sphi 0, %s224
      %s225 = sphi 0, %s222
      %s226 = sphi 0, %s225
      %s242 = sphi 0, %s226
      %s246 = sphi 0, %s246
      %s248 = sphi 0, %s246
      %s249 = sphi 0, %s248
      %s263 = sphi 0, %s249
      %s267 = sphi 0, %s267
      %s269 = sphi 0, %s267
      %s270 = sphi 0, %s269
      %s284 = sphi 0, %s270
    $region4: #{forward.1} parent=1 // loop_header_branch
      %38 = sbr.rel (%p36) target = $region8
    $region5: #{forward.1} parent=1 // loop_body
      %s40 = ssub.s32 %s35, 1
      %s41 = ssub.s32 %s35, 2
      %s42 = sadd.s32 %s35, 1
      %s44 = sadd.s32 %s43, 1
      %p47 = scmp.eq.s32.totalorder %s35, 11
      %p48 = scmp.ne.s32.totalorder %s43, %s45
      %p49 = scmp.eq.s32.totalorder %s35, 0
      %p50 = por %p48, %p49
      %p51 = scmp.ne.s32.totalorder %s43, %s45
      %p52 = scmp.eq.s32.totalorder %s40, 11
      %p53 = por %p51, %p52
      %p54 = scmp.ne.s32.totalorder %s45, %s46
      %p55 = scmp.eq.s32.totalorder %s40, 0
      %p56 = por %p54, %p55
      %p57 = scmp.ne.s32.totalorder %s45, %s46
      %p58 = scmp.eq.s32.totalorder %s41, 11
      %p59 = por %p57, %p58
      %p61 = scmp.ne.s32.totalorder %s46, %s60
      %p62 = scmp.eq.s32.totalorder %s41, 0
      %p63 = por %p61, %p62
      %s64 = ssub.s32 %s35, %s42
      %p65 = scmp.eq.s32.totalorder %s64, 0
      %s67 = sadd.s32 %s66, 1
      %s68 = scalar_select %p65, %s66, %s67
      %p71 = pneg %p65
      %p72 = scmp.eq.s32.totalorder %s35, 11
      %p73 = por %p71, %p72
      %p74 = scmp.ne.s32.totalorder %s66, %s69
      %p75 = scmp.eq.s32.totalorder %s35, 0
      %p76 = por %p74, %p75
      %p77 = scmp.ne.s32.totalorder %s66, %s69
      %p78 = scmp.eq.s32.totalorder %s40, 11
      %p79 = por %p77, %p78
      %p80 = scmp.ne.s32.totalorder %s69, %s70
      %p81 = scmp.eq.s32.totalorder %s40, 0
      %p82 = por %p80, %p81
      %p83 = scmp.ne.s32.totalorder %s69, %s70
      %p84 = scmp.eq.s32.totalorder %s41, 11
      %p85 = por %p83, %p84
      %p87 = scmp.ne.s32.totalorder %s70, %s86
      %p88 = scmp.eq.s32.totalorder %s41, 0
      %p89 = por %p87, %p88
      %s90 = ssub.s32 %s35, %s42
      %p91 = scmp.eq.s32.totalorder %s90, 0
      %s93 = sadd.s32 %s92, 1
      %s94 = scalar_select %p91, %s92, %s93
      %p97 = pneg %p91
      %p98 = scmp.eq.s32.totalorder %s35, 11
      %p99 = por %p97, %p98
      %p100 = scmp.ne.s32.totalorder %s92, %s95
      %p101 = scmp.eq.s32.totalorder %s35, 0
      %p102 = por %p100, %p101
      %p103 = scmp.ne.s32.totalorder %s92, %s95
      %p104 = scmp.eq.s32.totalorder %s40, 11
      %p105 = por %p103, %p104
      %p106 = scmp.ne.s32.totalorder %s95, %s96
      %p107 = scmp.eq.s32.totalorder %s40, 0
      %p108 = por %p106, %p107
      %p109 = scmp.ne.s32.totalorder %s95, %s96
      %p110 = scmp.eq.s32.totalorder %s41, 11
      %p111 = por %p109, %p110
      %p113 = scmp.ne.s32.totalorder %s96, %s112
      %p114 = scmp.eq.s32.totalorder %s41, 0
      %p115 = por %p113, %p114
      %s116 = ssub.s32 %s35, %s42
      %p117 = scmp.eq.s32.totalorder %s116, 0
      %s119 = sadd.s32 %s118, 1
      %s120 = scalar_select %p117, %s118, %s119
      %p123 = pneg %p117
      %p124 = scmp.eq.s32.totalorder %s35, 11
      %p125 = por %p123, %p124
      %p126 = scmp.ne.s32.totalorder %s118, %s121
      %p127 = scmp.eq.s32.totalorder %s35, 0
      %p128 = por %p126, %p127
      %p129 = scmp.ne.s32.totalorder %s118, %s121
      %p130 = scmp.eq.s32.totalorder %s40, 11
      %p131 = por %p129, %p130
      %p132 = scmp.ne.s32.totalorder %s121, %s122
      %p133 = scmp.eq.s32.totalorder %s40, 0
      %p134 = por %p132, %p133
      %p135 = scmp.ne.s32.totalorder %s121, %s122
      %p136 = scmp.eq.s32.totalorder %s41, 11
      %p137 = por %p135, %p136
      %p139 = scmp.ne.s32.totalorder %s122, %s138
      %p140 = scmp.eq.s32.totalorder %s41, 0
      %p141 = por %p139, %p140
      %s142 = ssub.s32 %s35, %s42
      %p143 = scmp.eq.s32.totalorder %s142, 0
      %s145 = sadd.s32 %s144, 1
      %s146 = scalar_select %p143, %s144, %s145
      %p149 = pneg %p143
      %p150 = scmp.eq.s32.totalorder %s35, 11
      %p151 = por %p149, %p150
      %p152 = scmp.ne.s32.totalorder %s144, %s147
      %p153 = scmp.eq.s32.totalorder %s35, 0
      %p154 = por %p152, %p153
      %p155 = scmp.ne.s32.totalorder %s144, %s147
      %p156 = scmp.eq.s32.totalorder %s40, 11
      %p157 = por %p155, %p156
      %p158 = scmp.ne.s32.totalorder %s147, %s148
      %p159 = scmp.eq.s32.totalorder %s40, 0
      %p160 = por %p158, %p159
      %p161 = scmp.ne.s32.totalorder %s147, %s148
      %p162 = scmp.eq.s32.totalorder %s41, 11
      %p163 = por %p161, %p162
      %p165 = scmp.ne.s32.totalorder %s148, %s164
      %p166 = scmp.eq.s32.totalorder %s41, 0
      %p167 = por %p165, %p166
      %s168 = ssub.s32 %s35, %s42
      %p169 = scmp.eq.s32.totalorder %s168, 0
      %s171 = sadd.s32 %s170, 1
      %s172 = scalar_select %p169, %s170, %s171
      %p175 = pneg %p169
      %p176 = scmp.eq.s32.totalorder %s35, 11
      %p177 = por %p175, %p176
      %p178 = scmp.ne.s32.totalorder %s170, %s173
      %p179 = scmp.eq.s32.totalorder %s35, 0
      %p180 = por %p178, %p179
      %p181 = scmp.ne.s32.totalorder %s170, %s173
      %p182 = scmp.eq.s32.totalorder %s40, 11
      %p183 = por %p181, %p182
      %p184 = scmp.ne.s32.totalorder %s173, %s174
      %p185 = scmp.eq.s32.totalorder %s40, 0
      %p186 = por %p184, %p185
      %p187 = scmp.ne.s32.totalorder %s173, %s174
      %p188 = scmp.eq.s32.totalorder %s41, 11
      %p189 = por %p187, %p188
      %p191 = scmp.ne.s32.totalorder %s174, %s190
      %p192 = scmp.eq.s32.totalorder %s41, 0
      %p193 = por %p191, %p192
      %s194 = ssub.s32 %s35, %s42
      %p195 = scmp.eq.s32.totalorder %s194, 0
      %s197 = sadd.s32 %s196, 1
      %s198 = scalar_select %p195, %s196, %s197
      %p201 = pneg %p195
      %p202 = scmp.eq.s32.totalorder %s35, 11
      %p203 = por %p201, %p202
      %p204 = scmp.ne.s32.totalorder %s196, %s199
      %p205 = scmp.eq.s32.totalorder %s35, 0
      %p206 = por %p204, %p205
      %p207 = scmp.ne.s32.totalorder %s196, %s199
      %p208 = scmp.eq.s32.totalorder %s40, 11
      %p209 = por %p207, %p208
      %p210 = scmp.ne.s32.totalorder %s199, %s200
      %p211 = scmp.eq.s32.totalorder %s40, 0
      %p212 = por %p210, %p211
      %p213 = scmp.ne.s32.totalorder %s199, %s200
      %p214 = scmp.eq.s32.totalorder %s41, 11
      %p215 = por %p213, %p214
      %p217 = scmp.ne.s32.totalorder %s200, %s216
      %p218 = scmp.eq.s32.totalorder %s41, 0
      %p219 = por %p217, %p218
      %s220 = ssub.s32 %s35, %s42
      %p221 = scmp.eq.s32.totalorder %s220, 0
      %s223 = sadd.s32 %s222, 1
      %s224 = scalar_select %p221, %s222, %s223
      %p227 = pneg %p221
      %p228 = scmp.eq.s32.totalorder %s35, 11
      %p229 = por %p227, %p228
      %p230 = scmp.ne.s32.totalorder %s222, %s225
      %p231 = scmp.eq.s32.totalorder %s35, 0
      %p232 = por %p230, %p231
      %p233 = scmp.ne.s32.totalorder %s222, %s225
      %p234 = scmp.eq.s32.totalorder %s40, 11
      %p235 = por %p233, %p234
      %p236 = scmp.ne.s32.totalorder %s225, %s226
      %p237 = scmp.eq.s32.totalorder %s40, 0
      %p238 = por %p236, %p237
      %p239 = scmp.ne.s32.totalorder %s225, %s226
      %p240 = scmp.eq.s32.totalorder %s41, 11
      %p241 = por %p239, %p240
      %p243 = scmp.ne.s32.totalorder %s226, %s242
      %p244 = scmp.eq.s32.totalorder %s41, 0
      %p245 = por %p243, %p244
      %s247 = sadd.s32 %s246, 1
      %p250 = scmp.eq.s32.totalorder %s35, 11
      %p251 = scmp.ne.s32.totalorder %s246, %s248
      %p252 = scmp.eq.s32.totalorder %s35, 0
      %p253 = por %p251, %p252
      %p254 = scmp.ne.s32.totalorder %s246, %s248
      %p255 = scmp.eq.s32.totalorder %s40, 11
      %p256 = por %p254, %p255
      %p257 = scmp.ne.s32.totalorder %s248, %s249
      %p258 = scmp.eq.s32.totalorder %s40, 0
      %p259 = por %p257, %p258
      %p260 = scmp.ne.s32.totalorder %s248, %s249
      %p261 = scmp.eq.s32.totalorder %s41, 11
      %p262 = por %p260, %p261
      %p264 = scmp.ne.s32.totalorder %s249, %s263
      %p265 = scmp.eq.s32.totalorder %s41, 0
      %p266 = por %p264, %p265
      %s268 = sadd.s32 %s267, 1
      %p271 = scmp.eq.s32.totalorder %s35, 11
      %p272 = scmp.ne.s32.totalorder %s267, %s269
      %p273 = scmp.eq.s32.totalorder %s35, 0
      %p274 = por %p272, %p273
      %p275 = scmp.ne.s32.totalorder %s267, %s269
      %p276 = scmp.eq.s32.totalorder %s40, 11
      %p277 = por %p275, %p276
      %p278 = scmp.ne.s32.totalorder %s269, %s270
      %p279 = scmp.eq.s32.totalorder %s40, 0
      %p280 = por %p278, %p279
      %p281 = scmp.ne.s32.totalorder %s269, %s270
      %p282 = scmp.eq.s32.totalorder %s41, 11
      %p283 = por %p281, %p282
      %p285 = scmp.ne.s32.totalorder %s270, %s284
      %p286 = scmp.eq.s32.totalorder %s41, 0
      %p287 = por %p285, %p286
      %p288 = scmp.le.s32.totalorder 1, %s35
      %p289 = scmp.lt.s32.totalorder %s35, 13
      %p290 = pnand %p288, %p289
      %p291 = pneg %p290
      // Predicated region
      $region9: #{forward.1} parent=5 // pred_check
        _
      $region10: #{forward.1} parent=5 // pred_check_branch
        %293 = sbr.rel (%p290) target = $region12
      $region11: #{forward.1} parent=5 // pred_region
        %s294 = ssub.s32 %s35, 1
        // Predicated region
        $region13: #{forward.1} parent=11 // pred_check
          %p295 = pneg %p56
        $region14: #{forward.1} parent=11 // pred_check_branch
          %297 = sbr.rel (%p295) target = $region16
        $region15: #{forward.1} parent=11 // pred_region
          %s299 = ssub.s32 128, 128
          %300 = vsyncadd [#allocation9], %s299
          %s302 = sshll.u32 [#allocation8], 4
          %s303 = int_to_ptr.vmem [resolvable:$true] %s302
          %305 = dma.hbm_to_vmem [thread:$0]  %s2, 128, %s303, [#allocation9]
        $region16: #{forward.1} parent=11 // pred_fallthru
          _
        // Predicated region
        $region17: #{forward.1} parent=11 // pred_check
          %p306 = pneg %p259
        $region18: #{forward.1} parent=11 // pred_check_branch
          %308 = sbr.rel (%p306) target = $region20
        $region19: #{forward.1} parent=11 // pred_region
          %s310 = ssub.s32 32, 32
          %311 = vsyncadd [#allocation21], %s310
          %s313 = sshll.u32 [#allocation22], 4
          %s314 = int_to_ptr.vmem [resolvable:$true] %s313
          %316 = dma.hbm_to_vmem [thread:$0]  %s10, 32, %s314, [#allocation21]
        $region20: #{forward.1} parent=11 // pred_fallthru
          _
      $region12: #{forward.1} parent=5 // pred_fallthru
        _
      %p317 = scmp.lt.s32.totalorder %s35, 12
      // Predicated region
      $region21: #{forward.1} parent=5 // pred_check
        %p318 = pneg %p317
      $region22: #{forward.1} parent=5 // pred_check_branch
        %320 = sbr.rel (%p318) target = $region24
      $region23: #{forward.1} parent=5 // pred_region
        // Predicated region
        $region25: #{forward.1} parent=23 // pred_check
          %p321 = pneg %p76
        $region26: #{forward.1} parent=23 // pred_check_branch
          %323 = sbr.rel (%p321) target = $region28
        $region27: #{forward.1} parent=23 // pred_region
          %s324 = sand.u32 %s35, 1
          %s325 = scalar_lea.sflag [#allocation12], %s324
          %s326 = sand.u32 %s66, 1
          %s327 = smul.addr %s326, 192
          %s328 = scalar_lea.vmem [#allocation11], %s327
          %s330 = ssub.s32 3072, 3072
          %331 = vsyncadd %s325, %s330
          %s332 = smul.addr %s35, 48
          %s333 = smul.addr %s332, 64
          %s334 = scalar_lea.hbm %s3, %s333
          %s335 = sshll.u32 %s328, 4
          %s336 = int_to_ptr.vmem [resolvable:$true] %s335
          %341 = dma.hbm_to_vmem [thread:$0]  %s334, 3072, %s336, %s325, 192, 192, 12
        $region28: #{forward.1} parent=23 // pred_fallthru
          _
        // Predicated region
        $region29: #{forward.1} parent=23 // pred_check
          %p342 = pneg %p102
        $region30: #{forward.1} parent=23 // pred_check_branch
          %344 = sbr.rel (%p342) target = $region32
        $region31: #{forward.1} parent=23 // pred_region
          %s345 = sand.u32 %s35, 1
          %s346 = scalar_lea.sflag [#allocation12], %s345
          %s347 = sand.u32 %s92, 1
          %s348 = smul.addr %s347, 3
          %s349 = scalar_lea.vmem [#allocation13], %s348
          %s351 = ssub.s32 48, 48
          %352 = vsyncadd %s346, %s351
          %s353 = smul.addr %s35, 3
          %s354 = smul.addr %s353, 16
          %s355 = scalar_lea.hbm %s4, %s354
          %s357 = sshll.u32 %s349, 4
          %s358 = int_to_ptr.vmem [resolvable:$true] %s357
          %360 = dma.hbm_to_vmem [thread:$0]  %s355, 48, %s358, %s346
        $region32: #{forward.1} parent=23 // pred_fallthru
          _
        // Predicated region
        $region33: #{forward.1} parent=23 // pred_check
          %p361 = pneg %p128
        $region34: #{forward.1} parent=23 // pred_check_branch
          %363 = sbr.rel (%p361) target = $region36
        $region35: #{forward.1} parent=23 // pred_region
          %s364 = sand.u32 %s35, 1
          %s365 = scalar_lea.sflag [#allocation15], %s364
          %s366 = sand.u32 %s118, 1
          %s367 = smul.addr %s366, 64
          %s368 = scalar_lea.vmem [#allocation14], %s367
          %s370 = ssub.s32 1024, 1024
          %371 = vsyncadd %s365, %s370
          %s372 = smul.addr %s35, 16
          %s373 = smul.addr %s372, 64
          %s374 = scalar_lea.hbm %s5, %s373
          %s375 = sshll.u32 %s368, 4
          %s376 = int_to_ptr.vmem [resolvable:$true] %s375
          %381 = dma.hbm_to_vmem [thread:$0]  %s374, 1024, %s376, %s365, 64, 64, 4
        $region36: #{forward.1} parent=23 // pred_fallthru
          _
        // Predicated region
        $region37: #{forward.1} parent=23 // pred_check
          %p382 = pneg %p154
        $region38: #{forward.1} parent=23 // pred_check_branch
          %384 = sbr.rel (%p382) target = $region40
        $region39: #{forward.1} parent=23 // pred_region
          %s385 = sand.u32 %s35, 1
          %s386 = scalar_lea.sflag [#allocation15], %s385
          %s387 = sand.u32 %s144, 1
          %s388 = smul.addr %s387, 256
          %s389 = scalar_lea.vmem [#allocation16], %s388
          %s391 = ssub.s32 4096, 4096
          %392 = vsyncadd %s386, %s391
          %s393 = smul.addr %s35, 64
          %s394 = smul.addr %s393, 64
          %s395 = scalar_lea.hbm %s6, %s394
          %s396 = sshll.u32 %s389, 4
          %s397 = int_to_ptr.vmem [resolvable:$true] %s396
          %402 = dma.hbm_to_vmem [thread:$0]  %s395, 4096, %s397, %s386, 256, 256, 16
        $region40: #{forward.1} parent=23 // pred_fallthru
          _
        // Predicated region
        $region41: #{forward.1} parent=23 // pred_check
          %p403 = pneg %p180
        $region42: #{forward.1} parent=23 // pred_check_branch
          %405 = sbr.rel (%p403) target = $region44
        $region43: #{forward.1} parent=23 // pred_region
          %s406 = sand.u32 %s35, 1
          %s407 = scalar_lea.sflag [#allocation18], %s406
          %s408 = sand.u32 %s170, 1
          %s409 = smul.addr %s408, 4
          %s410 = scalar_lea.vmem [#allocation17], %s409
          %s412 = ssub.s32 64, 64
          %413 = vsyncadd %s407, %s412
          %s414 = smul.addr %s35, 4
          %s415 = smul.addr %s414, 16
          %s416 = scalar_lea.hbm %s7, %s415
          %s418 = sshll.u32 %s410, 4
          %s419 = int_to_ptr.vmem [resolvable:$true] %s418
          %421 = dma.hbm_to_vmem [thread:$0]  %s416, 64, %s419, %s407
        $region44: #{forward.1} parent=23 // pred_fallthru
          _
        // Predicated region
        $region45: #{forward.1} parent=23 // pred_check
          %p422 = pneg %p206
        $region46: #{forward.1} parent=23 // pred_check_branch
          %424 = sbr.rel (%p422) target = $region48
        $region47: #{forward.1} parent=23 // pred_region
          %s425 = sand.u32 %s35, 1
          %s426 = scalar_lea.sflag [#allocation18], %s425
          %s427 = sand.u32 %s196, 1
          %s428 = smul.addr %s427, 256
          %s429 = scalar_lea.vmem [#allocation19], %s428
          %s431 = ssub.s32 4096, 4096
          %432 = vsyncadd %s426, %s431
          %s433 = smul.addr %s35, 64
          %s434 = smul.addr %s433, 64
          %s435 = scalar_lea.hbm %s8, %s434
          %s436 = sshll.u32 %s429, 4
          %s437 = int_to_ptr.vmem [resolvable:$true] %s436
          %442 = dma.hbm_to_vmem [thread:$0]  %s435, 4096, %s437, %s426, 64, 64, 4
        $region48: #{forward.1} parent=23 // pred_fallthru
          _
        // Predicated region
        $region49: #{forward.1} parent=23 // pred_check
          %p443 = pneg %p232
        $region50: #{forward.1} parent=23 // pred_check_branch
          %445 = sbr.rel (%p443) target = $region52
        $region51: #{forward.1} parent=23 // pred_region
          %s446 = sand.u32 %s35, 1
          %s447 = scalar_lea.sflag [#allocation21], %s446
          %s448 = sand.u32 %s222, 1
          %s449 = smul.addr %s448, 8
          %s450 = scalar_lea.vmem [#allocation20], %s449
          %s452 = ssub.s32 128, 128
          %453 = vsyncadd %s447, %s452
          %s454 = smul.addr %s35, 128
          %s455 = scalar_lea.hbm %s9, %s454
          %s457 = sshll.u32 %s450, 4
          %s458 = int_to_ptr.vmem [resolvable:$true] %s457
          %460 = dma.hbm_to_vmem [thread:$0]  %s455, 128, %s458, %s447
        $region52: #{forward.1} parent=23 // pred_fallthru
          _
      $region24: #{forward.1} parent=5 // pred_fallthru
        _
      %p461 = scmp.le.s32.totalorder 1, %s35
      %p462 = scmp.lt.s32.totalorder %s35, 13
      %p463 = pnand %p461, %p462
      %p464 = pneg %p463
      // Predicated region
      $region53: #{forward.1} parent=5 // pred_check
        _
      $region54: #{forward.1} parent=5 // pred_check_branch
        %466 = sbr.rel (%p463) target = $region56
      $region55: #{forward.1} parent=5 // pred_region
        %s467 = ssub.s32 %s35, 1
        // Predicated region
        $region57: #{forward.1} parent=55 // pred_check
          %p468 = pneg %p56
        $region58: #{forward.1} parent=55 // pred_check_branch
          %470 = sbr.rel (%p468) target = $region60
        $region59: #{forward.1} parent=55 // pred_region
          %471 = dma.done [#allocation9], 128
        $region60: #{forward.1} parent=55 // pred_fallthru
          _
        %s472 = sand.u32 %s40, 1
        %s473 = scalar_lea.sflag [#allocation12], %s472
        %s474 = sand.u32 %s69, 1
        %s475 = smul.addr %s474, 192
        %s476 = scalar_lea.vmem [#allocation11], %s475
        // Predicated region
        $region61: #{forward.1} parent=55 // pred_check
          %p477 = pneg %p82
        $region62: #{forward.1} parent=55 // pred_check_branch
          %479 = sbr.rel (%p477) target = $region64
        $region63: #{forward.1} parent=55 // pred_region
          %480 = dma.done %s473, 3072
        $region64: #{forward.1} parent=55 // pred_fallthru
          _
        %s481 = sand.u32 %s40, 1
        %s482 = scalar_lea.sflag [#allocation12], %s481
        %s483 = sand.u32 %s95, 1
        %s484 = smul.addr %s483, 3
        %s485 = scalar_lea.vmem [#allocation13], %s484
        // Predicated region
        $region65: #{forward.1} parent=55 // pred_check
          %p486 = pneg %p108
        $region66: #{forward.1} parent=55 // pred_check_branch
          %488 = sbr.rel (%p486) target = $region68
        $region67: #{forward.1} parent=55 // pred_region
          %489 = dma.done %s482, 48
        $region68: #{forward.1} parent=55 // pred_fallthru
          _
        %s490 = sand.u32 %s40, 1
        %s491 = scalar_lea.sflag [#allocation15], %s490
        %s492 = sand.u32 %s121, 1
        %s493 = smul.addr %s492, 64
        %s494 = scalar_lea.vmem [#allocation14], %s493
        // Predicated region
        $region69: #{forward.1} parent=55 // pred_check
          %p495 = pneg %p134
        $region70: #{forward.1} parent=55 // pred_check_branch
          %497 = sbr.rel (%p495) target = $region72
        $region71: #{forward.1} parent=55 // pred_region
          %498 = dma.done %s491, 1024
        $region72: #{forward.1} parent=55 // pred_fallthru
          _
        %s499 = sand.u32 %s40, 1
        %s500 = scalar_lea.sflag [#allocation15], %s499
        %s501 = sand.u32 %s147, 1
        %s502 = smul.addr %s501, 256
        %s503 = scalar_lea.vmem [#allocation16], %s502
        // Predicated region
        $region73: #{forward.1} parent=55 // pred_check
          %p504 = pneg %p160
        $region74: #{forward.1} parent=55 // pred_check_branch
          %506 = sbr.rel (%p504) target = $region76
        $region75: #{forward.1} parent=55 // pred_region
          %507 = dma.done %s500, 4096
        $region76: #{forward.1} parent=55 // pred_fallthru
          _
        %s508 = sand.u32 %s40, 1
        %s509 = scalar_lea.sflag [#allocation18], %s508
        %s510 = sand.u32 %s173, 1
        %s511 = smul.addr %s510, 4
        %s512 = scalar_lea.vmem [#allocation17], %s511
        // Predicated region
        $region77: #{forward.1} parent=55 // pred_check
          %p513 = pneg %p186
        $region78: #{forward.1} parent=55 // pred_check_branch
          %515 = sbr.rel (%p513) target = $region80
        $region79: #{forward.1} parent=55 // pred_region
          %516 = dma.done %s509, 64
        $region80: #{forward.1} parent=55 // pred_fallthru
          _
        %s517 = sand.u32 %s40, 1
        %s518 = scalar_lea.sflag [#allocation18], %s517
        %s519 = sand.u32 %s199, 1
        %s520 = smul.addr %s519, 256
        %s521 = scalar_lea.vmem [#allocation19], %s520
        // Predicated region
        $region81: #{forward.1} parent=55 // pred_check
          %p522 = pneg %p212
        $region82: #{forward.1} parent=55 // pred_check_branch
          %524 = sbr.rel (%p522) target = $region84
        $region83: #{forward.1} parent=55 // pred_region
          %525 = dma.done %s518, 4096
        $region84: #{forward.1} parent=55 // pred_fallthru
          _
        %s526 = sand.u32 %s40, 1
        %s527 = scalar_lea.sflag [#allocation21], %s526
        %s528 = sand.u32 %s225, 1
        %s529 = smul.addr %s528, 8
        %s530 = scalar_lea.vmem [#allocation20], %s529
        // Predicated region
        $region85: #{forward.1} parent=55 // pred_check
          %p531 = pneg %p238
        $region86: #{forward.1} parent=55 // pred_check_branch
          %533 = sbr.rel (%p531) target = $region88
        $region87: #{forward.1} parent=55 // pred_region
          %534 = dma.done %s527, 128
        $region88: #{forward.1} parent=55 // pred_fallthru
          _
        // Predicated region
        $region89: #{forward.1} parent=55 // pred_check
          %p535 = pneg %p259
        $region90: #{forward.1} parent=55 // pred_check_branch
          %537 = sbr.rel (%p535) target = $region92
        $region91: #{forward.1} parent=55 // pred_region
          %538 = dma.done [#allocation21], 32
        $region92: #{forward.1} parent=55 // pred_fallthru
          _
        %p539 = pneg %p56
        %p540 = pneg %p53
        %s541 = sand.u32 %s40, 1
        %s542 = scalar_lea.sflag [#allocation12], %s541
        %s543 = sand.u32 %s69, 1
        %s544 = smul.addr %s543, 192
        %s545 = scalar_lea.vmem [#allocation11], %s544
        %p546 = pneg %p82
        %p547 = pneg %p79
        %s548 = sand.u32 %s40, 1
        %s549 = scalar_lea.sflag [#allocation12], %s548
        %s550 = sand.u32 %s95, 1
        %s551 = smul.addr %s550, 3
        %s552 = scalar_lea.vmem [#allocation13], %s551
        %p553 = pneg %p108
        %p554 = pneg %p105
        %s555 = sand.u32 %s40, 1
        %s556 = scalar_lea.sflag [#allocation15], %s555
        %s557 = sand.u32 %s121, 1
        %s558 = smul.addr %s557, 64
        %s559 = scalar_lea.vmem [#allocation14], %s558
        %p560 = pneg %p134
        %p561 = pneg %p131
        %s562 = sand.u32 %s40, 1
        %s563 = scalar_lea.sflag [#allocation15], %s562
        %s564 = sand.u32 %s147, 1
        %s565 = smul.addr %s564, 256
        %s566 = scalar_lea.vmem [#allocation16], %s565
        %p567 = pneg %p160
        %p568 = pneg %p157
        %s569 = sand.u32 %s40, 1
        %s570 = scalar_lea.sflag [#allocation18], %s569
        %s571 = sand.u32 %s173, 1
        %s572 = smul.addr %s571, 4
        %s573 = scalar_lea.vmem [#allocation17], %s572
        %p574 = pneg %p186
        %p575 = pneg %p183
        %s576 = sand.u32 %s40, 1
        %s577 = scalar_lea.sflag [#allocation18], %s576
        %s578 = sand.u32 %s199, 1
        %s579 = smul.addr %s578, 256
        %s580 = scalar_lea.vmem [#allocation19], %s579
        %p581 = pneg %p212
        %p582 = pneg %p209
        %s583 = sand.u32 %s40, 1
        %s584 = scalar_lea.sflag [#allocation21], %s583
        %s585 = sand.u32 %s225, 1
        %s586 = smul.addr %s585, 8
        %s587 = scalar_lea.vmem [#allocation20], %s586
        %p588 = pneg %p238
        %p589 = pneg %p235
        %p590 = pneg %p259
        %p591 = pneg %p256
        %p592 = pneg %p280
        %p593 = pneg %p277
        %p595 = scmp.eq.s32.totalorder %s40, 0
        // Predicated region
        $region93: #{forward.1} parent=55 // pred_check
          %p596 = pneg %p595
        $region94: #{forward.1} parent=55 // pred_check_branch
          %598 = sbr.rel (%p596) target = $region96
        $region95: #{forward.1} parent=55 // pred_region
          %v599 = vlaneseq
          %v600 = vshrl.u32 %v599, 7
          %v601 = vlaneseq
          %v602 = vand.u32 %v601, 127
          %vm603 = vcmp.le.s32.totalorder %v602, %v600
          %v604 = vsel %vm603, 0.0, -1e+30
          %vm605 = vcmask 64512
          %606 = vst.msk [vmem:[#allocation4] sm:$0xff] %vm605, %v604
          %s607 = sld [smem:[#allocation7]]
          %s608 = smul.addr %s607, 16
          %s609 = scalar_lea.hbm %s1, %s608
          // Predicated region
          $region97: #{forward.1} parent=95 // pred_check
            _
          $region98: #{forward.1} parent=95 // pred_check_branch
            %611 = sbr.rel target = $region100
          $region99: #{forward.1} parent=95 // pred_region
            %612 = sst [smem:[#allocation26]] [#allocation25]
            %613 = sst [smem:[#allocation27]] [#allocation24]
          $region100: #{forward.1} parent=95 // pred_fallthru
            _
          %615 = shalt.err (0)
          %s617 = sshll.u32 [#allocation2], 4
          %s618 = int_to_ptr.vmem [resolvable:$true] %s617
          %620 = dma.hbm_to_vmem [thread:$0]  %s609, 16, %s618, [#allocation5]
          %s621 = sld [smem:[#allocation7 + $0x1]]
          %s622 = smul.addr %s621, 16
          %s623 = scalar_lea.hbm %s1, %s622
          %s624 = scalar_lea.vmem [#allocation2], 1
          // Predicated region
          $region101: #{forward.1} parent=95 // pred_check
            _
          $region102: #{forward.1} parent=95 // pred_check_branch
            %626 = sbr.rel target = $region104
          $region103: #{forward.1} parent=95 // pred_region
            %627 = sst [smem:[#allocation26]] [#allocation29]
            %628 = sst [smem:[#allocation27]] [#allocation28]
          $region104: #{forward.1} parent=95 // pred_fallthru
            _
          %630 = shalt.err (0)
          %s632 = sshll.u32 %s624, 4
          %s633 = int_to_ptr.vmem [resolvable:$true] %s632
          %635 = dma.hbm_to_vmem [thread:$0]  %s623, 16, %s633, [#allocation5]
          %s636 = sld [smem:[#allocation7 + $0x2]]
          %s637 = smul.addr %s636, 16
          %s638 = scalar_lea.hbm %s1, %s637
          %s639 = scalar_lea.vmem [#allocation2], 2
          // Predicated region
          $region105: #{forward.1} parent=95 // pred_check
            _
          $region106: #{forward.1} parent=95 // pred_check_branch
            %641 = sbr.rel target = $region108
          $region107: #{forward.1} parent=95 // pred_region
            %642 = sst [smem:[#allocation26]] [#allocation31]
            %643 = sst [smem:[#allocation27]] [#allocation30]
          $region108: #{forward.1} parent=95 // pred_fallthru
            _
          %645 = shalt.err (0)
          %s647 = sshll.u32 %s639, 4
          %s648 = int_to_ptr.vmem [resolvable:$true] %s647
          %650 = dma.hbm_to_vmem [thread:$0]  %s638, 16, %s648, [#allocation5]
          %s651 = sld [smem:[#allocation7 + $0x3]]
          %s652 = smul.addr %s651, 16
          %s653 = scalar_lea.hbm %s1, %s652
          %s654 = scalar_lea.vmem [#allocation2], 3
          // Predicated region
          $region109: #{forward.1} parent=95 // pred_check
            _
          $region110: #{forward.1} parent=95 // pred_check_branch
            %656 = sbr.rel target = $region112
          $region111: #{forward.1} parent=95 // pred_region
            %657 = sst [smem:[#allocation26]] [#allocation33]
            %658 = sst [smem:[#allocation27]] [#allocation32]
          $region112: #{forward.1} parent=95 // pred_fallthru
            _
          %660 = shalt.err (0)
          %s662 = sshll.u32 %s654, 4
          %s663 = int_to_ptr.vmem [resolvable:$true] %s662
          %665 = dma.hbm_to_vmem [thread:$0]  %s653, 16, %s663, [#allocation5]
          %s666 = sld [smem:[#allocation7 + $0x4]]
          %s667 = smul.addr %s666, 16
          %s668 = scalar_lea.hbm %s1, %s667
          %s669 = scalar_lea.vmem [#allocation2], 4
          // Predicated region
          $region113: #{forward.1} parent=95 // pred_check
            _
          $region114: #{forward.1} parent=95 // pred_check_branch
            %671 = sbr.rel target = $region116
          $region115: #{forward.1} parent=95 // pred_region
            %672 = sst [smem:[#allocation26]] [#allocation35]
            %673 = sst [smem:[#allocation27]] [#allocation34]
          $region116: #{forward.1} parent=95 // pred_fallthru
            _
          %675 = shalt.err (0)
          %s677 = sshll.u32 %s669, 4
          %s678 = int_to_ptr.vmem [resolvable:$true] %s677
          %680 = dma.hbm_to_vmem [thread:$0]  %s668, 16, %s678, [#allocation5]
          %s681 = sld [smem:[#allocation7 + $0x5]]
          %s682 = smul.addr %s681, 16
          %s683 = scalar_lea.hbm %s1, %s682
          %s684 = scalar_lea.vmem [#allocation2], 5
          // Predicated region
          $region117: #{forward.1} parent=95 // pred_check
            _
          $region118: #{forward.1} parent=95 // pred_check_branch
            %686 = sbr.rel target = $region120
          $region119: #{forward.1} parent=95 // pred_region
            %687 = sst [smem:[#allocation26]] [#allocation37]
            %688 = sst [smem:[#allocation27]] [#allocation36]
          $region120: #{forward.1} parent=95 // pred_fallthru
            _
          %690 = shalt.err (0)
          %s692 = sshll.u32 %s684, 4
          %s693 = int_to_ptr.vmem [resolvable:$true] %s692
          %695 = dma.hbm_to_vmem [thread:$0]  %s683, 16, %s693, [#allocation5]
          %s696 = sld [smem:[#allocation7 + $0x6]]
          %s697 = smul.addr %s696, 16
          %s698 = scalar_lea.hbm %s1, %s697
          %s699 = scalar_lea.vmem [#allocation2], 6
          // Predicated region
          $region121: #{forward.1} parent=95 // pred_check
            _
          $region122: #{forward.1} parent=95 // pred_check_branch
            %701 = sbr.rel target = $region124
          $region123: #{forward.1} parent=95 // pred_region
            %702 = sst [smem:[#allocation26]] [#allocation39]
            %703 = sst [smem:[#allocation27]] [#allocation38]
          $region124: #{forward.1} parent=95 // pred_fallthru
            _
          %705 = shalt.err (0)
          %s707 = sshll.u32 %s699, 4
          %s708 = int_to_ptr.vmem [resolvable:$true] %s707
          %710 = dma.hbm_to_vmem [thread:$0]  %s698, 16, %s708, [#allocation5]
          %s711 = sld [smem:[#allocation7 + $0x7]]
          %s712 = smul.addr %s711, 16
          %s713 = scalar_lea.hbm %s1, %s712
          %s714 = scalar_lea.vmem [#allocation2], 7
          // Predicated region
          $region125: #{forward.1} parent=95 // pred_check
            _
          $region126: #{forward.1} parent=95 // pred_check_branch
            %716 = sbr.rel target = $region128
          $region127: #{forward.1} parent=95 // pred_region
            %717 = sst [smem:[#allocation26]] [#allocation41]
            %718 = sst [smem:[#allocation27]] [#allocation40]
          $region128: #{forward.1} parent=95 // pred_fallthru
            _
          %720 = shalt.err (0)
          %s722 = sshll.u32 %s714, 4
          %s723 = int_to_ptr.vmem [resolvable:$true] %s722
          %725 = dma.hbm_to_vmem [thread:$0]  %s713, 16, %s723, [#allocation5]
          %s726 = sld [smem:[#allocation7 + $0x80]]
          %s727 = smul.addr %s726, 16
          %s728 = scalar_lea.hbm %s1, %s727
          %s729 = scalar_lea.vmem [#allocation2], 8
          // Predicated region
          $region129: #{forward.1} parent=95 // pred_check
            _
          $region130: #{forward.1} parent=95 // pred_check_branch
            %731 = sbr.rel target = $region132
          $region131: #{forward.1} parent=95 // pred_region
            %732 = sst [smem:[#allocation26]] [#allocation43]
            %733 = sst [smem:[#allocation27]] [#allocation42]
          $region132: #{forward.1} parent=95 // pred_fallthru
            _
          %735 = shalt.err (0)
          %s737 = sshll.u32 %s729, 4
          %s738 = int_to_ptr.vmem [resolvable:$true] %s737
          %740 = dma.hbm_to_vmem [thread:$0]  %s728, 16, %s738, [#allocation5]
          %s741 = sld [smem:[#allocation7 + $0x81]]
          %s742 = smul.addr %s741, 16
          %s743 = scalar_lea.hbm %s1, %s742
          %s744 = scalar_lea.vmem [#allocation2], 9
          // Predicated region
          $region133: #{forward.1} parent=95 // pred_check
            _
          $region134: #{forward.1} parent=95 // pred_check_branch
            %746 = sbr.rel target = $region136
          $region135: #{forward.1} parent=95 // pred_region
            %747 = sst [smem:[#allocation26]] [#allocation45]
            %748 = sst [smem:[#allocation27]] [#allocation44]
          $region136: #{forward.1} parent=95 // pred_fallthru
            _
          %750 = shalt.err (0)
          %s752 = sshll.u32 %s744, 4
          %s753 = int_to_ptr.vmem [resolvable:$true] %s752
          %755 = dma.hbm_to_vmem [thread:$0]  %s743, 16, %s753, [#allocation5]
          %s756 = sld [smem:[#allocation7 + $0x82]]
          %s757 = smul.addr %s756, 16
          %s758 = scalar_lea.hbm %s1, %s757
          %s759 = scalar_lea.vmem [#allocation2], 10
          // Predicated region
          $region137: #{forward.1} parent=95 // pred_check
            _
          $region138: #{forward.1} parent=95 // pred_check_branch
            %761 = sbr.rel target = $region140
          $region139: #{forward.1} parent=95 // pred_region
            %762 = sst [smem:[#allocation26]] [#allocation47]
            %763 = sst [smem:[#allocation27]] [#allocation46]
          $region140: #{forward.1} parent=95 // pred_fallthru
            _
          %765 = shalt.err (0)
          %s767 = sshll.u32 %s759, 4
          %s768 = int_to_ptr.vmem [resolvable:$true] %s767
          %770 = dma.hbm_to_vmem [thread:$0]  %s758, 16, %s768, [#allocation5]
          %s771 = sld [smem:[#allocation7 + $0x83]]
          %s772 = smul.addr %s771, 16
          %s773 = scalar_lea.hbm %s1, %s772
          %s774 = scalar_lea.vmem [#allocation2], 11
          // Predicated region
          $region141: #{forward.1} parent=95 // pred_check
            _
          $region142: #{forward.1} parent=95 // pred_check_branch
            %776 = sbr.rel target = $region144
          $region143: #{forward.1} parent=95 // pred_region
            %777 = sst [smem:[#allocation26]] [#allocation49]
            %778 = sst [smem:[#allocation27]] [#allocation48]
          $region144: #{forward.1} parent=95 // pred_fallthru
            _
          %780 = shalt.err (0)
          %s782 = sshll.u32 %s774, 4
          %s783 = int_to_ptr.vmem [resolvable:$true] %s782
          %785 = dma.hbm_to_vmem [thread:$0]  %s773, 16, %s783, [#allocation5]
          %s786 = sld [smem:[#allocation7 + $0x84]]
          %s787 = smul.addr %s786, 16
          %s788 = scalar_lea.hbm %s1, %s787
          %s789 = scalar_lea.vmem [#allocation2], 12
          // Predicated region
          $region145: #{forward.1} parent=95 // pred_check
            _
          $region146: #{forward.1} parent=95 // pred_check_branch
            %791 = sbr.rel target = $region148
          $region147: #{forward.1} parent=95 // pred_region
            %792 = sst [smem:[#allocation26]] [#allocation51]
            %793 = sst [smem:[#allocation27]] [#allocation50]
          $region148: #{forward.1} parent=95 // pred_fallthru
            _
          %795 = shalt.err (0)
          %s797 = sshll.u32 %s789, 4
          %s798 = int_to_ptr.vmem [resolvable:$true] %s797
          %800 = dma.hbm_to_vmem [thread:$0]  %s788, 16, %s798, [#allocation5]
          %s801 = sld [smem:[#allocation7 + $0x85]]
          %s802 = smul.addr %s801, 16
          %s803 = scalar_lea.hbm %s1, %s802
          %s804 = scalar_lea.vmem [#allocation2], 13
          // Predicated region
          $region149: #{forward.1} parent=95 // pred_check
            _
          $region150: #{forward.1} parent=95 // pred_check_branch
            %806 = sbr.rel target = $region152
          $region151: #{forward.1} parent=95 // pred_region
            %807 = sst [smem:[#allocation26]] [#allocation53]
            %808 = sst [smem:[#allocation27]] [#allocation52]
          $region152: #{forward.1} parent=95 // pred_fallthru
            _
          %810 = shalt.err (0)
          %s812 = sshll.u32 %s804, 4
          %s813 = int_to_ptr.vmem [resolvable:$true] %s812
          %815 = dma.hbm_to_vmem [thread:$0]  %s803, 16, %s813, [#allocation5]
          %s816 = sld [smem:[#allocation7 + $0x86]]
          %s817 = smul.addr %s816, 16
          %s818 = scalar_lea.hbm %s1, %s817
          %s819 = scalar_lea.vmem [#allocation2], 14
          // Predicated region
          $region153: #{forward.1} parent=95 // pred_check
            _
          $region154: #{forward.1} parent=95 // pred_check_branch
            %821 = sbr.rel target = $region156
          $region155: #{forward.1} parent=95 // pred_region
            %822 = sst [smem:[#allocation26]] [#allocation55]
            %823 = sst [smem:[#allocation27]] [#allocation54]
          $region156: #{forward.1} parent=95 // pred_fallthru
            _
          %825 = shalt.err (0)
          %s827 = sshll.u32 %s819, 4
          %s828 = int_to_ptr.vmem [resolvable:$true] %s827
          %830 = dma.hbm_to_vmem [thread:$0]  %s818, 16, %s828, [#allocation5]
          %s831 = sld [smem:[#allocation7 + $0x87]]
          %s832 = smul.addr %s831, 16
          %s833 = scalar_lea.hbm %s1, %s832
          %s834 = scalar_lea.vmem [#allocation2], 15
          // Predicated region
          $region157: #{forward.1} parent=95 // pred_check
            _
          $region158: #{forward.1} parent=95 // pred_check_branch
            %836 = sbr.rel target = $region160
          $region159: #{forward.1} parent=95 // pred_region
            %837 = sst [smem:[#allocation26]] [#allocation57]
            %838 = sst [smem:[#allocation27]] [#allocation56]
          $region160: #{forward.1} parent=95 // pred_fallthru
            _
          %840 = shalt.err (0)
          %s842 = sshll.u32 %s834, 4
          %s843 = int_to_ptr.vmem [resolvable:$true] %s842
          %845 = dma.hbm_to_vmem [thread:$0]  %s833, 16, %s843, [#allocation5]
          %s846 = smul.u32 1, 1
          %s847 = sshll.u32 %s846, 4
          %848 = dma.done [#allocation5], %s847
          %s849 = sshll.u32 %s846, 4
          %850 = dma.done [#allocation5], %s849
          %s851 = sshll.u32 %s846, 4
          %852 = dma.done [#allocation5], %s851
          %s853 = sshll.u32 %s846, 4
          %854 = dma.done [#allocation5], %s853
          %s855 = sshll.u32 %s846, 4
          %856 = dma.done [#allocation5], %s855
          %s857 = sshll.u32 %s846, 4
          %858 = dma.done [#allocation5], %s857
          %s859 = sshll.u32 %s846, 4
          %860 = dma.done [#allocation5], %s859
          %s861 = sshll.u32 %s846, 4
          %862 = dma.done [#allocation5], %s861
          %s863 = sshll.u32 %s846, 4
          %864 = dma.done [#allocation5], %s863
          %s865 = sshll.u32 %s846, 4
          %866 = dma.done [#allocation5], %s865
          %s867 = sshll.u32 %s846, 4
          %868 = dma.done [#allocation5], %s867
          %s869 = sshll.u32 %s846, 4
          %870 = dma.done [#allocation5], %s869
          %s871 = sshll.u32 %s846, 4
          %872 = dma.done [#allocation5], %s871
          %s873 = sshll.u32 %s846, 4
          %874 = dma.done [#allocation5], %s873
          %s875 = sshll.u32 %s846, 4
          %876 = dma.done [#allocation5], %s875
          %s877 = sshll.u32 %s846, 4
          %878 = dma.done [#allocation5], %s877
          %v879 = vld [vmem:[#allocation2] sm:$0xff]
          %v880 = vld [vmem:[#allocation2 + $0x8] sm:$0xff]
          %v881 = vld [vmem:[#allocation8] sm:$0xff]
          %v882 = vadd.f32 %v879, %v881
          %v883 = vadd.f32 %v880, %v881
          %884 = vst [vmem:[#allocation2] sm:$0xff] %v882
          %885 = vst [vmem:[#allocation2 + $0x8] sm:$0xff] %v883
        $region96: #{forward.1} parent=55 // pred_fallthru
          _
        %v886 = vld [vmem:[#allocation2] sm:$0xff]
        %v887 = vld [vmem:[#allocation2 + $0x8] sm:$0xff]
        %v888 = vld [vmem:[#allocation4] sm:$0xff]
        %v889 = vld [vmem:[%s530] sm:$0x3f]
        %v890 = vld [vmem:[%s476] sm:$0xff]
        %v891 = vld [vmem:[%s476 + $0x8] sm:$0xf]
        %v892 = vld [vmem:[%s476 + $0xc] sm:$0xff]
        %v893 = vld [vmem:[%s476 + $0x14] sm:$0xf]
        %v894 = vld [vmem:[%s476 + $0x18] sm:$0xff]
        %v895 = vld [vmem:[%s476 + $0x20] sm:$0xf]
        %v896 = vld [vmem:[%s476 + $0x24] sm:$0xff]
        %v897 = vld [vmem:[%s476 + $0x2c] sm:$0xf]
        %v898 = vld [vmem:[%s476 + $0x30] sm:$0xff]
        %v899 = vld [vmem:[%s476 + $0x38] sm:$0xf]
        %v900 = vld [vmem:[%s476 + $0x3c] sm:$0xff]
        %v901 = vld [vmem:[%s476 + $0x44] sm:$0xf]
        %v902 = vld [vmem:[%s476 + $0x48] sm:$0xff]
        %v903 = vld [vmem:[%s476 + $0x50] sm:$0xf]
        %v904 = vld [vmem:[%s476 + $0x54] sm:$0xff]
        %v905 = vld [vmem:[%s476 + $0x5c] sm:$0xf]
        %v906 = vld [vmem:[%s476 + $0x60] sm:$0xff]
        %v907 = vld [vmem:[%s476 + $0x68] sm:$0xf]
        %v908 = vld [vmem:[%s476 + $0x6c] sm:$0xff]
        %v909 = vld [vmem:[%s476 + $0x74] sm:$0xf]
        %v910 = vld [vmem:[%s476 + $0x78] sm:$0xff]
        %v911 = vld [vmem:[%s476 + $0x80] sm:$0xf]
        %v912 = vld [vmem:[%s476 + $0x84] sm:$0xff]
        %v913 = vld [vmem:[%s476 + $0x8c] sm:$0xf]
        %v914 = vld [vmem:[%s476 + $0x90] sm:$0xff]
        %v915 = vld [vmem:[%s476 + $0x98] sm:$0xf]
        %v916 = vld [vmem:[%s476 + $0x9c] sm:$0xff]
        %v917 = vld [vmem:[%s476 + $0xa4] sm:$0xf]
        %v918 = vld [vmem:[%s476 + $0xa8] sm:$0xff]
        %v919 = vld [vmem:[%s476 + $0xb0] sm:$0xf]
        %v920 = vld [vmem:[%s476 + $0xb4] sm:$0xff]
        %v921 = vld [vmem:[%s476 + $0xbc] sm:$0xf]
        %v922 = vld [vmem:[%s494] sm:$0xf]
        %v923 = vld [vmem:[%s494 + $0x4] sm:$0xf]
        %v924 = vld [vmem:[%s494 + $0x8] sm:$0xf]
        %v925 = vld [vmem:[%s494 + $0xc] sm:$0xf]
        %v926 = vld [vmem:[%s494 + $0x10] sm:$0xf]
        %v927 = vld [vmem:[%s494 + $0x14] sm:$0xf]
        %v928 = vld [vmem:[%s494 + $0x18] sm:$0xf]
        %v929 = vld [vmem:[%s494 + $0x1c] sm:$0xf]
        %v930 = vld [vmem:[%s494 + $0x20] sm:$0xf]
        %v931 = vld [vmem:[%s494 + $0x24] sm:$0xf]
        %v932 = vld [vmem:[%s494 + $0x28] sm:$0xf]
        %v933 = vld [vmem:[%s494 + $0x2c] sm:$0xf]
        %v934 = vld [vmem:[%s494 + $0x30] sm:$0xf]
        %v935 = vld [vmem:[%s494 + $0x34] sm:$0xf]
        %v936 = vld [vmem:[%s494 + $0x38] sm:$0xf]
        %v937 = vld [vmem:[%s494 + $0x3c] sm:$0xf]
        %938 = vadd.xlane.f32.xlu0 %v886
        %v939 = vpop.xlane.xlu0 %938
        %940 = vadd.xlane.f32.xlu0 %v887
        %v941 = vpop.xlane.xlu0 %940
        %v942 = vrcp.pop 128.0
        %v943 = vmul.f32 %v939, %v942
        %v944 = vmul.f32 %v941, %v942
        %v945 = vsub.f32 %v886, %v943
        %v946 = vsub.f32 %v887, %v944
        %v947 = vmul.f32 %v945, %v945
        %v948 = vmul.f32 %v946, %v946
        %949 = vadd.xlane.f32.xlu0 %v947
        %v950 = vpop.xlane.xlu0 %949
        %951 = vadd.xlane.f32.xlu0 %v948
        %v952 = vpop.xlane.xlu0 %951
        %v953 = vmul.f32 %v950, %v942
        %v954 = vmul.f32 %v952, %v942
        %v955 = vadd.f32 %v953, 1e-05
        %v956 = vadd.f32 %v954, 1e-05
        %v957 = vrsqrt.pop %v955
        %v958 = vrsqrt.pop %v956
        %v959 = vmul.f32 %v945, %v957
        %v960 = vmul.f32 %v946, %v958
        %v961 = vlaneseq
        %v962 = vshrl.u32 %v961, 7
        %v963 = vsub.s32 0, %v962
        %v964 = vrot.slane %v889, %v963
        %v965 = vmul.f32 %v959, %v964
        %v966 = vmul.f32 %v960, %v964
        %v967 = vlaneseq
        %v968 = vshrl.u32 %v967, 7
        %v969 = vsub.s32 1, %v968
        %v970 = vrot.slane %v889, %v969
        %v971 = vadd.f32 %v965, %v970
        %v972 = vadd.f32 %v966, %v970
        %v973 = vpack.c.bf16 %v972, %v971
        %v974 = vld [vmem:[%s485] sm:$0x7]
        %v976 = vlaneseq
        %v977 = vshrl.u32 %v976, 7
        %v978 = vsub.s32 0, %v977
        %v979 = vrot.slane %v974, %v978
        %v980 = vlaneseq
        %v981 = vshrl.u32 %v980, 7
        %v982 = vsub.s32 1, %v981
        %v983 = vrot.slane %v974, %v982
        %v984 = vlaneseq
        %v985 = vshrl.u32 %v984, 7
        %v986 = vsub.s32 2, %v985
        %v987 = vrot.slane %v974, %v986
        %v1023 = vunpack.c.l.b16 %v890
        %v1024 = vunpack.c.h.b16 %v890
        %v1025 = vunpack.c.l.b16 %v891
        %v1026 = vunpack.c.l.b16 %v892
        %v1027 = vunpack.c.h.b16 %v892
        %v1028 = vunpack.c.l.b16 %v893
        %v1029 = vunpack.c.l.b16 %v894
        %v1030 = vunpack.c.h.b16 %v894
        %v1031 = vunpack.c.l.b16 %v895
        %v1032 = vunpack.c.l.b16 %v896
        %v1033 = vunpack.c.h.b16 %v896
        %v1034 = vunpack.c.l.b16 %v897
        %v1035 = vunpack.c.l.b16 %v898
        %v1036 = vunpack.c.h.b16 %v898
        %v1037 = vunpack.c.l.b16 %v899
        %v1038 = vunpack.c.l.b16 %v900
        %v1039 = vunpack.c.h.b16 %v900
        %v1040 = vunpack.c.l.b16 %v901
        %v1041 = vunpack.c.l.b16 %v902
        %v1042 = vunpack.c.h.b16 %v902
        %v1043 = vunpack.c.l.b16 %v903
        %v1044 = vunpack.c.l.b16 %v904
        %v1045 = vunpack.c.h.b16 %v904
        %v1046 = vunpack.c.l.b16 %v905
        %v1047 = vunpack.c.l.b16 %v906
        %v1048 = vunpack.c.h.b16 %v906
        %v1049 = vunpack.c.l.b16 %v907
        %v1050 = vunpack.c.l.b16 %v908
        %v1051 = vunpack.c.h.b16 %v908
        %v1052 = vunpack.c.l.b16 %v909
        %v1053 = vunpack.c.l.b16 %v910
        %v1054 = vunpack.c.h.b16 %v910
        %v1055 = vunpack.c.l.b16 %v911
        %v1056 = vunpack.c.l.b16 %v912
        %v1057 = vunpack.c.h.b16 %v912
        %v1058 = vunpack.c.l.b16 %v913
        %v1059 = vunpack.c.l.b16 %v914
        %v1060 = vunpack.c.h.b16 %v914
        %v1061 = vunpack.c.l.b16 %v915
        %v1062 = vunpack.c.l.b16 %v916
        %v1063 = vunpack.c.h.b16 %v916
        %v1064 = vunpack.c.l.b16 %v917
        %v1065 = vunpack.c.l.b16 %v918
        %v1066 = vunpack.c.h.b16 %v918
        %v1067 = vunpack.c.l.b16 %v919
        %v1068 = vunpack.c.l.b16 %v920
        %v1069 = vunpack.c.h.b16 %v920
        %v1070 = vunpack.c.l.b16 %v921
        %v1071 = vpack.c.b16 %v1026, %v1023
        %v1072 = vpack.c.b16 %v1027, %v1024
        %v1073 = vpack.c.b16 %v1028, %v1025
        %v1074 = vpack.c.b16 %v1032, %v1029
        %v1075 = vpack.c.b16 %v1033, %v1030
        %v1076 = vpack.c.b16 %v1034, %v1031
        %v1077 = vpack.c.b16 %v1038, %v1035
        %v1078 = vpack.c.b16 %v1039, %v1036
        %v1079 = vpack.c.b16 %v1040, %v1037
        %v1080 = vpack.c.b16 %v1044, %v1041
        %v1081 = vpack.c.b16 %v1045, %v1042
        %v1082 = vpack.c.b16 %v1046, %v1043
        %v1083 = vpack.c.b16 %v1050, %v1047
        %v1084 = vpack.c.b16 %v1051, %v1048
        %v1085 = vpack.c.b16 %v1052, %v1049
        %v1086 = vpack.c.b16 %v1056, %v1053
        %v1087 = vpack.c.b16 %v1057, %v1054
        %v1088 = vpack.c.b16 %v1058, %v1055
        %v1089 = vpack.c.b16 %v1062, %v1059
        %v1090 = vpack.c.b16 %v1063, %v1060
        %v1091 = vpack.c.b16 %v1064, %v1061
        %v1092 = vpack.c.b16 %v1068, %v1065
        %v1093 = vpack.c.b16 %v1069, %v1066
        %v1094 = vpack.c.b16 %v1070, %v1067
        %1119 = vmatprep.subr.bf16.mxu0 %v1093
        %1120 = vmatpush1.bf16.msra.mxu0 %v1092
        %1121 = vmatprep.subr.bf16.mxu0 %v1090
        %1122 = vmatpush1.bf16.msra.mxu0 %v1089
        %1123 = vmatprep.subr.bf16.mxu0 %v1087
        %1124 = vmatpush1.bf16.msra.mxu0 %v1086
        %1125 = vmatprep.subr.bf16.mxu0 %v1084
        %1126 = vmatpush1.bf16.msra.mxu0 %v1083
        %1127 = vmatprep.subr.bf16.mxu0 %v1081
        %1128 = vmatpush1.bf16.msra.mxu0 %v1080
        %1129 = vmatprep.subr.bf16.mxu0 %v1078
        %1130 = vmatpush1.bf16.msra.mxu0 %v1077
        %1131 = vmatprep.subr.bf16.mxu0 %v1075
        %1132 = vmatpush1.bf16.msra.mxu0 %v1074
        %1133 = vmatprep.subr.bf16.mxu0 %v1072
        %1134 = vmatpush1.bf16.msra.mxu0 %v1071
        %1135 = vmatprep.subr.bf16.mxu0 0
        %1136 = vmatpush2.bf16.msra.mxu0 0
        %1137 = vmatprep.subr.bf16.mxu0 0
        %1138 = vmatpush2.bf16.msra.mxu0 0
        %1139 = vmatprep.subr.bf16.mxu0 0
        %1140 = vmatpush2.bf16.msra.mxu0 0
        %1141 = vmatprep.subr.bf16.mxu0 0
        %1142 = vmatpush2.bf16.msra.mxu0 0
        %1143 = vmatprep.subr.bf16.mxu0 0
        %1144 = vmatpush2.bf16.msra.mxu0 0
        %1145 = vmatprep.subr.bf16.mxu0 0
        %1146 = vmatpush2.bf16.msra.mxu0 0
        %1147 = vmatprep.subr.bf16.mxu0 0
        %1148 = vmatpush2.bf16.msra.mxu0 0
        %1149 = vmatprep.subr.bf16.mxu0 0
        %1150 = vmatpush2.bf16.msra.mxu0 0
        %1151 = vmatprep.mubr.bf16.mxu0 0
        %1152 = vmatmul.mubr.bf16.gmra.mxu0 %v973
        %v1153 = vpop.f32.mrf.mxu0
        %v1154 = vadd.f32 %v979, %v1153
        %v1155 = vpop.f32.mrf.mxu0
        %v1156 = vadd.f32 %v983, %v1155
        %v1157 = vpop.f32.mrf.mxu0
        %v1158 = vadd.f32 %v979, %v1157
        %v1159 = vpop.f32.mrf.mxu0
        %v1160 = vadd.f32 %v983, %v1159
        %1161 = vdwg.mxu0
        %1162 = vmatprep.subr.bf16.mxu0 0
        %1163 = vmatpush1.bf16.msra.mxu0 %v1094
        %1164 = vmatprep.subr.bf16.mxu0 0
        %1165 = vmatpush1.bf16.msra.mxu0 %v1091
        %1166 = vmatprep.subr.bf16.mxu0 0
        %1167 = vmatpush1.bf16.msra.mxu0 %v1088
        %1168 = vmatprep.subr.bf16.mxu0 0
        %1169 = vmatpush1.bf16.msra.mxu0 %v1085
        %1170 = vmatprep.subr.bf16.mxu0 0
        %1171 = vmatpush1.bf16.msra.mxu0 %v1082
        %1172 = vmatprep.subr.bf16.mxu0 0
        %1173 = vmatpush1.bf16.msra.mxu0 %v1079
        %1174 = vmatprep.subr.bf16.mxu0 0
        %1175 = vmatpush1.bf16.msra.mxu0 %v1076
        %1176 = vmatprep.subr.bf16.mxu0 0
        %1177 = vmatpush1.bf16.msra.mxu0 %v1073
        %1178 = vmatprep.subr.bf16.mxu0 0
        %1179 = vmatpush2.bf16.msra.mxu0 0
        %1180 = vmatprep.subr.bf16.mxu0 0
        %1181 = vmatpush2.bf16.msra.mxu0 0
        %1182 = vmatprep.subr.bf16.mxu0 0
        %1183 = vmatpush2.bf16.msra.mxu0 0
        %1184 = vmatprep.subr.bf16.mxu0 0
        %1185 = vmatpush2.bf16.msra.mxu0 0
        %1186 = vmatprep.subr.bf16.mxu0 0
        %1187 = vmatpush2.bf16.msra.mxu0 0
        %1188 = vmatprep.subr.bf16.mxu0 0
        %1189 = vmatpush2.bf16.msra.mxu0 0
        %1190 = vmatprep.subr.bf16.mxu0 0
        %1191 = vmatpush2.bf16.msra.mxu0 0
        %1192 = vmatprep.subr.bf16.mxu0 0
        %1193 = vmatpush2.bf16.msra.mxu0 0
        %1194 = vmatprep.mubr.bf16.mxu0 0
        %1195 = vmatmul.mubr.bf16.gmra.mxu0 %v973
        %v1196 = vpop.f32.mrf.mxu0
        %v1197 = vadd.f32 %v987, %v1196
        %v1198 = vpop.f32.mrf.mxu0
        %v1199 = vpop.f32.mrf.mxu0
        %v1200 = vadd.f32 %v987, %v1199
        %v1201 = vpop.f32.mrf.mxu0
        %1202 = vdwg.mxu0
        %v1203 = vmul.f32 %v1154, 0.17677669
        %v1204 = vmul.f32 %v1158, 0.17677669
        %vm1205 = vcmask 261120
        %v1207 = vsel %vm1205, %v1203, 0
        %v1210 = vsel %vm1205, %v1156, 0
        %1212 = vmatprep.subr.mxu0 0.0
        %1213 = vmatpush1.xpose.msra.mxu0 0.0
        %1214 = vmatprep.subr.mxu0 0.0
        %1215 = vmatpush1.xpose.msra.mxu0 0.0
        %1216 = vmatprep.subr.mxu0 0.0
        %1217 = vmatpush1.xpose.msra.mxu0 0.0
        %1218 = vmatprep.subr.mxu0 0.0
        %1219 = vmatpush1.xpose.msra.mxu0 0.0
        %1220 = vmatprep.subr.mxu0 0.0
        %1221 = vmatpush1.xpose.msra.mxu0 0.0
        %1222 = vmatprep.subr.mxu0 0.0
        %1223 = vmatpush1.xpose.msra.mxu0 0.0
        %1224 = vmatprep.subr.mxu0 0.0
        %1225 = vmatpush1.xpose.msra.mxu0 0.0
        %1226 = vmatprep.subr.mxu0 0.0
        %1227 = vmatpush1.xpose.msra.mxu0 0.0
        %1228 = vmatprep.subr.mxu0 0.0
        %1229 = vmatpush1.xpose.msra.mxu0 0.0
        %1230 = vmatprep.subr.mxu0 0.0
        %1231 = vmatpush1.xpose.msra.mxu0 0.0
        %1232 = vmatprep.subr.mxu0 0.0
        %1233 = vmatpush1.xpose.msra.mxu0 0.0
        %1234 = vmatprep.subr.mxu0 0.0
        %1235 = vmatpush1.xpose.msra.mxu0 0.0
        %1236 = vmatprep.subr.mxu0 0.0
        %1237 = vmatpush1.xpose.msra.mxu0 0.0
        %1238 = vmatprep.subr.mxu0 0.0
        %1239 = vmatpush1.xpose.msra.mxu0 0.0
        %1240 = vmatprep.subr.mxu0 0.0
        %1241 = vmatpush1.xpose.msra.mxu0 0.0
        %1242 = vmatprep.subr.mxu0 0.0
        %1243 = vmatpush1.xpose.msra.mxu0 %v1210
        %1244 = vmatprep.subr.mxu0 0.0
        %1245 = vmatpush2.xpose.msra.mxu0 0.0
        %1246 = vmatprep.subr.mxu0 0.0
        %1247 = vmatpush2.xpose.msra.mxu0 0.0
        %1248 = vmatprep.subr.mxu0 0.0
        %1249 = vmatpush2.xpose.msra.mxu0 0.0
        %1250 = vmatprep.subr.mxu0 0.0
        %1251 = vmatpush2.xpose.msra.mxu0 0.0
        %1252 = vmatprep.subr.mxu0 0.0
        %1253 = vmatpush2.xpose.msra.mxu0 0.0
        %1254 = vmatprep.subr.mxu0 0.0
        %1255 = vmatpush2.xpose.msra.mxu0 0.0
        %1256 = vmatprep.subr.mxu0 0.0
        %1257 = vmatpush2.xpose.msra.mxu0 0.0
        %1258 = vmatprep.subr.mxu0 0.0
        %1259 = vmatpush2.xpose.msra.mxu0 0.0
        %1260 = vmatprep.subr.mxu0 0.0
        %1261 = vmatpush2.xpose.msra.mxu0 0.0
        %1262 = vmatprep.subr.mxu0 0.0
        %1263 = vmatpush2.xpose.msra.mxu0 0.0
        %1264 = vmatprep.subr.mxu0 0.0
        %1265 = vmatpush2.xpose.msra.mxu0 0.0
        %1266 = vmatprep.subr.mxu0 0.0
        %1267 = vmatpush2.xpose.msra.mxu0 0.0
        %1268 = vmatprep.subr.mxu0 0.0
        %1269 = vmatpush2.xpose.msra.mxu0 0.0
        %1270 = vmatprep.subr.mxu0 0.0
        %1271 = vmatpush2.xpose.msra.mxu0 0.0
        %1272 = vmatprep.subr.mxu0 0.0
        %1273 = vmatpush2.xpose.msra.mxu0 0.0
        %1274 = vmatprep.subr.mxu0 0.0
        %1275 = vmatpush2.xpose.msra.mxu0 0.0
        %1276 = vmatprep.mubr.f32.mxu0 0.0
        %1277 = vmatmul.mubr.f32.gmra.mxu0 %v1207
        %v1278 = vpop.f32.mrf.mxu0
        %v1279 = vadd.f32 %v888, %v1278
        %v1280 = vpop.f32.mrf.mxu0
        %1281 = vdwg.mxu0
        %vm1282 = vcmask 64512
        %v1283 = vsel %vm1282, %v1279, -inf
        %1284 = vmax.xlane.f32.xlu0 %v1283
        %v1285 = vpop.xlane.xlu0 %1284
        %v1286 = vsub.f32 %v1279, %v1285
        %v1287 = vmul.f32 %v1286, 1.442695
        %v1288 = vpow.pop %v1287
        %v1289 = vsel %vm1282, %v1288, 0.0
        %1290 = vadd.xlane.f32.xlu0 %v1289
        %v1291 = vpop.xlane.xlu0 %1290
        %v1292 = vrcp.pop %v1291
        %v1293 = vmul.f32 %v1288, %v1292
        %v1295 = vsel %vm1282, %v1293, 0
        %1297 = vmatprep.subr.mxu0 0.0
        %1298 = vmatpush1.msra.mxu0 0.0
        %1299 = vmatprep.subr.mxu0 0.0
        %1300 = vmatpush1.msra.mxu0 0.0
        %1301 = vmatprep.subr.mxu0 0.0
        %1302 = vmatpush1.msra.mxu0 0.0
        %1303 = vmatprep.subr.mxu0 0.0
        %1304 = vmatpush1.msra.mxu0 0.0
        %1305 = vmatprep.subr.mxu0 0.0
        %1306 = vmatpush1.msra.mxu0 0.0
        %1307 = vmatprep.subr.mxu0 0.0
        %1308 = vmatpush1.msra.mxu0 0.0
        %1309 = vmatprep.subr.mxu0 0.0
        %1310 = vmatpush1.msra.mxu0 0.0
        %1311 = vmatprep.subr.mxu0 0.0
        %1312 = vmatpush1.msra.mxu0 0.0
        %1313 = vmatprep.subr.mxu0 0.0
        %1314 = vmatpush1.msra.mxu0 0.0
        %1315 = vmatprep.subr.mxu0 0.0
        %1316 = vmatpush1.msra.mxu0 0.0
        %1317 = vmatprep.subr.mxu0 0.0
        %1318 = vmatpush1.msra.mxu0 0.0
        %1319 = vmatprep.subr.mxu0 0.0
        %1320 = vmatpush1.msra.mxu0 0.0
        %1321 = vmatprep.subr.mxu0 0.0
        %1322 = vmatpush1.msra.mxu0 0.0
        %1323 = vmatprep.subr.mxu0 0.0
        %1324 = vmatpush1.msra.mxu0 0.0
        %1325 = vmatprep.subr.mxu0 0.0
        %1326 = vmatpush1.msra.mxu0 0.0
        %1327 = vmatprep.subr.mxu0 0.0
        %1328 = vmatpush1.msra.mxu0 %v1197
        %1329 = vmatprep.subr.mxu0 0.0
        %1330 = vmatpush2.msra.mxu0 0.0
        %1331 = vmatprep.subr.mxu0 0.0
        %1332 = vmatpush2.msra.mxu0 0.0
        %1333 = vmatprep.subr.mxu0 0.0
        %1334 = vmatpush2.msra.mxu0 0.0
        %1335 = vmatprep.subr.mxu0 0.0
        %1336 = vmatpush2.msra.mxu0 0.0
        %1337 = vmatprep.subr.mxu0 0.0
        %1338 = vmatpush2.msra.mxu0 0.0
        %1339 = vmatprep.subr.mxu0 0.0
        %1340 = vmatpush2.msra.mxu0 0.0
        %1341 = vmatprep.subr.mxu0 0.0
        %1342 = vmatpush2.msra.mxu0 0.0
        %1343 = vmatprep.subr.mxu0 0.0
        %1344 = vmatpush2.msra.mxu0 0.0
        %1345 = vmatprep.subr.mxu0 0.0
        %1346 = vmatpush2.msra.mxu0 0.0
        %1347 = vmatprep.subr.mxu0 0.0
        %1348 = vmatpush2.msra.mxu0 0.0
        %1349 = vmatprep.subr.mxu0 0.0
        %1350 = vmatpush2.msra.mxu0 0.0
        %1351 = vmatprep.subr.mxu0 0.0
        %1352 = vmatpush2.msra.mxu0 0.0
        %1353 = vmatprep.subr.mxu0 0.0
        %1354 = vmatpush2.msra.mxu0 0.0
        %1355 = vmatprep.subr.mxu0 0.0
        %1356 = vmatpush2.msra.mxu0 0.0
        %1357 = vmatprep.subr.mxu0 0.0
        %1358 = vmatpush2.msra.mxu0 0.0
        %1359 = vmatprep.subr.mxu0 0.0
        %1360 = vmatpush2.msra.mxu0 0.0
        %1361 = vmatprep.mubr.f32.mxu0 0.0
        %1362 = vmatmul.mubr.f32.gmra.mxu0 %v1295
        %v1363 = vpop.f32.mrf.mxu0
        %v1364 = vadd.f32 0.0, %v1363
        %v1365 = vpop.f32.mrf.mxu0
        %1366 = vdwg.mxu0
        %1367 = vst.msk [vmem:[#allocation3] sm:$0xff] %vm1205, %v1364
        %1368 = vrot.lane.b32.xlu0 %v1203, 96
        %v1369 = vpop.permute.xlu0 %1368
        %1370 = vrot.lane.b32.xlu0 %v1156, 96
        %v1371 = vpop.permute.xlu0 %1370
        %v1372 = vsel %vm1205, %v1369, 0
        %v1374 = vsel %vm1205, %v1371, 0
        %1376 = vmatprep.subr.mxu0 0.0
        %1377 = vmatpush1.xpose.msra.mxu0 0.0
        %1378 = vmatprep.subr.mxu0 0.0
        %1379 = vmatpush1.xpose.msra.mxu0 0.0
        %1380 = vmatprep.subr.mxu0 0.0
        %1381 = vmatpush1.xpose.msra.mxu0 0.0
        %1382 = vmatprep.subr.mxu0 0.0
        %1383 = vmatpush1.xpose.msra.mxu0 0.0
        %1384 = vmatprep.subr.mxu0 0.0
        %1385 = vmatpush1.xpose.msra.mxu0 0.0
        %1386 = vmatprep.subr.mxu0 0.0
        %1387 = vmatpush1.xpose.msra.mxu0 0.0
        %1388 = vmatprep.subr.mxu0 0.0
        %1389 = vmatpush1.xpose.msra.mxu0 0.0
        %1390 = vmatprep.subr.mxu0 0.0
        %1391 = vmatpush1.xpose.msra.mxu0 0.0
        %1392 = vmatprep.subr.mxu0 0.0
        %1393 = vmatpush1.xpose.msra.mxu0 0.0
        %1394 = vmatprep.subr.mxu0 0.0
        %1395 = vmatpush1.xpose.msra.mxu0 0.0
        %1396 = vmatprep.subr.mxu0 0.0
        %1397 = vmatpush1.xpose.msra.mxu0 0.0
        %1398 = vmatprep.subr.mxu0 0.0
        %1399 = vmatpush1.xpose.msra.mxu0 0.0
        %1400 = vmatprep.subr.mxu0 0.0
        %1401 = vmatpush1.xpose.msra.mxu0 0.0
        %1402 = vmatprep.subr.mxu0 0.0
        %1403 = vmatpush1.xpose.msra.mxu0 0.0
        %1404 = vmatprep.subr.mxu0 0.0
        %1405 = vmatpush1.xpose.msra.mxu0 0.0
        %1406 = vmatprep.subr.mxu0 0.0
        %1407 = vmatpush1.xpose.msra.mxu0 %v1374
        %1408 = vmatprep.subr.mxu0 0.0
        %1409 = vmatpush2.xpose.msra.mxu0 0.0
        %1410 = vmatprep.subr.mxu0 0.0
        %1411 = vmatpush2.xpose.msra.mxu0 0.0
        %1412 = vmatprep.subr.mxu0 0.0
        %1413 = vmatpush2.xpose.msra.mxu0 0.0
        %1414 = vmatprep.subr.mxu0 0.0
        %1415 = vmatpush2.xpose.msra.mxu0 0.0
        %1416 = vmatprep.subr.mxu0 0.0
        %1417 = vmatpush2.xpose.msra.mxu0 0.0
        %1418 = vmatprep.subr.mxu0 0.0
        %1419 = vmatpush2.xpose.msra.mxu0 0.0
        %1420 = vmatprep.subr.mxu0 0.0
        %1421 = vmatpush2.xpose.msra.mxu0 0.0
        %1422 = vmatprep.subr.mxu0 0.0
        %1423 = vmatpush2.xpose.msra.mxu0 0.0
        %1424 = vmatprep.subr.mxu0 0.0
        %1425 = vmatpush2.xpose.msra.mxu0 0.0
        %1426 = vmatprep.subr.mxu0 0.0
        %1427 = vmatpush2.xpose.msra.mxu0 0.0
        %1428 = vmatprep.subr.mxu0 0.0
        %1429 = vmatpush2.xpose.msra.mxu0 0.0
        %1430 = vmatprep.subr.mxu0 0.0
        %1431 = vmatpush2.xpose.msra.mxu0 0.0
        %1432 = vmatprep.subr.mxu0 0.0
        %1433 = vmatpush2.xpose.msra.mxu0 0.0
        %1434 = vmatprep.subr.mxu0 0.0
        %1435 = vmatpush2.xpose.msra.mxu0 0.0
        %1436 = vmatprep.subr.mxu0 0.0
        %1437 = vmatpush2.xpose.msra.mxu0 0.0
        %1438 = vmatprep.subr.mxu0 0.0
        %1439 = vmatpush2.xpose.msra.mxu0 0.0
        %1440 = vmatprep.mubr.f32.mxu0 0.0
        %1441 = vmatmul.mubr.f32.gmra.mxu0 %v1372
        %v1442 = vpop.f32.mrf.mxu0
        %v1443 = vadd.f32 %v888, %v1442
        %v1444 = vpop.f32.mrf.mxu0
        %1445 = vdwg.mxu0
        %v1446 = vsel %vm1282, %v1443, -inf
        %1447 = vmax.xlane.f32.xlu0 %v1446
        %v1448 = vpop.xlane.xlu0 %1447
        %v1449 = vsub.f32 %v1443, %v1448
        %v1450 = vmul.f32 %v1449, 1.442695
        %v1451 = vpow.pop %v1450
        %v1452 = vsel %vm1282, %v1451, 0.0
        %1453 = vadd.xlane.f32.xlu0 %v1452
        %v1454 = vpop.xlane.xlu0 %1453
        %v1455 = vrcp.pop %v1454
        %v1456 = vmul.f32 %v1451, %v1455
        %1458 = vrot.lane.b32.xlu0 %v1197, 96
        %v1459 = vpop.permute.xlu0 %1458
        %v1462 = vsel %vm1282, %v1456, 0
        %1464 = vmatprep.subr.mxu0 0.0
        %1465 = vmatpush1.msra.mxu0 0.0
        %1466 = vmatprep.subr.mxu0 0.0
        %1467 = vmatpush1.msra.mxu0 0.0
        %1468 = vmatprep.subr.mxu0 0.0
        %1469 = vmatpush1.msra.mxu0 0.0
        %1470 = vmatprep.subr.mxu0 0.0
        %1471 = vmatpush1.msra.mxu0 0.0
        %1472 = vmatprep.subr.mxu0 0.0
        %1473 = vmatpush1.msra.mxu0 0.0
        %1474 = vmatprep.subr.mxu0 0.0
        %1475 = vmatpush1.msra.mxu0 0.0
        %1476 = vmatprep.subr.mxu0 0.0
        %1477 = vmatpush1.msra.mxu0 0.0
        %1478 = vmatprep.subr.mxu0 0.0
        %1479 = vmatpush1.msra.mxu0 0.0
        %1480 = vmatprep.subr.mxu0 0.0
        %1481 = vmatpush1.msra.mxu0 0.0
        %1482 = vmatprep.subr.mxu0 0.0
        %1483 = vmatpush1.msra.mxu0 0.0
        %1484 = vmatprep.subr.mxu0 0.0
        %1485 = vmatpush1.msra.mxu0 0.0
        %1486 = vmatprep.subr.mxu0 0.0
        %1487 = vmatpush1.msra.mxu0 0.0
        %1488 = vmatprep.subr.mxu0 0.0
        %1489 = vmatpush1.msra.mxu0 0.0
        %1490 = vmatprep.subr.mxu0 0.0
        %1491 = vmatpush1.msra.mxu0 0.0
        %1492 = vmatprep.subr.mxu0 0.0
        %1493 = vmatpush1.msra.mxu0 0.0
        %1494 = vmatprep.subr.mxu0 0.0
        %1495 = vmatpush1.msra.mxu0 %v1459
        %1496 = vmatprep.subr.mxu0 0.0
        %1497 = vmatpush2.msra.mxu0 0.0
        %1498 = vmatprep.subr.mxu0 0.0
        %1499 = vmatpush2.msra.mxu0 0.0
        %1500 = vmatprep.subr.mxu0 0.0
        %1501 = vmatpush2.msra.mxu0 0.0
        %1502 = vmatprep.subr.mxu0 0.0
        %1503 = vmatpush2.msra.mxu0 0.0
        %1504 = vmatprep.subr.mxu0 0.0
        %1505 = vmatpush2.msra.mxu0 0.0
        %1506 = vmatprep.subr.mxu0 0.0
        %1507 = vmatpush2.msra.mxu0 0.0
        %1508 = vmatprep.subr.mxu0 0.0
        %1509 = vmatpush2.msra.mxu0 0.0
        %1510 = vmatprep.subr.mxu0 0.0
        %1511 = vmatpush2.msra.mxu0 0.0
        %1512 = vmatprep.subr.mxu0 0.0
        %1513 = vmatpush2.msra.mxu0 0.0
        %1514 = vmatprep.subr.mxu0 0.0
        %1515 = vmatpush2.msra.mxu0 0.0
        %1516 = vmatprep.subr.mxu0 0.0
        %1517 = vmatpush2.msra.mxu0 0.0
        %1518 = vmatprep.subr.mxu0 0.0
        %1519 = vmatpush2.msra.mxu0 0.0
        %1520 = vmatprep.subr.mxu0 0.0
        %1521 = vmatpush2.msra.mxu0 0.0
        %1522 = vmatprep.subr.mxu0 0.0
        %1523 = vmatpush2.msra.mxu0 0.0
        %1524 = vmatprep.subr.mxu0 0.0
        %1525 = vmatpush2.msra.mxu0 0.0
        %1526 = vmatprep.subr.mxu0 0.0
        %1527 = vmatpush2.msra.mxu0 0.0
        %1528 = vmatprep.mubr.f32.mxu0 0.0
        %1529 = vmatmul.mubr.f32.gmra.mxu0 %v1462
        %v1530 = vpop.f32.mrf.mxu0
        %v1531 = vadd.f32 0.0, %v1530
        %v1532 = vpop.f32.mrf.mxu0
        %1533 = vdwg.mxu0
        %1535 = vrot.lane.b32.xlu0 %v1531, 32
        %v1536 = vpop.permute.xlu0 %1535
        %vm1538 = vcmask 523520
        %1539 = vst.msk [vmem:[#allocation3] sm:$0xff] %vm1538, %v1536
        %1540 = vrot.lane.b32.xlu0 %v1203, 64
        %v1541 = vpop.permute.xlu0 %1540
        %1542 = vrot.lane.b32.xlu0 %v1156, 64
        %v1543 = vpop.permute.xlu0 %1542
        %v1544 = vsel %vm1205, %v1541, 0
        %v1546 = vsel %vm1205, %v1543, 0
        %1548 = vmatprep.subr.mxu0 0.0
        %1549 = vmatpush1.xpose.msra.mxu0 0.0
        %1550 = vmatprep.subr.mxu0 0.0
        %1551 = vmatpush1.xpose.msra.mxu0 0.0
        %1552 = vmatprep.subr.mxu0 0.0
        %1553 = vmatpush1.xpose.msra.mxu0 0.0
        %1554 = vmatprep.subr.mxu0 0.0
        %1555 = vmatpush1.xpose.msra.mxu0 0.0
        %1556 = vmatprep.subr.mxu0 0.0
        %1557 = vmatpush1.xpose.msra.mxu0 0.0
        %1558 = vmatprep.subr.mxu0 0.0
        %1559 = vmatpush1.xpose.msra.mxu0 0.0
        %1560 = vmatprep.subr.mxu0 0.0
        %1561 = vmatpush1.xpose.msra.mxu0 0.0
        %1562 = vmatprep.subr.mxu0 0.0
        %1563 = vmatpush1.xpose.msra.mxu0 0.0
        %1564 = vmatprep.subr.mxu0 0.0
        %1565 = vmatpush1.xpose.msra.mxu0 0.0
        %1566 = vmatprep.subr.mxu0 0.0
        %1567 = vmatpush1.xpose.msra.mxu0 0.0
        %1568 = vmatprep.subr.mxu0 0.0
        %1569 = vmatpush1.xpose.msra.mxu0 0.0
        %1570 = vmatprep.subr.mxu0 0.0
        %1571 = vmatpush1.xpose.msra.mxu0 0.0
        %1572 = vmatprep.subr.mxu0 0.0
        %1573 = vmatpush1.xpose.msra.mxu0 0.0
        %1574 = vmatprep.subr.mxu0 0.0
        %1575 = vmatpush1.xpose.msra.mxu0 0.0
        %1576 = vmatprep.subr.mxu0 0.0
        %1577 = vmatpush1.xpose.msra.mxu0 0.0
        %1578 = vmatprep.subr.mxu0 0.0
        %1579 = vmatpush1.xpose.msra.mxu0 %v1546
        %1580 = vmatprep.subr.mxu0 0.0
        %1581 = vmatpush2.xpose.msra.mxu0 0.0
        %1582 = vmatprep.subr.mxu0 0.0
        %1583 = vmatpush2.xpose.msra.mxu0 0.0
        %1584 = vmatprep.subr.mxu0 0.0
        %1585 = vmatpush2.xpose.msra.mxu0 0.0
        %1586 = vmatprep.subr.mxu0 0.0
        %1587 = vmatpush2.xpose.msra.mxu0 0.0
        %1588 = vmatprep.subr.mxu0 0.0
        %1589 = vmatpush2.xpose.msra.mxu0 0.0
        %1590 = vmatprep.subr.mxu0 0.0
        %1591 = vmatpush2.xpose.msra.mxu0 0.0
        %1592 = vmatprep.subr.mxu0 0.0
        %1593 = vmatpush2.xpose.msra.mxu0 0.0
        %1594 = vmatprep.subr.mxu0 0.0
        %1595 = vmatpush2.xpose.msra.mxu0 0.0
        %1596 = vmatprep.subr.mxu0 0.0
        %1597 = vmatpush2.xpose.msra.mxu0 0.0
        %1598 = vmatprep.subr.mxu0 0.0
        %1599 = vmatpush2.xpose.msra.mxu0 0.0
        %1600 = vmatprep.subr.mxu0 0.0
        %1601 = vmatpush2.xpose.msra.mxu0 0.0
        %1602 = vmatprep.subr.mxu0 0.0
        %1603 = vmatpush2.xpose.msra.mxu0 0.0
        %1604 = vmatprep.subr.mxu0 0.0
        %1605 = vmatpush2.xpose.msra.mxu0 0.0
        %1606 = vmatprep.subr.mxu0 0.0
        %1607 = vmatpush2.xpose.msra.mxu0 0.0
        %1608 = vmatprep.subr.mxu0 0.0
        %1609 = vmatpush2.xpose.msra.mxu0 0.0
        %1610 = vmatprep.subr.mxu0 0.0
        %1611 = vmatpush2.xpose.msra.mxu0 0.0
        %1612 = vmatprep.mubr.f32.mxu0 0.0
        %1613 = vmatmul.mubr.f32.gmra.mxu0 %v1544
        %v1614 = vpop.f32.mrf.mxu0
        %v1615 = vadd.f32 %v888, %v1614
        %v1616 = vpop.f32.mrf.mxu0
        %1617 = vdwg.mxu0
        %v1618 = vsel %vm1282, %v1615, -inf
        %1619 = vmax.xlane.f32.xlu0 %v1618
        %v1620 = vpop.xlane.xlu0 %1619
        %v1621 = vsub.f32 %v1615, %v1620
        %v1622 = vmul.f32 %v1621, 1.442695
        %v1623 = vpow.pop %v1622
        %v1624 = vsel %vm1282, %v1623, 0.0
        %1625 = vadd.xlane.f32.xlu0 %v1624
        %v1626 = vpop.xlane.xlu0 %1625
        %v1627 = vrcp.pop %v1626
        %v1628 = vmul.f32 %v1623, %v1627
        %1629 = vrot.lane.b32.xlu0 %v1197, 64
        %v1630 = vpop.permute.xlu0 %1629
        %v1633 = vsel %vm1282, %v1628, 0
        %1635 = vmatprep.subr.mxu0 0.0
        %1636 = vmatpush1.msra.mxu0 0.0
        %1637 = vmatprep.subr.mxu0 0.0
        %1638 = vmatpush1.msra.mxu0 0.0
        %1639 = vmatprep.subr.mxu0 0.0
        %1640 = vmatpush1.msra.mxu0 0.0
        %1641 = vmatprep.subr.mxu0 0.0
        %1642 = vmatpush1.msra.mxu0 0.0
        %1643 = vmatprep.subr.mxu0 0.0
        %1644 = vmatpush1.msra.mxu0 0.0
        %1645 = vmatprep.subr.mxu0 0.0
        %1646 = vmatpush1.msra.mxu0 0.0
        %1647 = vmatprep.subr.mxu0 0.0
        %1648 = vmatpush1.msra.mxu0 0.0
        %1649 = vmatprep.subr.mxu0 0.0
        %1650 = vmatpush1.msra.mxu0 0.0
        %1651 = vmatprep.subr.mxu0 0.0
        %1652 = vmatpush1.msra.mxu0 0.0
        %1653 = vmatprep.subr.mxu0 0.0
        %1654 = vmatpush1.msra.mxu0 0.0
        %1655 = vmatprep.subr.mxu0 0.0
        %1656 = vmatpush1.msra.mxu0 0.0
        %1657 = vmatprep.subr.mxu0 0.0
        %1658 = vmatpush1.msra.mxu0 0.0
        %1659 = vmatprep.subr.mxu0 0.0
        %1660 = vmatpush1.msra.mxu0 0.0
        %1661 = vmatprep.subr.mxu0 0.0
        %1662 = vmatpush1.msra.mxu0 0.0
        %1663 = vmatprep.subr.mxu0 0.0
        %1664 = vmatpush1.msra.mxu0 0.0
        %1665 = vmatprep.subr.mxu0 0.0
        %1666 = vmatpush1.msra.mxu0 %v1630
        %1667 = vmatprep.subr.mxu0 0.0
        %1668 = vmatpush2.msra.mxu0 0.0
        %1669 = vmatprep.subr.mxu0 0.0
        %1670 = vmatpush2.msra.mxu0 0.0
        %1671 = vmatprep.subr.mxu0 0.0
        %1672 = vmatpush2.msra.mxu0 0.0
        %1673 = vmatprep.subr.mxu0 0.0
        %1674 = vmatpush2.msra.mxu0 0.0
        %1675 = vmatprep.subr.mxu0 0.0
        %1676 = vmatpush2.msra.mxu0 0.0
        %1677 = vmatprep.subr.mxu0 0.0
        %1678 = vmatpush2.msra.mxu0 0.0
        %1679 = vmatprep.subr.mxu0 0.0
        %1680 = vmatpush2.msra.mxu0 0.0
        %1681 = vmatprep.subr.mxu0 0.0
        %1682 = vmatpush2.msra.mxu0 0.0
        %1683 = vmatprep.subr.mxu0 0.0
        %1684 = vmatpush2.msra.mxu0 0.0
        %1685 = vmatprep.subr.mxu0 0.0
        %1686 = vmatpush2.msra.mxu0 0.0
        %1687 = vmatprep.subr.mxu0 0.0
        %1688 = vmatpush2.msra.mxu0 0.0
        %1689 = vmatprep.subr.mxu0 0.0
        %1690 = vmatpush2.msra.mxu0 0.0
        %1691 = vmatprep.subr.mxu0 0.0
        %1692 = vmatpush2.msra.mxu0 0.0
        %1693 = vmatprep.subr.mxu0 0.0
        %1694 = vmatpush2.msra.mxu0 0.0
        %1695 = vmatprep.subr.mxu0 0.0
        %1696 = vmatpush2.msra.mxu0 0.0
        %1697 = vmatprep.subr.mxu0 0.0
        %1698 = vmatpush2.msra.mxu0 0.0
        %1699 = vmatprep.mubr.f32.mxu0 0.0
        %1700 = vmatmul.mubr.f32.gmra.mxu0 %v1633
        %v1701 = vpop.f32.mrf.mxu0
        %v1702 = vadd.f32 0.0, %v1701
        %v1703 = vpop.f32.mrf.mxu0
        %1704 = vdwg.mxu0
        %1706 = vrot.lane.b32.xlu0 %v1702, 64
        %v1707 = vpop.permute.xlu0 %1706
        %vm1709 = vcmask 785920
        %1710 = vst.msk [vmem:[#allocation3] sm:$0xff] %vm1709, %v1707
        %1711 = vrot.lane.b32.xlu0 %v1203, 32
        %v1712 = vpop.permute.xlu0 %1711
        %1713 = vrot.lane.b32.xlu0 %v1156, 32
        %v1714 = vpop.permute.xlu0 %1713
        %v1715 = vsel %vm1205, %v1712, 0
        %v1717 = vsel %vm1205, %v1714, 0
        %1719 = vmatprep.subr.mxu0 0.0
        %1720 = vmatpush1.xpose.msra.mxu0 0.0
        %1721 = vmatprep.subr.mxu0 0.0
        %1722 = vmatpush1.xpose.msra.mxu0 0.0
        %1723 = vmatprep.subr.mxu0 0.0
        %1724 = vmatpush1.xpose.msra.mxu0 0.0
        %1725 = vmatprep.subr.mxu0 0.0
        %1726 = vmatpush1.xpose.msra.mxu0 0.0
        %1727 = vmatprep.subr.mxu0 0.0
        %1728 = vmatpush1.xpose.msra.mxu0 0.0
        %1729 = vmatprep.subr.mxu0 0.0
        %1730 = vmatpush1.xpose.msra.mxu0 0.0
        %1731 = vmatprep.subr.mxu0 0.0
        %1732 = vmatpush1.xpose.msra.mxu0 0.0
        %1733 = vmatprep.subr.mxu0 0.0
        %1734 = vmatpush1.xpose.msra.mxu0 0.0
        %1735 = vmatprep.subr.mxu0 0.0
        %1736 = vmatpush1.xpose.msra.mxu0 0.0
        %1737 = vmatprep.subr.mxu0 0.0
        %1738 = vmatpush1.xpose.msra.mxu0 0.0
        %1739 = vmatprep.subr.mxu0 0.0
        %1740 = vmatpush1.xpose.msra.mxu0 0.0
        %1741 = vmatprep.subr.mxu0 0.0
        %1742 = vmatpush1.xpose.msra.mxu0 0.0
        %1743 = vmatprep.subr.mxu0 0.0
        %1744 = vmatpush1.xpose.msra.mxu0 0.0
        %1745 = vmatprep.subr.mxu0 0.0
        %1746 = vmatpush1.xpose.msra.mxu0 0.0
        %1747 = vmatprep.subr.mxu0 0.0
        %1748 = vmatpush1.xpose.msra.mxu0 0.0
        %1749 = vmatprep.subr.mxu0 0.0
        %1750 = vmatpush1.xpose.msra.mxu0 %v1717
        %1751 = vmatprep.subr.mxu0 0.0
        %1752 = vmatpush2.xpose.msra.mxu0 0.0
        %1753 = vmatprep.subr.mxu0 0.0
        %1754 = vmatpush2.xpose.msra.mxu0 0.0
        %1755 = vmatprep.subr.mxu0 0.0
        %1756 = vmatpush2.xpose.msra.mxu0 0.0
        %1757 = vmatprep.subr.mxu0 0.0
        %1758 = vmatpush2.xpose.msra.mxu0 0.0
        %1759 = vmatprep.subr.mxu0 0.0
        %1760 = vmatpush2.xpose.msra.mxu0 0.0
        %1761 = vmatprep.subr.mxu0 0.0
        %1762 = vmatpush2.xpose.msra.mxu0 0.0
        %1763 = vmatprep.subr.mxu0 0.0
        %1764 = vmatpush2.xpose.msra.mxu0 0.0
        %1765 = vmatprep.subr.mxu0 0.0
        %1766 = vmatpush2.xpose.msra.mxu0 0.0
        %1767 = vmatprep.subr.mxu0 0.0
        %1768 = vmatpush2.xpose.msra.mxu0 0.0
        %1769 = vmatprep.subr.mxu0 0.0
        %1770 = vmatpush2.xpose.msra.mxu0 0.0
        %1771 = vmatprep.subr.mxu0 0.0
        %1772 = vmatpush2.xpose.msra.mxu0 0.0
        %1773 = vmatprep.subr.mxu0 0.0
        %1774 = vmatpush2.xpose.msra.mxu0 0.0
        %1775 = vmatprep.subr.mxu0 0.0
        %1776 = vmatpush2.xpose.msra.mxu0 0.0
        %1777 = vmatprep.subr.mxu0 0.0
        %1778 = vmatpush2.xpose.msra.mxu0 0.0
        %1779 = vmatprep.subr.mxu0 0.0
        %1780 = vmatpush2.xpose.msra.mxu0 0.0
        %1781 = vmatprep.subr.mxu0 0.0
        %1782 = vmatpush2.xpose.msra.mxu0 0.0
        %1783 = vmatprep.mubr.f32.mxu0 0.0
        %1784 = vmatmul.mubr.f32.gmra.mxu0 %v1715
        %v1785 = vpop.f32.mrf.mxu0
        %v1786 = vadd.f32 %v888, %v1785
        %v1787 = vpop.f32.mrf.mxu0
        %1788 = vdwg.mxu0
        %v1789 = vsel %vm1282, %v1786, -inf
        %1790 = vmax.xlane.f32.xlu0 %v1789
        %v1791 = vpop.xlane.xlu0 %1790
        %v1792 = vsub.f32 %v1786, %v1791
        %v1793 = vmul.f32 %v1792, 1.442695
        %v1794 = vpow.pop %v1793
        %v1795 = vsel %vm1282, %v1794, 0.0
        %1796 = vadd.xlane.f32.xlu0 %v1795
        %v1797 = vpop.xlane.xlu0 %1796
        %v1798 = vrcp.pop %v1797
        %v1799 = vmul.f32 %v1794, %v1798
        %1800 = vrot.lane.b32.xlu0 %v1197, 32
        %v1801 = vpop.permute.xlu0 %1800
        %v1804 = vsel %vm1282, %v1799, 0
        %1806 = vmatprep.subr.mxu0 0.0
        %1807 = vmatpush1.msra.mxu0 0.0
        %1808 = vmatprep.subr.mxu0 0.0
        %1809 = vmatpush1.msra.mxu0 0.0
        %1810 = vmatprep.subr.mxu0 0.0
        %1811 = vmatpush1.msra.mxu0 0.0
        %1812 = vmatprep.subr.mxu0 0.0
        %1813 = vmatpush1.msra.mxu0 0.0
        %1814 = vmatprep.subr.mxu0 0.0
        %1815 = vmatpush1.msra.mxu0 0.0
        %1816 = vmatprep.subr.mxu0 0.0
        %1817 = vmatpush1.msra.mxu0 0.0
        %1818 = vmatprep.subr.mxu0 0.0
        %1819 = vmatpush1.msra.mxu0 0.0
        %1820 = vmatprep.subr.mxu0 0.0
        %1821 = vmatpush1.msra.mxu0 0.0
        %1822 = vmatprep.subr.mxu0 0.0
        %1823 = vmatpush1.msra.mxu0 0.0
        %1824 = vmatprep.subr.mxu0 0.0
        %1825 = vmatpush1.msra.mxu0 0.0
        %1826 = vmatprep.subr.mxu0 0.0
        %1827 = vmatpush1.msra.mxu0 0.0
        %1828 = vmatprep.subr.mxu0 0.0
        %1829 = vmatpush1.msra.mxu0 0.0
        %1830 = vmatprep.subr.mxu0 0.0
        %1831 = vmatpush1.msra.mxu0 0.0
        %1832 = vmatprep.subr.mxu0 0.0
        %1833 = vmatpush1.msra.mxu0 0.0
        %1834 = vmatprep.subr.mxu0 0.0
        %1835 = vmatpush1.msra.mxu0 0.0
        %1836 = vmatprep.subr.mxu0 0.0
        %1837 = vmatpush1.msra.mxu0 %v1801
        %1838 = vmatprep.subr.mxu0 0.0
        %1839 = vmatpush2.msra.mxu0 0.0
        %1840 = vmatprep.subr.mxu0 0.0
        %1841 = vmatpush2.msra.mxu0 0.0
        %1842 = vmatprep.subr.mxu0 0.0
        %1843 = vmatpush2.msra.mxu0 0.0
        %1844 = vmatprep.subr.mxu0 0.0
        %1845 = vmatpush2.msra.mxu0 0.0
        %1846 = vmatprep.subr.mxu0 0.0
        %1847 = vmatpush2.msra.mxu0 0.0
        %1848 = vmatprep.subr.mxu0 0.0
        %1849 = vmatpush2.msra.mxu0 0.0
        %1850 = vmatprep.subr.mxu0 0.0
        %1851 = vmatpush2.msra.mxu0 0.0
        %1852 = vmatprep.subr.mxu0 0.0
        %1853 = vmatpush2.msra.mxu0 0.0
        %1854 = vmatprep.subr.mxu0 0.0
        %1855 = vmatpush2.msra.mxu0 0.0
        %1856 = vmatprep.subr.mxu0 0.0
        %1857 = vmatpush2.msra.mxu0 0.0
        %1858 = vmatprep.subr.mxu0 0.0
        %1859 = vmatpush2.msra.mxu0 0.0
        %1860 = vmatprep.subr.mxu0 0.0
        %1861 = vmatpush2.msra.mxu0 0.0
        %1862 = vmatprep.subr.mxu0 0.0
        %1863 = vmatpush2.msra.mxu0 0.0
        %1864 = vmatprep.subr.mxu0 0.0
        %1865 = vmatpush2.msra.mxu0 0.0
        %1866 = vmatprep.subr.mxu0 0.0
        %1867 = vmatpush2.msra.mxu0 0.0
        %1868 = vmatprep.subr.mxu0 0.0
        %1869 = vmatpush2.msra.mxu0 0.0
        %1870 = vmatprep.mubr.f32.mxu0 0.0
        %1871 = vmatmul.mubr.f32.gmra.mxu0 %v1804
        %v1872 = vpop.f32.mrf.mxu0
        %v1873 = vadd.f32 0.0, %v1872
        %v1874 = vpop.f32.mrf.mxu0
        %1875 = vdwg.mxu0
        %1877 = vrot.lane.b32.xlu0 %v1873, 96
        %v1878 = vpop.permute.xlu0 %1877
        %vm1880 = vcmask 1048320
        %1881 = vst.msk [vmem:[#allocation3] sm:$0xff] %vm1880, %v1878
        %v1883 = vsel %vm1205, %v1204, 0
        %v1886 = vsel %vm1205, %v1160, 0
        %1888 = vmatprep.subr.mxu0 0.0
        %1889 = vmatpush1.xpose.msra.mxu0 0.0
        %1890 = vmatprep.subr.mxu0 0.0
        %1891 = vmatpush1.xpose.msra.mxu0 0.0
        %1892 = vmatprep.subr.mxu0 0.0
        %1893 = vmatpush1.xpose.msra.mxu0 0.0
        %1894 = vmatprep.subr.mxu0 0.0
        %1895 = vmatpush1.xpose.msra.mxu0 0.0
        %1896 = vmatprep.subr.mxu0 0.0
        %1897 = vmatpush1.xpose.msra.mxu0 0.0
        %1898 = vmatprep.subr.mxu0 0.0
        %1899 = vmatpush1.xpose.msra.mxu0 0.0
        %1900 = vmatprep.subr.mxu0 0.0
        %1901 = vmatpush1.xpose.msra.mxu0 0.0
        %1902 = vmatprep.subr.mxu0 0.0
        %1903 = vmatpush1.xpose.msra.mxu0 0.0
        %1904 = vmatprep.subr.mxu0 0.0
        %1905 = vmatpush1.xpose.msra.mxu0 0.0
        %1906 = vmatprep.subr.mxu0 0.0
        %1907 = vmatpush1.xpose.msra.mxu0 0.0
        %1908 = vmatprep.subr.mxu0 0.0
        %1909 = vmatpush1.xpose.msra.mxu0 0.0
        %1910 = vmatprep.subr.mxu0 0.0
        %1911 = vmatpush1.xpose.msra.mxu0 0.0
        %1912 = vmatprep.subr.mxu0 0.0
        %1913 = vmatpush1.xpose.msra.mxu0 0.0
        %1914 = vmatprep.subr.mxu0 0.0
        %1915 = vmatpush1.xpose.msra.mxu0 0.0
        %1916 = vmatprep.subr.mxu0 0.0
        %1917 = vmatpush1.xpose.msra.mxu0 0.0
        %1918 = vmatprep.subr.mxu0 0.0
        %1919 = vmatpush1.xpose.msra.mxu0 %v1886
        %1920 = vmatprep.subr.mxu0 0.0
        %1921 = vmatpush2.xpose.msra.mxu0 0.0
        %1922 = vmatprep.subr.mxu0 0.0
        %1923 = vmatpush2.xpose.msra.mxu0 0.0
        %1924 = vmatprep.subr.mxu0 0.0
        %1925 = vmatpush2.xpose.msra.mxu0 0.0
        %1926 = vmatprep.subr.mxu0 0.0
        %1927 = vmatpush2.xpose.msra.mxu0 0.0
        %1928 = vmatprep.subr.mxu0 0.0
        %1929 = vmatpush2.xpose.msra.mxu0 0.0
        %1930 = vmatprep.subr.mxu0 0.0
        %1931 = vmatpush2.xpose.msra.mxu0 0.0
        %1932 = vmatprep.subr.mxu0 0.0
        %1933 = vmatpush2.xpose.msra.mxu0 0.0
        %1934 = vmatprep.subr.mxu0 0.0
        %1935 = vmatpush2.xpose.msra.mxu0 0.0
        %1936 = vmatprep.subr.mxu0 0.0
        %1937 = vmatpush2.xpose.msra.mxu0 0.0
        %1938 = vmatprep.subr.mxu0 0.0
        %1939 = vmatpush2.xpose.msra.mxu0 0.0
        %1940 = vmatprep.subr.mxu0 0.0
        %1941 = vmatpush2.xpose.msra.mxu0 0.0
        %1942 = vmatprep.subr.mxu0 0.0
        %1943 = vmatpush2.xpose.msra.mxu0 0.0
        %1944 = vmatprep.subr.mxu0 0.0
        %1945 = vmatpush2.xpose.msra.mxu0 0.0
        %1946 = vmatprep.subr.mxu0 0.0
        %1947 = vmatpush2.xpose.msra.mxu0 0.0
        %1948 = vmatprep.subr.mxu0 0.0
        %1949 = vmatpush2.xpose.msra.mxu0 0.0
        %1950 = vmatprep.subr.mxu0 0.0
        %1951 = vmatpush2.xpose.msra.mxu0 0.0
        %1952 = vmatprep.mubr.f32.mxu0 0.0
        %1953 = vmatmul.mubr.f32.gmra.mxu0 %v1883
        %v1954 = vpop.f32.mrf.mxu0
        %v1955 = vadd.f32 %v888, %v1954
        %v1956 = vpop.f32.mrf.mxu0
        %1957 = vdwg.mxu0
        %v1958 = vsel %vm1282, %v1955, -inf
        %1959 = vmax.xlane.f32.xlu0 %v1958
        %v1960 = vpop.xlane.xlu0 %1959
        %v1961 = vsub.f32 %v1955, %v1960
        %v1962 = vmul.f32 %v1961, 1.442695
        %v1963 = vpow.pop %v1962
        %v1964 = vsel %vm1282, %v1963, 0.0
        %1965 = vadd.xlane.f32.xlu0 %v1964
        %v1966 = vpop.xlane.xlu0 %1965
        %v1967 = vrcp.pop %v1966
        %v1968 = vmul.f32 %v1963, %v1967
        %v1970 = vsel %vm1282, %v1968, 0
        %1972 = vmatprep.subr.mxu0 0.0
        %1973 = vmatpush1.msra.mxu0 0.0
        %1974 = vmatprep.subr.mxu0 0.0
        %1975 = vmatpush1.msra.mxu0 0.0
        %1976 = vmatprep.subr.mxu0 0.0
        %1977 = vmatpush1.msra.mxu0 0.0
        %1978 = vmatprep.subr.mxu0 0.0
        %1979 = vmatpush1.msra.mxu0 0.0
        %1980 = vmatprep.subr.mxu0 0.0
        %1981 = vmatpush1.msra.mxu0 0.0
        %1982 = vmatprep.subr.mxu0 0.0
        %1983 = vmatpush1.msra.mxu0 0.0
        %1984 = vmatprep.subr.mxu0 0.0
        %1985 = vmatpush1.msra.mxu0 0.0
        %1986 = vmatprep.subr.mxu0 0.0
        %1987 = vmatpush1.msra.mxu0 0.0
        %1988 = vmatprep.subr.mxu0 0.0
        %1989 = vmatpush1.msra.mxu0 0.0
        %1990 = vmatprep.subr.mxu0 0.0
        %1991 = vmatpush1.msra.mxu0 0.0
        %1992 = vmatprep.subr.mxu0 0.0
        %1993 = vmatpush1.msra.mxu0 0.0
        %1994 = vmatprep.subr.mxu0 0.0
        %1995 = vmatpush1.msra.mxu0 0.0
        %1996 = vmatprep.subr.mxu0 0.0
        %1997 = vmatpush1.msra.mxu0 0.0
        %1998 = vmatprep.subr.mxu0 0.0
        %1999 = vmatpush1.msra.mxu0 0.0
        %2000 = vmatprep.subr.mxu0 0.0
        %2001 = vmatpush1.msra.mxu0 0.0
        %2002 = vmatprep.subr.mxu0 0.0
        %2003 = vmatpush1.msra.mxu0 %v1200
        %2004 = vmatprep.subr.mxu0 0.0
        %2005 = vmatpush2.msra.mxu0 0.0
        %2006 = vmatprep.subr.mxu0 0.0
        %2007 = vmatpush2.msra.mxu0 0.0
        %2008 = vmatprep.subr.mxu0 0.0
        %2009 = vmatpush2.msra.mxu0 0.0
        %2010 = vmatprep.subr.mxu0 0.0
        %2011 = vmatpush2.msra.mxu0 0.0
        %2012 = vmatprep.subr.mxu0 0.0
        %2013 = vmatpush2.msra.mxu0 0.0
        %2014 = vmatprep.subr.mxu0 0.0
        %2015 = vmatpush2.msra.mxu0 0.0
        %2016 = vmatprep.subr.mxu0 0.0
        %2017 = vmatpush2.msra.mxu0 0.0
        %2018 = vmatprep.subr.mxu0 0.0
        %2019 = vmatpush2.msra.mxu0 0.0
        %2020 = vmatprep.subr.mxu0 0.0
        %2021 = vmatpush2.msra.mxu0 0.0
        %2022 = vmatprep.subr.mxu0 0.0
        %2023 = vmatpush2.msra.mxu0 0.0
        %2024 = vmatprep.subr.mxu0 0.0
        %2025 = vmatpush2.msra.mxu0 0.0
        %2026 = vmatprep.subr.mxu0 0.0
        %2027 = vmatpush2.msra.mxu0 0.0
        %2028 = vmatprep.subr.mxu0 0.0
        %2029 = vmatpush2.msra.mxu0 0.0
        %2030 = vmatprep.subr.mxu0 0.0
        %2031 = vmatpush2.msra.mxu0 0.0
        %2032 = vmatprep.subr.mxu0 0.0
        %2033 = vmatpush2.msra.mxu0 0.0
        %2034 = vmatprep.subr.mxu0 0.0
        %2035 = vmatpush2.msra.mxu0 0.0
        %2036 = vmatprep.mubr.f32.mxu0 0.0
        %2037 = vmatmul.mubr.f32.gmra.mxu0 %v1970
        %v2038 = vpop.f32.mrf.mxu0
        %v2039 = vadd.f32 0.0, %v2038
        %v2040 = vpop.f32.mrf.mxu0
        %2041 = vdwg.mxu0
        %2042 = vst.msk [vmem:[#allocation3 + $0x8] sm:$0xff] %vm1205, %v2039
        %2043 = vrot.lane.b32.xlu0 %v1204, 96
        %v2044 = vpop.permute.xlu0 %2043
        %2045 = vrot.lane.b32.xlu0 %v1160, 96
        %v2046 = vpop.permute.xlu0 %2045
        %v2047 = vsel %vm1205, %v2044, 0
        %v2049 = vsel %vm1205, %v2046, 0
        %2051 = vmatprep.subr.mxu0 0.0
        %2052 = vmatpush1.xpose.msra.mxu0 0.0
        %2053 = vmatprep.subr.mxu0 0.0
        %2054 = vmatpush1.xpose.msra.mxu0 0.0
        %2055 = vmatprep.subr.mxu0 0.0
        %2056 = vmatpush1.xpose.msra.mxu0 0.0
        %2057 = vmatprep.subr.mxu0 0.0
        %2058 = vmatpush1.xpose.msra.mxu0 0.0
        %2059 = vmatprep.subr.mxu0 0.0
        %2060 = vmatpush1.xpose.msra.mxu0 0.0
        %2061 = vmatprep.subr.mxu0 0.0
        %2062 = vmatpush1.xpose.msra.mxu0 0.0
        %2063 = vmatprep.subr.mxu0 0.0
        %2064 = vmatpush1.xpose.msra.mxu0 0.0
        %2065 = vmatprep.subr.mxu0 0.0
        %2066 = vmatpush1.xpose.msra.mxu0 0.0
        %2067 = vmatprep.subr.mxu0 0.0
        %2068 = vmatpush1.xpose.msra.mxu0 0.0
        %2069 = vmatprep.subr.mxu0 0.0
        %2070 = vmatpush1.xpose.msra.mxu0 0.0
        %2071 = vmatprep.subr.mxu0 0.0
        %2072 = vmatpush1.xpose.msra.mxu0 0.0
        %2073 = vmatprep.subr.mxu0 0.0
        %2074 = vmatpush1.xpose.msra.mxu0 0.0
        %2075 = vmatprep.subr.mxu0 0.0
        %2076 = vmatpush1.xpose.msra.mxu0 0.0
        %2077 = vmatprep.subr.mxu0 0.0
        %2078 = vmatpush1.xpose.msra.mxu0 0.0
        %2079 = vmatprep.subr.mxu0 0.0
        %2080 = vmatpush1.xpose.msra.mxu0 0.0
        %2081 = vmatprep.subr.mxu0 0.0
        %2082 = vmatpush1.xpose.msra.mxu0 %v2049
        %2083 = vmatprep.subr.mxu0 0.0
        %2084 = vmatpush2.xpose.msra.mxu0 0.0
        %2085 = vmatprep.subr.mxu0 0.0
        %2086 = vmatpush2.xpose.msra.mxu0 0.0
        %2087 = vmatprep.subr.mxu0 0.0
        %2088 = vmatpush2.xpose.msra.mxu0 0.0
        %2089 = vmatprep.subr.mxu0 0.0
        %2090 = vmatpush2.xpose.msra.mxu0 0.0
        %2091 = vmatprep.subr.mxu0 0.0
        %2092 = vmatpush2.xpose.msra.mxu0 0.0
        %2093 = vmatprep.subr.mxu0 0.0
        %2094 = vmatpush2.xpose.msra.mxu0 0.0
        %2095 = vmatprep.subr.mxu0 0.0
        %2096 = vmatpush2.xpose.msra.mxu0 0.0
        %2097 = vmatprep.subr.mxu0 0.0
        %2098 = vmatpush2.xpose.msra.mxu0 0.0
        %2099 = vmatprep.subr.mxu0 0.0
        %2100 = vmatpush2.xpose.msra.mxu0 0.0
        %2101 = vmatprep.subr.mxu0 0.0
        %2102 = vmatpush2.xpose.msra.mxu0 0.0
        %2103 = vmatprep.subr.mxu0 0.0
        %2104 = vmatpush2.xpose.msra.mxu0 0.0
        %2105 = vmatprep.subr.mxu0 0.0
        %2106 = vmatpush2.xpose.msra.mxu0 0.0
        %2107 = vmatprep.subr.mxu0 0.0
        %2108 = vmatpush2.xpose.msra.mxu0 0.0
        %2109 = vmatprep.subr.mxu0 0.0
        %2110 = vmatpush2.xpose.msra.mxu0 0.0
        %2111 = vmatprep.subr.mxu0 0.0
        %2112 = vmatpush2.xpose.msra.mxu0 0.0
        %2113 = vmatprep.subr.mxu0 0.0
        %2114 = vmatpush2.xpose.msra.mxu0 0.0
        %2115 = vmatprep.mubr.f32.mxu0 0.0
        %2116 = vmatmul.mubr.f32.gmra.mxu0 %v2047
        %v2117 = vpop.f32.mrf.mxu0
        %v2118 = vadd.f32 %v888, %v2117
        %v2119 = vpop.f32.mrf.mxu0
        %2120 = vdwg.mxu0
        %v2121 = vsel %vm1282, %v2118, -inf
        %2122 = vmax.xlane.f32.xlu0 %v2121
        %v2123 = vpop.xlane.xlu0 %2122
        %v2124 = vsub.f32 %v2118, %v2123
        %v2125 = vmul.f32 %v2124, 1.442695
        %v2126 = vpow.pop %v2125
        %v2127 = vsel %vm1282, %v2126, 0.0
        %2128 = vadd.xlane.f32.xlu0 %v2127
        %v2129 = vpop.xlane.xlu0 %2128
        %v2130 = vrcp.pop %v2129
        %v2131 = vmul.f32 %v2126, %v2130
        %2133 = vrot.lane.b32.xlu0 %v1200, 96
        %v2134 = vpop.permute.xlu0 %2133
        %v2137 = vsel %vm1282, %v2131, 0
        %2139 = vmatprep.subr.mxu0 0.0
        %2140 = vmatpush1.msra.mxu0 0.0
        %2141 = vmatprep.subr.mxu0 0.0
        %2142 = vmatpush1.msra.mxu0 0.0
        %2143 = vmatprep.subr.mxu0 0.0
        %2144 = vmatpush1.msra.mxu0 0.0
        %2145 = vmatprep.subr.mxu0 0.0
        %2146 = vmatpush1.msra.mxu0 0.0
        %2147 = vmatprep.subr.mxu0 0.0
        %2148 = vmatpush1.msra.mxu0 0.0
        %2149 = vmatprep.subr.mxu0 0.0
        %2150 = vmatpush1.msra.mxu0 0.0
        %2151 = vmatprep.subr.mxu0 0.0
        %2152 = vmatpush1.msra.mxu0 0.0
        %2153 = vmatprep.subr.mxu0 0.0
        %2154 = vmatpush1.msra.mxu0 0.0
        %2155 = vmatprep.subr.mxu0 0.0
        %2156 = vmatpush1.msra.mxu0 0.0
        %2157 = vmatprep.subr.mxu0 0.0
        %2158 = vmatpush1.msra.mxu0 0.0
        %2159 = vmatprep.subr.mxu0 0.0
        %2160 = vmatpush1.msra.mxu0 0.0
        %2161 = vmatprep.subr.mxu0 0.0
        %2162 = vmatpush1.msra.mxu0 0.0
        %2163 = vmatprep.subr.mxu0 0.0
        %2164 = vmatpush1.msra.mxu0 0.0
        %2165 = vmatprep.subr.mxu0 0.0
        %2166 = vmatpush1.msra.mxu0 0.0
        %2167 = vmatprep.subr.mxu0 0.0
        %2168 = vmatpush1.msra.mxu0 0.0
        %2169 = vmatprep.subr.mxu0 0.0
        %2170 = vmatpush1.msra.mxu0 %v2134
        %2171 = vmatprep.subr.mxu0 0.0
        %2172 = vmatpush2.msra.mxu0 0.0
        %2173 = vmatprep.subr.mxu0 0.0
        %2174 = vmatpush2.msra.mxu0 0.0
        %2175 = vmatprep.subr.mxu0 0.0
        %2176 = vmatpush2.msra.mxu0 0.0
        %2177 = vmatprep.subr.mxu0 0.0
        %2178 = vmatpush2.msra.mxu0 0.0
        %2179 = vmatprep.subr.mxu0 0.0
        %2180 = vmatpush2.msra.mxu0 0.0
        %2181 = vmatprep.subr.mxu0 0.0
        %2182 = vmatpush2.msra.mxu0 0.0
        %2183 = vmatprep.subr.mxu0 0.0
        %2184 = vmatpush2.msra.mxu0 0.0
        %2185 = vmatprep.subr.mxu0 0.0
        %2186 = vmatpush2.msra.mxu0 0.0
        %2187 = vmatprep.subr.mxu0 0.0
        %2188 = vmatpush2.msra.mxu0 0.0
        %2189 = vmatprep.subr.mxu0 0.0
        %2190 = vmatpush2.msra.mxu0 0.0
        %2191 = vmatprep.subr.mxu0 0.0
        %2192 = vmatpush2.msra.mxu0 0.0
        %2193 = vmatprep.subr.mxu0 0.0
        %2194 = vmatpush2.msra.mxu0 0.0
        %2195 = vmatprep.subr.mxu0 0.0
        %2196 = vmatpush2.msra.mxu0 0.0
        %2197 = vmatprep.subr.mxu0 0.0
        %2198 = vmatpush2.msra.mxu0 0.0
        %2199 = vmatprep.subr.mxu0 0.0
        %2200 = vmatpush2.msra.mxu0 0.0
        %2201 = vmatprep.subr.mxu0 0.0
        %2202 = vmatpush2.msra.mxu0 0.0
        %2203 = vmatprep.mubr.f32.mxu0 0.0
        %2204 = vmatmul.mubr.f32.gmra.mxu0 %v2137
        %v2205 = vpop.f32.mrf.mxu0
        %v2206 = vadd.f32 0.0, %v2205
        %v2207 = vpop.f32.mrf.mxu0
        %2208 = vdwg.mxu0
        %2210 = vrot.lane.b32.xlu0 %v2206, 32
        %v2211 = vpop.permute.xlu0 %2210
        %2213 = vst.msk [vmem:[#allocation3 + $0x8] sm:$0xff] %vm1538, %v2211
        %2214 = vrot.lane.b32.xlu0 %v1204, 64
        %v2215 = vpop.permute.xlu0 %2214
        %2216 = vrot.lane.b32.xlu0 %v1160, 64
        %v2217 = vpop.permute.xlu0 %2216
        %v2218 = vsel %vm1205, %v2215, 0
        %v2220 = vsel %vm1205, %v2217, 0
        %2222 = vmatprep.subr.mxu0 0.0
        %2223 = vmatpush1.xpose.msra.mxu0 0.0
        %2224 = vmatprep.subr.mxu0 0.0
        %2225 = vmatpush1.xpose.msra.mxu0 0.0
        %2226 = vmatprep.subr.mxu0 0.0
        %2227 = vmatpush1.xpose.msra.mxu0 0.0
        %2228 = vmatprep.subr.mxu0 0.0
        %2229 = vmatpush1.xpose.msra.mxu0 0.0
        %2230 = vmatprep.subr.mxu0 0.0
        %2231 = vmatpush1.xpose.msra.mxu0 0.0
        %2232 = vmatprep.subr.mxu0 0.0
        %2233 = vmatpush1.xpose.msra.mxu0 0.0
        %2234 = vmatprep.subr.mxu0 0.0
        %2235 = vmatpush1.xpose.msra.mxu0 0.0
        %2236 = vmatprep.subr.mxu0 0.0
        %2237 = vmatpush1.xpose.msra.mxu0 0.0
        %2238 = vmatprep.subr.mxu0 0.0
        %2239 = vmatpush1.xpose.msra.mxu0 0.0
        %2240 = vmatprep.subr.mxu0 0.0
        %2241 = vmatpush1.xpose.msra.mxu0 0.0
        %2242 = vmatprep.subr.mxu0 0.0
        %2243 = vmatpush1.xpose.msra.mxu0 0.0
        %2244 = vmatprep.subr.mxu0 0.0
        %2245 = vmatpush1.xpose.msra.mxu0 0.0
        %2246 = vmatprep.subr.mxu0 0.0
        %2247 = vmatpush1.xpose.msra.mxu0 0.0
        %2248 = vmatprep.subr.mxu0 0.0
        %2249 = vmatpush1.xpose.msra.mxu0 0.0
        %2250 = vmatprep.subr.mxu0 0.0
        %2251 = vmatpush1.xpose.msra.mxu0 0.0
        %2252 = vmatprep.subr.mxu0 0.0
        %2253 = vmatpush1.xpose.msra.mxu0 %v2220
        %2254 = vmatprep.subr.mxu0 0.0
        %2255 = vmatpush2.xpose.msra.mxu0 0.0
        %2256 = vmatprep.subr.mxu0 0.0
        %2257 = vmatpush2.xpose.msra.mxu0 0.0
        %2258 = vmatprep.subr.mxu0 0.0
        %2259 = vmatpush2.xpose.msra.mxu0 0.0
        %2260 = vmatprep.subr.mxu0 0.0
        %2261 = vmatpush2.xpose.msra.mxu0 0.0
        %2262 = vmatprep.subr.mxu0 0.0
        %2263 = vmatpush2.xpose.msra.mxu0 0.0
        %2264 = vmatprep.subr.mxu0 0.0
        %2265 = vmatpush2.xpose.msra.mxu0 0.0
        %2266 = vmatprep.subr.mxu0 0.0
        %2267 = vmatpush2.xpose.msra.mxu0 0.0
        %2268 = vmatprep.subr.mxu0 0.0
        %2269 = vmatpush2.xpose.msra.mxu0 0.0
        %2270 = vmatprep.subr.mxu0 0.0
        %2271 = vmatpush2.xpose.msra.mxu0 0.0
        %2272 = vmatprep.subr.mxu0 0.0
        %2273 = vmatpush2.xpose.msra.mxu0 0.0
        %2274 = vmatprep.subr.mxu0 0.0
        %2275 = vmatpush2.xpose.msra.mxu0 0.0
        %2276 = vmatprep.subr.mxu0 0.0
        %2277 = vmatpush2.xpose.msra.mxu0 0.0
        %2278 = vmatprep.subr.mxu0 0.0
        %2279 = vmatpush2.xpose.msra.mxu0 0.0
        %2280 = vmatprep.subr.mxu0 0.0
        %2281 = vmatpush2.xpose.msra.mxu0 0.0
        %2282 = vmatprep.subr.mxu0 0.0
        %2283 = vmatpush2.xpose.msra.mxu0 0.0
        %2284 = vmatprep.subr.mxu0 0.0
        %2285 = vmatpush2.xpose.msra.mxu0 0.0
        %2286 = vmatprep.mubr.f32.mxu0 0.0
        %2287 = vmatmul.mubr.f32.gmra.mxu0 %v2218
        %v2288 = vpop.f32.mrf.mxu0
        %v2289 = vadd.f32 %v888, %v2288
        %v2290 = vpop.f32.mrf.mxu0
        %2291 = vdwg.mxu0
        %v2292 = vsel %vm1282, %v2289, -inf
        %2293 = vmax.xlane.f32.xlu0 %v2292
        %v2294 = vpop.xlane.xlu0 %2293
        %v2295 = vsub.f32 %v2289, %v2294
        %v2296 = vmul.f32 %v2295, 1.442695
        %v2297 = vpow.pop %v2296
        %v2298 = vsel %vm1282, %v2297, 0.0
        %2299 = vadd.xlane.f32.xlu0 %v2298
        %v2300 = vpop.xlane.xlu0 %2299
        %v2301 = vrcp.pop %v2300
        %v2302 = vmul.f32 %v2297, %v2301
        %2303 = vrot.lane.b32.xlu0 %v1200, 64
        %v2304 = vpop.permute.xlu0 %2303
        %v2307 = vsel %vm1282, %v2302, 0
        %2309 = vmatprep.subr.mxu0 0.0
        %2310 = vmatpush1.msra.mxu0 0.0
        %2311 = vmatprep.subr.mxu0 0.0
        %2312 = vmatpush1.msra.mxu0 0.0
        %2313 = vmatprep.subr.mxu0 0.0
        %2314 = vmatpush1.msra.mxu0 0.0
        %2315 = vmatprep.subr.mxu0 0.0
        %2316 = vmatpush1.msra.mxu0 0.0
        %2317 = vmatprep.subr.mxu0 0.0
        %2318 = vmatpush1.msra.mxu0 0.0
        %2319 = vmatprep.subr.mxu0 0.0
        %2320 = vmatpush1.msra.mxu0 0.0
        %2321 = vmatprep.subr.mxu0 0.0
        %2322 = vmatpush1.msra.mxu0 0.0
        %2323 = vmatprep.subr.mxu0 0.0
        %2324 = vmatpush1.msra.mxu0 0.0
        %2325 = vmatprep.subr.mxu0 0.0
        %2326 = vmatpush1.msra.mxu0 0.0
        %2327 = vmatprep.subr.mxu0 0.0
        %2328 = vmatpush1.msra.mxu0 0.0
        %2329 = vmatprep.subr.mxu0 0.0
        %2330 = vmatpush1.msra.mxu0 0.0
        %2331 = vmatprep.subr.mxu0 0.0
        %2332 = vmatpush1.msra.mxu0 0.0
        %2333 = vmatprep.subr.mxu0 0.0
        %2334 = vmatpush1.msra.mxu0 0.0
        %2335 = vmatprep.subr.mxu0 0.0
        %2336 = vmatpush1.msra.mxu0 0.0
        %2337 = vmatprep.subr.mxu0 0.0
        %2338 = vmatpush1.msra.mxu0 0.0
        %2339 = vmatprep.subr.mxu0 0.0
        %2340 = vmatpush1.msra.mxu0 %v2304
        %2341 = vmatprep.subr.mxu0 0.0
        %2342 = vmatpush2.msra.mxu0 0.0
        %2343 = vmatprep.subr.mxu0 0.0
        %2344 = vmatpush2.msra.mxu0 0.0
        %2345 = vmatprep.subr.mxu0 0.0
        %2346 = vmatpush2.msra.mxu0 0.0
        %2347 = vmatprep.subr.mxu0 0.0
        %2348 = vmatpush2.msra.mxu0 0.0
        %2349 = vmatprep.subr.mxu0 0.0
        %2350 = vmatpush2.msra.mxu0 0.0
        %2351 = vmatprep.subr.mxu0 0.0
        %2352 = vmatpush2.msra.mxu0 0.0
        %2353 = vmatprep.subr.mxu0 0.0
        %2354 = vmatpush2.msra.mxu0 0.0
        %2355 = vmatprep.subr.mxu0 0.0
        %2356 = vmatpush2.msra.mxu0 0.0
        %2357 = vmatprep.subr.mxu0 0.0
        %2358 = vmatpush2.msra.mxu0 0.0
        %2359 = vmatprep.subr.mxu0 0.0
        %2360 = vmatpush2.msra.mxu0 0.0
        %2361 = vmatprep.subr.mxu0 0.0
        %2362 = vmatpush2.msra.mxu0 0.0
        %2363 = vmatprep.subr.mxu0 0.0
        %2364 = vmatpush2.msra.mxu0 0.0
        %2365 = vmatprep.subr.mxu0 0.0
        %2366 = vmatpush2.msra.mxu0 0.0
        %2367 = vmatprep.subr.mxu0 0.0
        %2368 = vmatpush2.msra.mxu0 0.0
        %2369 = vmatprep.subr.mxu0 0.0
        %2370 = vmatpush2.msra.mxu0 0.0
        %2371 = vmatprep.subr.mxu0 0.0
        %2372 = vmatpush2.msra.mxu0 0.0
        %2373 = vmatprep.mubr.f32.mxu0 0.0
        %2374 = vmatmul.mubr.f32.gmra.mxu0 %v2307
        %v2375 = vpop.f32.mrf.mxu0
        %v2376 = vadd.f32 0.0, %v2375
        %v2377 = vpop.f32.mrf.mxu0
        %2378 = vdwg.mxu0
        %2380 = vrot.lane.b32.xlu0 %v2376, 64
        %v2381 = vpop.permute.xlu0 %2380
        %2383 = vst.msk [vmem:[#allocation3 + $0x8] sm:$0xff] %vm1709, %v2381
        %2384 = vrot.lane.b32.xlu0 %v1204, 32
        %v2385 = vpop.permute.xlu0 %2384
        %2386 = vrot.lane.b32.xlu0 %v1160, 32
        %v2387 = vpop.permute.xlu0 %2386
        %v2388 = vsel %vm1205, %v2385, 0
        %v2390 = vsel %vm1205, %v2387, 0
        %2392 = vmatprep.subr.mxu0 0.0
        %2393 = vmatpush1.xpose.msra.mxu0 0.0
        %2394 = vmatprep.subr.mxu0 0.0
        %2395 = vmatpush1.xpose.msra.mxu0 0.0
        %2396 = vmatprep.subr.mxu0 0.0
        %2397 = vmatpush1.xpose.msra.mxu0 0.0
        %2398 = vmatprep.subr.mxu0 0.0
        %2399 = vmatpush1.xpose.msra.mxu0 0.0
        %2400 = vmatprep.subr.mxu0 0.0
        %2401 = vmatpush1.xpose.msra.mxu0 0.0
        %2402 = vmatprep.subr.mxu0 0.0
        %2403 = vmatpush1.xpose.msra.mxu0 0.0
        %2404 = vmatprep.subr.mxu0 0.0
        %2405 = vmatpush1.xpose.msra.mxu0 0.0
        %2406 = vmatprep.subr.mxu0 0.0
        %2407 = vmatpush1.xpose.msra.mxu0 0.0
        %2408 = vmatprep.subr.mxu0 0.0
        %2409 = vmatpush1.xpose.msra.mxu0 0.0
        %2410 = vmatprep.subr.mxu0 0.0
        %2411 = vmatpush1.xpose.msra.mxu0 0.0
        %2412 = vmatprep.subr.mxu0 0.0
        %2413 = vmatpush1.xpose.msra.mxu0 0.0
        %2414 = vmatprep.subr.mxu0 0.0
        %2415 = vmatpush1.xpose.msra.mxu0 0.0
        %2416 = vmatprep.subr.mxu0 0.0
        %2417 = vmatpush1.xpose.msra.mxu0 0.0
        %2418 = vmatprep.subr.mxu0 0.0
        %2419 = vmatpush1.xpose.msra.mxu0 0.0
        %2420 = vmatprep.subr.mxu0 0.0
        %2421 = vmatpush1.xpose.msra.mxu0 0.0
        %2422 = vmatprep.subr.mxu0 0.0
        %2423 = vmatpush1.xpose.msra.mxu0 %v2390
        %2424 = vmatprep.subr.mxu0 0.0
        %2425 = vmatpush2.xpose.msra.mxu0 0.0
        %2426 = vmatprep.subr.mxu0 0.0
        %2427 = vmatpush2.xpose.msra.mxu0 0.0
        %2428 = vmatprep.subr.mxu0 0.0
        %2429 = vmatpush2.xpose.msra.mxu0 0.0
        %2430 = vmatprep.subr.mxu0 0.0
        %2431 = vmatpush2.xpose.msra.mxu0 0.0
        %2432 = vmatprep.subr.mxu0 0.0
        %2433 = vmatpush2.xpose.msra.mxu0 0.0
        %2434 = vmatprep.subr.mxu0 0.0
        %2435 = vmatpush2.xpose.msra.mxu0 0.0
        %2436 = vmatprep.subr.mxu0 0.0
        %2437 = vmatpush2.xpose.msra.mxu0 0.0
        %2438 = vmatprep.subr.mxu0 0.0
        %2439 = vmatpush2.xpose.msra.mxu0 0.0
        %2440 = vmatprep.subr.mxu0 0.0
        %2441 = vmatpush2.xpose.msra.mxu0 0.0
        %2442 = vmatprep.subr.mxu0 0.0
        %2443 = vmatpush2.xpose.msra.mxu0 0.0
        %2444 = vmatprep.subr.mxu0 0.0
        %2445 = vmatpush2.xpose.msra.mxu0 0.0
        %2446 = vmatprep.subr.mxu0 0.0
        %2447 = vmatpush2.xpose.msra.mxu0 0.0
        %2448 = vmatprep.subr.mxu0 0.0
        %2449 = vmatpush2.xpose.msra.mxu0 0.0
        %2450 = vmatprep.subr.mxu0 0.0
        %2451 = vmatpush2.xpose.msra.mxu0 0.0
        %2452 = vmatprep.subr.mxu0 0.0
        %2453 = vmatpush2.xpose.msra.mxu0 0.0
        %2454 = vmatprep.subr.mxu0 0.0
        %2455 = vmatpush2.xpose.msra.mxu0 0.0
        %2456 = vmatprep.mubr.f32.mxu0 0.0
        %2457 = vmatmul.mubr.f32.gmra.mxu0 %v2388
        %v2458 = vpop.f32.mrf.mxu0
        %v2459 = vadd.f32 %v888, %v2458
        %v2460 = vpop.f32.mrf.mxu0
        %2461 = vdwg.mxu0
        %v2462 = vsel %vm1282, %v2459, -inf
        %2463 = vmax.xlane.f32.xlu0 %v2462
        %v2464 = vpop.xlane.xlu0 %2463
        %v2465 = vsub.f32 %v2459, %v2464
        %v2466 = vmul.f32 %v2465, 1.442695
        %v2467 = vpow.pop %v2466
        %v2468 = vsel %vm1282, %v2467, 0.0
        %2469 = vadd.xlane.f32.xlu0 %v2468
        %v2470 = vpop.xlane.xlu0 %2469
        %v2471 = vrcp.pop %v2470
        %v2472 = vmul.f32 %v2467, %v2471
        %2473 = vrot.lane.b32.xlu0 %v1200, 32
        %v2474 = vpop.permute.xlu0 %2473
        %v2477 = vsel %vm1282, %v2472, 0
        %2479 = vmatprep.subr.mxu0 0.0
        %2480 = vmatpush1.msra.mxu0 0.0
        %2481 = vmatprep.subr.mxu0 0.0
        %2482 = vmatpush1.msra.mxu0 0.0
        %2483 = vmatprep.subr.mxu0 0.0
        %2484 = vmatpush1.msra.mxu0 0.0
        %2485 = vmatprep.subr.mxu0 0.0
        %2486 = vmatpush1.msra.mxu0 0.0
        %2487 = vmatprep.subr.mxu0 0.0
        %2488 = vmatpush1.msra.mxu0 0.0
        %2489 = vmatprep.subr.mxu0 0.0
        %2490 = vmatpush1.msra.mxu0 0.0
        %2491 = vmatprep.subr.mxu0 0.0
        %2492 = vmatpush1.msra.mxu0 0.0
        %2493 = vmatprep.subr.mxu0 0.0
        %2494 = vmatpush1.msra.mxu0 0.0
        %2495 = vmatprep.subr.mxu0 0.0
        %2496 = vmatpush1.msra.mxu0 0.0
        %2497 = vmatprep.subr.mxu0 0.0
        %2498 = vmatpush1.msra.mxu0 0.0
        %2499 = vmatprep.subr.mxu0 0.0
        %2500 = vmatpush1.msra.mxu0 0.0
        %2501 = vmatprep.subr.mxu0 0.0
        %2502 = vmatpush1.msra.mxu0 0.0
        %2503 = vmatprep.subr.mxu0 0.0
        %2504 = vmatpush1.msra.mxu0 0.0
        %2505 = vmatprep.subr.mxu0 0.0
        %2506 = vmatpush1.msra.mxu0 0.0
        %2507 = vmatprep.subr.mxu0 0.0
        %2508 = vmatpush1.msra.mxu0 0.0
        %2509 = vmatprep.subr.mxu0 0.0
        %2510 = vmatpush1.msra.mxu0 %v2474
        %2511 = vmatprep.subr.mxu0 0.0
        %2512 = vmatpush2.msra.mxu0 0.0
        %2513 = vmatprep.subr.mxu0 0.0
        %2514 = vmatpush2.msra.mxu0 0.0
        %2515 = vmatprep.subr.mxu0 0.0
        %2516 = vmatpush2.msra.mxu0 0.0
        %2517 = vmatprep.subr.mxu0 0.0
        %2518 = vmatpush2.msra.mxu0 0.0
        %2519 = vmatprep.subr.mxu0 0.0
        %2520 = vmatpush2.msra.mxu0 0.0
        %2521 = vmatprep.subr.mxu0 0.0
        %2522 = vmatpush2.msra.mxu0 0.0
        %2523 = vmatprep.subr.mxu0 0.0
        %2524 = vmatpush2.msra.mxu0 0.0
        %2525 = vmatprep.subr.mxu0 0.0
        %2526 = vmatpush2.msra.mxu0 0.0
        %2527 = vmatprep.subr.mxu0 0.0
        %2528 = vmatpush2.msra.mxu0 0.0
        %2529 = vmatprep.subr.mxu0 0.0
        %2530 = vmatpush2.msra.mxu0 0.0
        %2531 = vmatprep.subr.mxu0 0.0
        %2532 = vmatpush2.msra.mxu0 0.0
        %2533 = vmatprep.subr.mxu0 0.0
        %2534 = vmatpush2.msra.mxu0 0.0
        %2535 = vmatprep.subr.mxu0 0.0
        %2536 = vmatpush2.msra.mxu0 0.0
        %2537 = vmatprep.subr.mxu0 0.0
        %2538 = vmatpush2.msra.mxu0 0.0
        %2539 = vmatprep.subr.mxu0 0.0
        %2540 = vmatpush2.msra.mxu0 0.0
        %2541 = vmatprep.subr.mxu0 0.0
        %2542 = vmatpush2.msra.mxu0 0.0
        %2543 = vmatprep.mubr.f32.mxu0 0.0
        %2544 = vmatmul.mubr.f32.gmra.mxu0 %v2477
        %v2545 = vpop.f32.mrf.mxu0
        %v2546 = vadd.f32 0.0, %v2545
        %v2547 = vpop.f32.mrf.mxu0
        %2548 = vdwg.mxu0
        %2550 = vrot.lane.b32.xlu0 %v2546, 96
        %v2551 = vpop.permute.xlu0 %2550
        %2553 = vst.msk [vmem:[#allocation3 + $0x8] sm:$0xff] %vm1880, %v2551
        %v2554 = vld [vmem:[#allocation3] sm:$0xff]
        %v2555 = vld [vmem:[#allocation3 + $0x8] sm:$0xff]
        %v2556 = vpack.c.bf16 %v2555, %v2554
        %v2557 = vlaneseq
        %v2558 = vshrl.u32 %v2557, 7
        %v2559 = vsub.s32 2, %v2558
        %v2560 = vrot.slane %v889, %v2559
        %v2577 = vunpack.c.l.b16 %v922
        %v2578 = vunpack.c.l.b16 %v923
        %v2579 = vunpack.c.l.b16 %v924
        %v2580 = vunpack.c.l.b16 %v925
        %v2581 = vunpack.c.l.b16 %v926
        %v2582 = vunpack.c.l.b16 %v927
        %v2583 = vunpack.c.l.b16 %v928
        %v2584 = vunpack.c.l.b16 %v929
        %v2585 = vunpack.c.l.b16 %v930
        %v2586 = vunpack.c.l.b16 %v931
        %v2587 = vunpack.c.l.b16 %v932
        %v2588 = vunpack.c.l.b16 %v933
        %v2589 = vunpack.c.l.b16 %v934
        %v2590 = vunpack.c.l.b16 %v935
        %v2591 = vunpack.c.l.b16 %v936
        %v2592 = vunpack.c.l.b16 %v937
        %v2593 = vpack.c.b16 %v2578, %v2577
        %v2594 = vpack.c.b16 %v2580, %v2579
        %v2595 = vpack.c.b16 %v2582, %v2581
        %v2596 = vpack.c.b16 %v2584, %v2583
        %v2597 = vpack.c.b16 %v2586, %v2585
        %v2598 = vpack.c.b16 %v2588, %v2587
        %v2599 = vpack.c.b16 %v2590, %v2589
        %v2600 = vpack.c.b16 %v2592, %v2591
        %2609 = vmatprep.subr.bf16.mxu0 0
        %2610 = vmatpush1.bf16.msra.mxu0 %v2600
        %2611 = vmatprep.subr.bf16.mxu0 0
        %2612 = vmatpush1.bf16.msra.mxu0 %v2599
        %2613 = vmatprep.subr.bf16.mxu0 0
        %2614 = vmatpush1.bf16.msra.mxu0 %v2598
        %2615 = vmatprep.subr.bf16.mxu0 0
        %2616 = vmatpush1.bf16.msra.mxu0 %v2597
        %2617 = vmatprep.subr.bf16.mxu0 0
        %2618 = vmatpush1.bf16.msra.mxu0 %v2596
        %2619 = vmatprep.subr.bf16.mxu0 0
        %2620 = vmatpush1.bf16.msra.mxu0 %v2595
        %2621 = vmatprep.subr.bf16.mxu0 0
        %2622 = vmatpush1.bf16.msra.mxu0 %v2594
        %2623 = vmatprep.subr.bf16.mxu0 0
        %2624 = vmatpush1.bf16.msra.mxu0 %v2593
        %2625 = vmatprep.subr.bf16.mxu0 0
        %2626 = vmatpush2.bf16.msra.mxu0 0
        %2627 = vmatprep.subr.bf16.mxu0 0
        %2628 = vmatpush2.bf16.msra.mxu0 0
        %2629 = vmatprep.subr.bf16.mxu0 0
        %2630 = vmatpush2.bf16.msra.mxu0 0
        %2631 = vmatprep.subr.bf16.mxu0 0
        %2632 = vmatpush2.bf16.msra.mxu0 0
        %2633 = vmatprep.subr.bf16.mxu0 0
        %2634 = vmatpush2.bf16.msra.mxu0 0
        %2635 = vmatprep.subr.bf16.mxu0 0
        %2636 = vmatpush2.bf16.msra.mxu0 0
        %2637 = vmatprep.subr.bf16.mxu0 0
        %2638 = vmatpush2.bf16.msra.mxu0 0
        %2639 = vmatprep.subr.bf16.mxu0 0
        %2640 = vmatpush2.bf16.msra.mxu0 0
        %2641 = vmatprep.mubr.bf16.mxu0 0
        %2642 = vmatmul.mubr.bf16.gmra.mxu0 %v2556
        %v2643 = vpop.f32.mrf.mxu0
        %v2644 = vadd.f32 %v2560, %v2643
        %v2645 = vpop.f32.mrf.mxu0
        %v2646 = vpop.f32.mrf.mxu0
        %v2647 = vadd.f32 %v2560, %v2646
        %v2648 = vpop.f32.mrf.mxu0
        %2649 = vdwg.mxu0
        %v2650 = vadd.f32 %v886, %v2644
        %v2651 = vadd.f32 %v887, %v2647
        %v2652 = vld [vmem:[%s503] sm:$0xff]
        %v2653 = vld [vmem:[%s503 + $0x8] sm:$0xff]
        %v2654 = vld [vmem:[%s503 + $0x10] sm:$0xff]
        %v2655 = vld [vmem:[%s503 + $0x18] sm:$0xff]
        %v2656 = vld [vmem:[%s503 + $0x20] sm:$0xff]
        %v2657 = vld [vmem:[%s503 + $0x28] sm:$0xff]
        %v2658 = vld [vmem:[%s503 + $0x30] sm:$0xff]
        %v2659 = vld [vmem:[%s503 + $0x38] sm:$0xff]
        %v2660 = vld [vmem:[%s503 + $0x40] sm:$0xff]
        %v2661 = vld [vmem:[%s503 + $0x48] sm:$0xff]
        %v2662 = vld [vmem:[%s503 + $0x50] sm:$0xff]
        %v2663 = vld [vmem:[%s503 + $0x58] sm:$0xff]
        %v2664 = vld [vmem:[%s503 + $0x60] sm:$0xff]
        %v2665 = vld [vmem:[%s503 + $0x68] sm:$0xff]
        %v2666 = vld [vmem:[%s503 + $0x70] sm:$0xff]
        %v2667 = vld [vmem:[%s503 + $0x78] sm:$0xff]
        %v2668 = vld [vmem:[%s503 + $0x80] sm:$0xff]
        %v2669 = vld [vmem:[%s503 + $0x88] sm:$0xff]
        %v2670 = vld [vmem:[%s503 + $0x90] sm:$0xff]
        %v2671 = vld [vmem:[%s503 + $0x98] sm:$0xff]
        %v2672 = vld [vmem:[%s503 + $0xa0] sm:$0xff]
        %v2673 = vld [vmem:[%s503 + $0xa8] sm:$0xff]
        %v2674 = vld [vmem:[%s503 + $0xb0] sm:$0xff]
        %v2675 = vld [vmem:[%s503 + $0xb8] sm:$0xff]
        %v2676 = vld [vmem:[%s503 + $0xc0] sm:$0xff]
        %v2677 = vld [vmem:[%s503 + $0xc8] sm:$0xff]
        %v2678 = vld [vmem:[%s503 + $0xd0] sm:$0xff]
        %v2679 = vld [vmem:[%s503 + $0xd8] sm:$0xff]
        %v2680 = vld [vmem:[%s503 + $0xe0] sm:$0xff]
        %v2681 = vld [vmem:[%s503 + $0xe8] sm:$0xff]
        %v2682 = vld [vmem:[%s503 + $0xf0] sm:$0xff]
        %v2683 = vld [vmem:[%s503 + $0xf8] sm:$0xff]
        %v2684 = vld [vmem:[%s521] sm:$0xf]
        %v2685 = vld [vmem:[%s521 + $0x4] sm:$0xf]
        %v2686 = vld [vmem:[%s521 + $0x8] sm:$0xf]
        %v2687 = vld [vmem:[%s521 + $0xc] sm:$0xf]
        %v2688 = vld [vmem:[%s521 + $0x10] sm:$0xf]
        %v2689 = vld [vmem:[%s521 + $0x14] sm:$0xf]
        %v2690 = vld [vmem:[%s521 + $0x18] sm:$0xf]
        %v2691 = vld [vmem:[%s521 + $0x1c] sm:$0xf]
        %v2692 = vld [vmem:[%s521 + $0x20] sm:$0xf]
        %v2693 = vld [vmem:[%s521 + $0x24] sm:$0xf]
        %v2694 = vld [vmem:[%s521 + $0x28] sm:$0xf]
        %v2695 = vld [vmem:[%s521 + $0x2c] sm:$0xf]
        %v2696 = vld [vmem:[%s521 + $0x30] sm:$0xf]
        %v2697 = vld [vmem:[%s521 + $0x34] sm:$0xf]
        %v2698 = vld [vmem:[%s521 + $0x38] sm:$0xf]
        %v2699 = vld [vmem:[%s521 + $0x3c] sm:$0xf]
        %v2700 = vld [vmem:[%s521 + $0x40] sm:$0xf]
        %v2701 = vld [vmem:[%s521 + $0x44] sm:$0xf]
        %v2702 = vld [vmem:[%s521 + $0x48] sm:$0xf]
        %v2703 = vld [vmem:[%s521 + $0x4c] sm:$0xf]
        %v2704 = vld [vmem:[%s521 + $0x50] sm:$0xf]
        %v2705 = vld [vmem:[%s521 + $0x54] sm:$0xf]
        %v2706 = vld [vmem:[%s521 + $0x58] sm:$0xf]
        %v2707 = vld [vmem:[%s521 + $0x5c] sm:$0xf]
        %v2708 = vld [vmem:[%s521 + $0x60] sm:$0xf]
        %v2709 = vld [vmem:[%s521 + $0x64] sm:$0xf]
        %v2710 = vld [vmem:[%s521 + $0x68] sm:$0xf]
        %v2711 = vld [vmem:[%s521 + $0x6c] sm:$0xf]
        %v2712 = vld [vmem:[%s521 + $0x70] sm:$0xf]
        %v2713 = vld [vmem:[%s521 + $0x74] sm:$0xf]
        %v2714 = vld [vmem:[%s521 + $0x78] sm:$0xf]
        %v2715 = vld [vmem:[%s521 + $0x7c] sm:$0xf]
        %v2716 = vld [vmem:[%s521 + $0x80] sm:$0xf]
        %v2717 = vld [vmem:[%s521 + $0x84] sm:$0xf]
        %v2718 = vld [vmem:[%s521 + $0x88] sm:$0xf]
        %v2719 = vld [vmem:[%s521 + $0x8c] sm:$0xf]
        %v2720 = vld [vmem:[%s521 + $0x90] sm:$0xf]
        %v2721 = vld [vmem:[%s521 + $0x94] sm:$0xf]
        %v2722 = vld [vmem:[%s521 + $0x98] sm:$0xf]
        %v2723 = vld [vmem:[%s521 + $0x9c] sm:$0xf]
        %v2724 = vld [vmem:[%s521 + $0xa0] sm:$0xf]
        %v2725 = vld [vmem:[%s521 + $0xa4] sm:$0xf]
        %v2726 = vld [vmem:[%s521 + $0xa8] sm:$0xf]
        %v2727 = vld [vmem:[%s521 + $0xac] sm:$0xf]
        %v2728 = vld [vmem:[%s521 + $0xb0] sm:$0xf]
        %v2729 = vld [vmem:[%s521 + $0xb4] sm:$0xf]
        %v2730 = vld [vmem:[%s521 + $0xb8] sm:$0xf]
        %v2731 = vld [vmem:[%s521 + $0xbc] sm:$0xf]
        %v2732 = vld [vmem:[%s521 + $0xc0] sm:$0xf]
        %v2733 = vld [vmem:[%s521 + $0xc4] sm:$0xf]
        %v2734 = vld [vmem:[%s521 + $0xc8] sm:$0xf]
        %v2735 = vld [vmem:[%s521 + $0xcc] sm:$0xf]
        %v2736 = vld [vmem:[%s521 + $0xd0] sm:$0xf]
        %v2737 = vld [vmem:[%s521 + $0xd4] sm:$0xf]
        %v2738 = vld [vmem:[%s521 + $0xd8] sm:$0xf]
        %v2739 = vld [vmem:[%s521 + $0xdc] sm:$0xf]
        %v2740 = vld [vmem:[%s521 + $0xe0] sm:$0xf]
        %v2741 = vld [vmem:[%s521 + $0xe4] sm:$0xf]
        %v2742 = vld [vmem:[%s521 + $0xe8] sm:$0xf]
        %v2743 = vld [vmem:[%s521 + $0xec] sm:$0xf]
        %v2744 = vld [vmem:[%s521 + $0xf0] sm:$0xf]
        %v2745 = vld [vmem:[%s521 + $0xf4] sm:$0xf]
        %v2746 = vld [vmem:[%s521 + $0xf8] sm:$0xf]
        %v2747 = vld [vmem:[%s521 + $0xfc] sm:$0xf]
        %2748 = vadd.xlane.f32.xlu0 %v2650
        %v2749 = vpop.xlane.xlu0 %2748
        %2750 = vadd.xlane.f32.xlu0 %v2651
        %v2751 = vpop.xlane.xlu0 %2750
        %v2752 = vmul.f32 %v2749, %v942
        %v2753 = vmul.f32 %v2751, %v942
        %v2754 = vsub.f32 %v2650, %v2752
        %v2755 = vsub.f32 %v2651, %v2753
        %v2756 = vmul.f32 %v2754, %v2754
        %v2757 = vmul.f32 %v2755, %v2755
        %2758 = vadd.xlane.f32.xlu0 %v2756
        %v2759 = vpop.xlane.xlu0 %2758
        %2760 = vadd.xlane.f32.xlu0 %v2757
        %v2761 = vpop.xlane.xlu0 %2760
        %v2762 = vmul.f32 %v2759, %v942
        %v2763 = vmul.f32 %v2761, %v942
        %v2764 = vadd.f32 %v2762, 1e-05
        %v2765 = vadd.f32 %v2763, 1e-05
        %v2766 = vrsqrt.pop %v2764
        %v2767 = vrsqrt.pop %v2765
        %v2768 = vmul.f32 %v2754, %v2766
        %v2769 = vmul.f32 %v2755, %v2767
        %v2770 = vlaneseq
        %v2771 = vshrl.u32 %v2770, 7
        %v2772 = vsub.s32 3, %v2771
        %v2773 = vrot.slane %v889, %v2772
        %v2774 = vmul.f32 %v2768, %v2773
        %v2775 = vmul.f32 %v2769, %v2773
        %v2776 = vlaneseq
        %v2777 = vshrl.u32 %v2776, 7
        %v2778 = vsub.s32 4, %v2777
        %v2779 = vrot.slane %v889, %v2778
        %v2780 = vadd.f32 %v2774, %v2779
        %v2781 = vadd.f32 %v2775, %v2779
        %v2782 = vpack.c.bf16 %v2781, %v2780
        %v2783 = vld [vmem:[%s512] sm:$0xf]
        %v2785 = vlaneseq
        %v2786 = vshrl.u32 %v2785, 7
        %v2787 = vsub.s32 0, %v2786
        %v2788 = vrot.slane %v2783, %v2787
        %v2789 = vlaneseq
        %v2790 = vshrl.u32 %v2789, 7
        %v2791 = vsub.s32 1, %v2790
        %v2792 = vrot.slane %v2783, %v2791
        %v2793 = vlaneseq
        %v2794 = vshrl.u32 %v2793, 7
        %v2795 = vsub.s32 2, %v2794
        %v2796 = vrot.slane %v2783, %v2795
        %v2797 = vlaneseq
        %v2798 = vshrl.u32 %v2797, 7
        %v2799 = vsub.s32 3, %v2798
        %v2800 = vrot.slane %v2783, %v2799
        %v2837 = vunpack.c.l.b16 %v2652
        %v2838 = vunpack.c.h.b16 %v2652
        %v2839 = vunpack.c.l.b16 %v2653
        %v2840 = vunpack.c.h.b16 %v2653
        %v2841 = vunpack.c.l.b16 %v2654
        %v2842 = vunpack.c.h.b16 %v2654
        %v2843 = vunpack.c.l.b16 %v2655
        %v2844 = vunpack.c.h.b16 %v2655
        %v2845 = vunpack.c.l.b16 %v2656
        %v2846 = vunpack.c.h.b16 %v2656
        %v2847 = vunpack.c.l.b16 %v2657
        %v2848 = vunpack.c.h.b16 %v2657
        %v2849 = vunpack.c.l.b16 %v2658
        %v2850 = vunpack.c.h.b16 %v2658
        %v2851 = vunpack.c.l.b16 %v2659
        %v2852 = vunpack.c.h.b16 %v2659
        %v2853 = vunpack.c.l.b16 %v2660
        %v2854 = vunpack.c.h.b16 %v2660
        %v2855 = vunpack.c.l.b16 %v2661
        %v2856 = vunpack.c.h.b16 %v2661
        %v2857 = vunpack.c.l.b16 %v2662
        %v2858 = vunpack.c.h.b16 %v2662
        %v2859 = vunpack.c.l.b16 %v2663
        %v2860 = vunpack.c.h.b16 %v2663
        %v2861 = vunpack.c.l.b16 %v2664
        %v2862 = vunpack.c.h.b16 %v2664
        %v2863 = vunpack.c.l.b16 %v2665
        %v2864 = vunpack.c.h.b16 %v2665
        %v2865 = vunpack.c.l.b16 %v2666
        %v2866 = vunpack.c.h.b16 %v2666
        %v2867 = vunpack.c.l.b16 %v2667
        %v2868 = vunpack.c.h.b16 %v2667
        %v2869 = vunpack.c.l.b16 %v2668
        %v2870 = vunpack.c.h.b16 %v2668
        %v2871 = vunpack.c.l.b16 %v2669
        %v2872 = vunpack.c.h.b16 %v2669
        %v2873 = vunpack.c.l.b16 %v2670
        %v2874 = vunpack.c.h.b16 %v2670
        %v2875 = vunpack.c.l.b16 %v2671
        %v2876 = vunpack.c.h.b16 %v2671
        %v2877 = vunpack.c.l.b16 %v2672
        %v2878 = vunpack.c.h.b16 %v2672
        %v2879 = vunpack.c.l.b16 %v2673
        %v2880 = vunpack.c.h.b16 %v2673
        %v2881 = vunpack.c.l.b16 %v2674
        %v2882 = vunpack.c.h.b16 %v2674
        %v2883 = vunpack.c.l.b16 %v2675
        %v2884 = vunpack.c.h.b16 %v2675
        %v2885 = vunpack.c.l.b16 %v2676
        %v2886 = vunpack.c.h.b16 %v2676
        %v2887 = vunpack.c.l.b16 %v2677
        %v2888 = vunpack.c.h.b16 %v2677
        %v2889 = vunpack.c.l.b16 %v2678
        %v2890 = vunpack.c.h.b16 %v2678
        %v2891 = vunpack.c.l.b16 %v2679
        %v2892 = vunpack.c.h.b16 %v2679
        %v2893 = vunpack.c.l.b16 %v2680
        %v2894 = vunpack.c.h.b16 %v2680
        %v2895 = vunpack.c.l.b16 %v2681
        %v2896 = vunpack.c.h.b16 %v2681
        %v2897 = vunpack.c.l.b16 %v2682
        %v2898 = vunpack.c.h.b16 %v2682
        %v2899 = vunpack.c.l.b16 %v2683
        %v2900 = vunpack.c.h.b16 %v2683
        %v2901 = vpack.c.b16 %v2841, %v2837
        %v2902 = vpack.c.b16 %v2842, %v2838
        %v2903 = vpack.c.b16 %v2843, %v2839
        %v2904 = vpack.c.b16 %v2844, %v2840
        %v2905 = vpack.c.b16 %v2849, %v2845
        %v2906 = vpack.c.b16 %v2850, %v2846
        %v2907 = vpack.c.b16 %v2851, %v2847
        %v2908 = vpack.c.b16 %v2852, %v2848
        %v2909 = vpack.c.b16 %v2857, %v2853
        %v2910 = vpack.c.b16 %v2858, %v2854
        %v2911 = vpack.c.b16 %v2859, %v2855
        %v2912 = vpack.c.b16 %v2860, %v2856
        %v2913 = vpack.c.b16 %v2865, %v2861
        %v2914 = vpack.c.b16 %v2866, %v2862
        %v2915 = vpack.c.b16 %v2867, %v2863
        %v2916 = vpack.c.b16 %v2868, %v2864
        %v2917 = vpack.c.b16 %v2873, %v2869
        %v2918 = vpack.c.b16 %v2874, %v2870
        %v2919 = vpack.c.b16 %v2875, %v2871
        %v2920 = vpack.c.b16 %v2876, %v2872
        %v2921 = vpack.c.b16 %v2881, %v2877
        %v2922 = vpack.c.b16 %v2882, %v2878
        %v2923 = vpack.c.b16 %v2883, %v2879
        %v2924 = vpack.c.b16 %v2884, %v2880
        %v2925 = vpack.c.b16 %v2889, %v2885
        %v2926 = vpack.c.b16 %v2890, %v2886
        %v2927 = vpack.c.b16 %v2891, %v2887
        %v2928 = vpack.c.b16 %v2892, %v2888
        %v2929 = vpack.c.b16 %v2897, %v2893
        %v2930 = vpack.c.b16 %v2898, %v2894
        %v2931 = vpack.c.b16 %v2899, %v2895
        %v2932 = vpack.c.b16 %v2900, %v2896
        %2965 = vmatprep.subr.bf16.mxu0 %v2930
        %2966 = vmatpush1.bf16.msra.mxu0 %v2929
        %2967 = vmatprep.subr.bf16.mxu0 %v2926
        %2968 = vmatpush1.bf16.msra.mxu0 %v2925
        %2969 = vmatprep.subr.bf16.mxu0 %v2922
        %2970 = vmatpush1.bf16.msra.mxu0 %v2921
        %2971 = vmatprep.subr.bf16.mxu0 %v2918
        %2972 = vmatpush1.bf16.msra.mxu0 %v2917
        %2973 = vmatprep.subr.bf16.mxu0 %v2914
        %2974 = vmatpush1.bf16.msra.mxu0 %v2913
        %2975 = vmatprep.subr.bf16.mxu0 %v2910
        %2976 = vmatpush1.bf16.msra.mxu0 %v2909
        %2977 = vmatprep.subr.bf16.mxu0 %v2906
        %2978 = vmatpush1.bf16.msra.mxu0 %v2905
        %2979 = vmatprep.subr.bf16.mxu0 %v2902
        %2980 = vmatpush1.bf16.msra.mxu0 %v2901
        %2981 = vmatprep.subr.bf16.mxu0 0
        %2982 = vmatpush2.bf16.msra.mxu0 0
        %2983 = vmatprep.subr.bf16.mxu0 0
        %2984 = vmatpush2.bf16.msra.mxu0 0
        %2985 = vmatprep.subr.bf16.mxu0 0
        %2986 = vmatpush2.bf16.msra.mxu0 0
        %2987 = vmatprep.subr.bf16.mxu0 0
        %2988 = vmatpush2.bf16.msra.mxu0 0
        %2989 = vmatprep.subr.bf16.mxu0 0
        %2990 = vmatpush2.bf16.msra.mxu0 0
        %2991 = vmatprep.subr.bf16.mxu0 0
        %2992 = vmatpush2.bf16.msra.mxu0 0
        %2993 = vmatprep.subr.bf16.mxu0 0
        %2994 = vmatpush2.bf16.msra.mxu0 0
        %2995 = vmatprep.subr.bf16.mxu0 0
        %2996 = vmatpush2.bf16.msra.mxu0 0
        %2997 = vmatprep.mubr.bf16.mxu0 0
        %2998 = vmatmul.mubr.bf16.gmra.mxu0 %v2782
        %v2999 = vpop.f32.mrf.mxu0
        %v3000 = vadd.f32 %v2788, %v2999
        %v3001 = vpop.f32.mrf.mxu0
        %v3002 = vadd.f32 %v2792, %v3001
        %v3003 = vpop.f32.mrf.mxu0
        %v3004 = vadd.f32 %v2788, %v3003
        %v3005 = vpop.f32.mrf.mxu0
        %v3006 = vadd.f32 %v2792, %v3005
        %3007 = vdwg.mxu0
        %3008 = vmatprep.subr.bf16.mxu0 %v2932
        %3009 = vmatpush1.bf16.msra.mxu0 %v2931
        %3010 = vmatprep.subr.bf16.mxu0 %v2928
        %3011 = vmatpush1.bf16.msra.mxu0 %v2927
        %3012 = vmatprep.subr.bf16.mxu0 %v2924
        %3013 = vmatpush1.bf16.msra.mxu0 %v2923
        %3014 = vmatprep.subr.bf16.mxu0 %v2920
        %3015 = vmatpush1.bf16.msra.mxu0 %v2919
        %3016 = vmatprep.subr.bf16.mxu0 %v2916
        %3017 = vmatpush1.bf16.msra.mxu0 %v2915
        %3018 = vmatprep.subr.bf16.mxu0 %v2912
        %3019 = vmatpush1.bf16.msra.mxu0 %v2911
        %3020 = vmatprep.subr.bf16.mxu0 %v2908
        %3021 = vmatpush1.bf16.msra.mxu0 %v2907
        %3022 = vmatprep.subr.bf16.mxu0 %v2904
        %3023 = vmatpush1.bf16.msra.mxu0 %v2903
        %3024 = vmatprep.subr.bf16.mxu0 0
        %3025 = vmatpush2.bf16.msra.mxu0 0
        %3026 = vmatprep.subr.bf16.mxu0 0
        %3027 = vmatpush2.bf16.msra.mxu0 0
        %3028 = vmatprep.subr.bf16.mxu0 0
        %3029 = vmatpush2.bf16.msra.mxu0 0
        %3030 = vmatprep.subr.bf16.mxu0 0
        %3031 = vmatpush2.bf16.msra.mxu0 0
        %3032 = vmatprep.subr.bf16.mxu0 0
        %3033 = vmatpush2.bf16.msra.mxu0 0
        %3034 = vmatprep.subr.bf16.mxu0 0
        %3035 = vmatpush2.bf16.msra.mxu0 0
        %3036 = vmatprep.subr.bf16.mxu0 0
        %3037 = vmatpush2.bf16.msra.mxu0 0
        %3038 = vmatprep.subr.bf16.mxu0 0
        %3039 = vmatpush2.bf16.msra.mxu0 0
        %3040 = vmatprep.mubr.bf16.mxu0 0
        %3041 = vmatmul.mubr.bf16.gmra.mxu0 %v2782
        %v3042 = vpop.f32.mrf.mxu0
        %v3043 = vadd.f32 %v2796, %v3042
        %v3044 = vpop.f32.mrf.mxu0
        %v3045 = vadd.f32 %v2800, %v3044
        %v3046 = vpop.f32.mrf.mxu0
        %v3047 = vadd.f32 %v2796, %v3046
        %v3048 = vpop.f32.mrf.mxu0
        %v3049 = vadd.f32 %v2800, %v3048
        %3050 = vdwg.mxu0
        %v3051 = vmul.f32 %v3000, 1.702
        %v3052 = vmul.f32 %v3002, 1.702
        %v3053 = vmul.f32 %v3043, 1.702
        %v3054 = vmul.f32 %v3045, 1.702
        %v3055 = vmul.f32 %v3004, 1.702
        %v3056 = vmul.f32 %v3006, 1.702
        %v3057 = vmul.f32 %v3047, 1.702
        %v3058 = vmul.f32 %v3049, 1.702
        %v3059 = vxor.u32 %v3051, 2147483648
        %v3060 = vxor.u32 %v3052, 2147483648
        %v3061 = vxor.u32 %v3053, 2147483648
        %v3062 = vxor.u32 %v3054, 2147483648
        %v3063 = vxor.u32 %v3055, 2147483648
        %v3064 = vxor.u32 %v3056, 2147483648
        %v3065 = vxor.u32 %v3057, 2147483648
        %v3066 = vxor.u32 %v3058, 2147483648
        %v3067 = vmul.f32 %v3059, 1.442695
        %v3068 = vpow.pop %v3067
        %v3069 = vmul.f32 %v3060, 1.442695
        %v3070 = vpow.pop %v3069
        %v3071 = vmul.f32 %v3061, 1.442695
        %v3072 = vpow.pop %v3071
        %v3073 = vmul.f32 %v3062, 1.442695
        %v3074 = vpow.pop %v3073
        %v3075 = vmul.f32 %v3063, 1.442695
        %v3076 = vpow.pop %v3075
        %v3077 = vmul.f32 %v3064, 1.442695
        %v3078 = vpow.pop %v3077
        %v3079 = vmul.f32 %v3065, 1.442695
        %v3080 = vpow.pop %v3079
        %v3081 = vmul.f32 %v3066, 1.442695
        %v3082 = vpow.pop %v3081
        %v3083 = vadd.f32 %v3068, 1.0
        %v3084 = vadd.f32 %v3070, 1.0
        %v3085 = vadd.f32 %v3072, 1.0
        %v3086 = vadd.f32 %v3074, 1.0
        %v3087 = vadd.f32 %v3076, 1.0
        %v3088 = vadd.f32 %v3078, 1.0
        %v3089 = vadd.f32 %v3080, 1.0
        %v3090 = vadd.f32 %v3082, 1.0
        %v3091 = vrcp.pop %v3083
        %v3092 = vmul.f32 1.0, %v3091
        %v3093 = vrcp.pop %v3084
        %v3094 = vmul.f32 1.0, %v3093
        %v3095 = vrcp.pop %v3085
        %v3096 = vmul.f32 1.0, %v3095
        %v3097 = vrcp.pop %v3086
        %v3098 = vmul.f32 1.0, %v3097
        %v3099 = vrcp.pop %v3087
        %v3100 = vmul.f32 1.0, %v3099
        %v3101 = vrcp.pop %v3088
        %v3102 = vmul.f32 1.0, %v3101
        %v3103 = vrcp.pop %v3089
        %v3104 = vmul.f32 1.0, %v3103
        %v3105 = vrcp.pop %v3090
        %v3106 = vmul.f32 1.0, %v3105
        %v3107 = vmul.f32 %v3000, %v3092
        %v3108 = vmul.f32 %v3002, %v3094
        %v3109 = vmul.f32 %v3043, %v3096
        %v3110 = vmul.f32 %v3045, %v3098
        %v3111 = vmul.f32 %v3004, %v3100
        %v3112 = vmul.f32 %v3006, %v3102
        %v3113 = vmul.f32 %v3047, %v3104
        %v3114 = vmul.f32 %v3049, %v3106
        %v3115 = vpack.c.bf16 %v3111, %v3107
        %v3116 = vpack.c.bf16 %v3112, %v3108
        %v3117 = vpack.c.bf16 %v3113, %v3109
        %v3118 = vpack.c.bf16 %v3114, %v3110
        %v3119 = vlaneseq
        %v3120 = vshrl.u32 %v3119, 7
        %v3121 = vsub.s32 5, %v3120
        %v3122 = vrot.slane %v889, %v3121
        %v3187 = vunpack.c.l.b16 %v2684
        %v3188 = vunpack.c.l.b16 %v2685
        %v3189 = vunpack.c.l.b16 %v2686
        %v3190 = vunpack.c.l.b16 %v2687
        %v3191 = vunpack.c.l.b16 %v2688
        %v3192 = vunpack.c.l.b16 %v2689
        %v3193 = vunpack.c.l.b16 %v2690
        %v3194 = vunpack.c.l.b16 %v2691
        %v3195 = vunpack.c.l.b16 %v2692
        %v3196 = vunpack.c.l.b16 %v2693
        %v3197 = vunpack.c.l.b16 %v2694
        %v3198 = vunpack.c.l.b16 %v2695
        %v3199 = vunpack.c.l.b16 %v2696
        %v3200 = vunpack.c.l.b16 %v2697
        %v3201 = vunpack.c.l.b16 %v2698
        %v3202 = vunpack.c.l.b16 %v2699
        %v3203 = vunpack.c.l.b16 %v2700
        %v3204 = vunpack.c.l.b16 %v2701
        %v3205 = vunpack.c.l.b16 %v2702
        %v3206 = vunpack.c.l.b16 %v2703
        %v3207 = vunpack.c.l.b16 %v2704
        %v3208 = vunpack.c.l.b16 %v2705
        %v3209 = vunpack.c.l.b16 %v2706
        %v3210 = vunpack.c.l.b16 %v2707
        %v3211 = vunpack.c.l.b16 %v2708
        %v3212 = vunpack.c.l.b16 %v2709
        %v3213 = vunpack.c.l.b16 %v2710
        %v3214 = vunpack.c.l.b16 %v2711
        %v3215 = vunpack.c.l.b16 %v2712
        %v3216 = vunpack.c.l.b16 %v2713
        %v3217 = vunpack.c.l.b16 %v2714
        %v3218 = vunpack.c.l.b16 %v2715
        %v3219 = vunpack.c.l.b16 %v2716
        %v3220 = vunpack.c.l.b16 %v2717
        %v3221 = vunpack.c.l.b16 %v2718
        %v3222 = vunpack.c.l.b16 %v2719
        %v3223 = vunpack.c.l.b16 %v2720
        %v3224 = vunpack.c.l.b16 %v2721
        %v3225 = vunpack.c.l.b16 %v2722
        %v3226 = vunpack.c.l.b16 %v2723
        %v3227 = vunpack.c.l.b16 %v2724
        %v3228 = vunpack.c.l.b16 %v2725
        %v3229 = vunpack.c.l.b16 %v2726
        %v3230 = vunpack.c.l.b16 %v2727
        %v3231 = vunpack.c.l.b16 %v2728
        %v3232 = vunpack.c.l.b16 %v2729
        %v3233 = vunpack.c.l.b16 %v2730
        %v3234 = vunpack.c.l.b16 %v2731
        %v3235 = vunpack.c.l.b16 %v2732
        %v3236 = vunpack.c.l.b16 %v2733
        %v3237 = vunpack.c.l.b16 %v2734
        %v3238 = vunpack.c.l.b16 %v2735
        %v3239 = vunpack.c.l.b16 %v2736
        %v3240 = vunpack.c.l.b16 %v2737
        %v3241 = vunpack.c.l.b16 %v2738
        %v3242 = vunpack.c.l.b16 %v2739
        %v3243 = vunpack.c.l.b16 %v2740
        %v3244 = vunpack.c.l.b16 %v2741
        %v3245 = vunpack.c.l.b16 %v2742
        %v3246 = vunpack.c.l.b16 %v2743
        %v3247 = vunpack.c.l.b16 %v2744
        %v3248 = vunpack.c.l.b16 %v2745
        %v3249 = vunpack.c.l.b16 %v2746
        %v3250 = vunpack.c.l.b16 %v2747
        %v3251 = vpack.c.b16 %v3188, %v3187
        %v3252 = vpack.c.b16 %v3190, %v3189
        %v3253 = vpack.c.b16 %v3192, %v3191
        %v3254 = vpack.c.b16 %v3194, %v3193
        %v3255 = vpack.c.b16 %v3196, %v3195
        %v3256 = vpack.c.b16 %v3198, %v3197
        %v3257 = vpack.c.b16 %v3200, %v3199
        %v3258 = vpack.c.b16 %v3202, %v3201
        %v3259 = vpack.c.b16 %v3204, %v3203
        %v3260 = vpack.c.b16 %v3206, %v3205
        %v3261 = vpack.c.b16 %v3208, %v3207
        %v3262 = vpack.c.b16 %v3210, %v3209
        %v3263 = vpack.c.b16 %v3212, %v3211
        %v3264 = vpack.c.b16 %v3214, %v3213
        %v3265 = vpack.c.b16 %v3216, %v3215
        %v3266 = vpack.c.b16 %v3218, %v3217
        %v3267 = vpack.c.b16 %v3220, %v3219
        %v3268 = vpack.c.b16 %v3222, %v3221
        %v3269 = vpack.c.b16 %v3224, %v3223
        %v3270 = vpack.c.b16 %v3226, %v3225
        %v3271 = vpack.c.b16 %v3228, %v3227
        %v3272 = vpack.c.b16 %v3230, %v3229
        %v3273 = vpack.c.b16 %v3232, %v3231
        %v3274 = vpack.c.b16 %v3234, %v3233
        %v3275 = vpack.c.b16 %v3236, %v3235
        %v3276 = vpack.c.b16 %v3238, %v3237
        %v3277 = vpack.c.b16 %v3240, %v3239
        %v3278 = vpack.c.b16 %v3242, %v3241
        %v3279 = vpack.c.b16 %v3244, %v3243
        %v3280 = vpack.c.b16 %v3246, %v3245
        %v3281 = vpack.c.b16 %v3248, %v3247
        %v3282 = vpack.c.b16 %v3250, %v3249
        %3315 = vmatprep.subr.bf16.mxu0 0
        %3316 = vmatpush1.bf16.msra.mxu0 %v3258
        %3317 = vmatprep.subr.bf16.mxu0 0
        %3318 = vmatpush1.bf16.msra.mxu0 %v3257
        %3319 = vmatprep.subr.bf16.mxu0 0
        %3320 = vmatpush1.bf16.msra.mxu0 %v3256
        %3321 = vmatprep.subr.bf16.mxu0 0
        %3322 = vmatpush1.bf16.msra.mxu0 %v3255
        %3323 = vmatprep.subr.bf16.mxu0 0
        %3324 = vmatpush1.bf16.msra.mxu0 %v3254
        %3325 = vmatprep.subr.bf16.mxu0 0
        %3326 = vmatpush1.bf16.msra.mxu0 %v3253
        %3327 = vmatprep.subr.bf16.mxu0 0
        %3328 = vmatpush1.bf16.msra.mxu0 %v3252
        %3329 = vmatprep.subr.bf16.mxu0 0
        %3330 = vmatpush1.bf16.msra.mxu0 %v3251
        %3331 = vmatprep.subr.bf16.mxu0 0
        %3332 = vmatpush2.bf16.msra.mxu0 %v3266
        %3333 = vmatprep.subr.bf16.mxu0 0
        %3334 = vmatpush2.bf16.msra.mxu0 %v3265
        %3335 = vmatprep.subr.bf16.mxu0 0
        %3336 = vmatpush2.bf16.msra.mxu0 %v3264
        %3337 = vmatprep.subr.bf16.mxu0 0
        %3338 = vmatpush2.bf16.msra.mxu0 %v3263
        %3339 = vmatprep.subr.bf16.mxu0 0
        %3340 = vmatpush2.bf16.msra.mxu0 %v3262
        %3341 = vmatprep.subr.bf16.mxu0 0
        %3342 = vmatpush2.bf16.msra.mxu0 %v3261
        %3343 = vmatprep.subr.bf16.mxu0 0
        %3344 = vmatpush2.bf16.msra.mxu0 %v3260
        %3345 = vmatprep.subr.bf16.mxu0 0
        %3346 = vmatpush2.bf16.msra.mxu0 %v3259
        %3347 = vmatprep.mubr.bf16.mxu0 %v3116
        %3348 = vmatmul.mubr.bf16.gmra.mxu0 %v3115
        %v3349 = vpop.f32.mrf.mxu0
        %v3350 = vadd.f32 %v3122, %v3349
        %v3351 = vpop.f32.mrf.mxu0
        %v3352 = vpop.f32.mrf.mxu0
        %v3353 = vadd.f32 %v3122, %v3352
        %v3354 = vpop.f32.mrf.mxu0
        %3355 = vdwg.mxu0
        %3356 = vmatprep.subr.bf16.mxu0 0
        %3357 = vmatpush1.bf16.msra.mxu0 %v3274
        %3358 = vmatprep.subr.bf16.mxu0 0
        %3359 = vmatpush1.bf16.msra.mxu0 %v3273
        %3360 = vmatprep.subr.bf16.mxu0 0
        %3361 = vmatpush1.bf16.msra.mxu0 %v3272
        %3362 = vmatprep.subr.bf16.mxu0 0
        %3363 = vmatpush1.bf16.msra.mxu0 %v3271
        %3364 = vmatprep.subr.bf16.mxu0 0
        %3365 = vmatpush1.bf16.msra.mxu0 %v3270
        %3366 = vmatprep.subr.bf16.mxu0 0
        %3367 = vmatpush1.bf16.msra.mxu0 %v3269
        %3368 = vmatprep.subr.bf16.mxu0 0
        %3369 = vmatpush1.bf16.msra.mxu0 %v3268
        %3370 = vmatprep.subr.bf16.mxu0 0
        %3371 = vmatpush1.bf16.msra.mxu0 %v3267
        %3372 = vmatprep.subr.bf16.mxu0 0
        %3373 = vmatpush2.bf16.msra.mxu0 %v3282
        %3374 = vmatprep.subr.bf16.mxu0 0
        %3375 = vmatpush2.bf16.msra.mxu0 %v3281
        %3376 = vmatprep.subr.bf16.mxu0 0
        %3377 = vmatpush2.bf16.msra.mxu0 %v3280
        %3378 = vmatprep.subr.bf16.mxu0 0
        %3379 = vmatpush2.bf16.msra.mxu0 %v3279
        %3380 = vmatprep.subr.bf16.mxu0 0
        %3381 = vmatpush2.bf16.msra.mxu0 %v3278
        %3382 = vmatprep.subr.bf16.mxu0 0
        %3383 = vmatpush2.bf16.msra.mxu0 %v3277
        %3384 = vmatprep.subr.bf16.mxu0 0
        %3385 = vmatpush2.bf16.msra.mxu0 %v3276
        %3386 = vmatprep.subr.bf16.mxu0 0
        %3387 = vmatpush2.bf16.msra.mxu0 %v3275
        %3388 = vmatprep.mubr.bf16.mxu0 %v3118
        %3389 = vmatmul.mubr.bf16.gmra.mxu0 %v3117
        %v3390 = vpop.f32.mrf.mxu0
        %v3391 = vadd.f32 %v3350, %v3390
        %v3392 = vpop.f32.mrf.mxu0
        %v3393 = vpop.f32.mrf.mxu0
        %v3394 = vadd.f32 %v3353, %v3393
        %v3395 = vpop.f32.mrf.mxu0
        %3396 = vdwg.mxu0
        %v3397 = vadd.f32 %v2650, %v3391
        %v3398 = vadd.f32 %v2651, %v3394
        %3399 = vst [vmem:[#allocation2] sm:$0xff] %v3397
        %3400 = vst [vmem:[#allocation2 + $0x8] sm:$0xff] %v3398
        %p3401 = scmp.eq.s32.totalorder %s40, 11
        // Predicated region
        $region161: #{forward.1} parent=55 // pred_check
          %p3402 = pneg %p3401
        $region162: #{forward.1} parent=55 // pred_check_branch
          %3404 = sbr.rel (%p3402) target = $region164
        $region163: #{forward.1} parent=55 // pred_region
          %v3405 = vld [vmem:[#allocation22] sm:$0x1]
          %v3406 = vld [vmem:[#allocation22 + $0x1] sm:$0x1]
          %3407 = vadd.xlane.f32.xlu0 %v3397
          %v3408 = vpop.xlane.xlu0 %3407
          %3409 = vadd.xlane.f32.xlu0 %v3398
          %v3410 = vpop.xlane.xlu0 %3409
          %v3411 = vmul.f32 %v3408, %v942
          %v3412 = vmul.f32 %v3410, %v942
          %v3413 = vsub.f32 %v3397, %v3411
          %v3414 = vsub.f32 %v3398, %v3412
          %v3415 = vmul.f32 %v3413, %v3413
          %v3416 = vmul.f32 %v3414, %v3414
          %3417 = vadd.xlane.f32.xlu0 %v3415
          %v3418 = vpop.xlane.xlu0 %3417
          %3419 = vadd.xlane.f32.xlu0 %v3416
          %v3420 = vpop.xlane.xlu0 %3419
          %v3421 = vmul.f32 %v3418, %v942
          %v3422 = vmul.f32 %v3420, %v942
          %v3423 = vadd.f32 %v3421, 1e-05
          %v3424 = vadd.f32 %v3422, 1e-05
          %v3425 = vrsqrt.pop %v3423
          %v3426 = vrsqrt.pop %v3424
          %v3427 = vmul.f32 %v3413, %v3425
          %v3428 = vmul.f32 %v3414, %v3426
          %v3429 = vlaneseq
          %v3430 = vshrl.u32 %v3429, 7
          %v3431 = vsub.s32 0, %v3430
          %v3432 = vrot.slane %v3405, %v3431
          %v3433 = vmul.f32 %v3427, %v3432
          %v3434 = vmul.f32 %v3428, %v3432
          %v3435 = vlaneseq
          %v3436 = vshrl.u32 %v3435, 7
          %v3437 = vsub.s32 0, %v3436
          %v3438 = vrot.slane %v3406, %v3437
          %v3439 = vadd.f32 %v3433, %v3438
          %v3440 = vadd.f32 %v3434, %v3438
          %3441 = vst [vmem:[#allocation23] sm:$0xff] %v3439
          %3442 = vst [vmem:[#allocation23 + $0x8] sm:$0xff] %v3440
        $region164: #{forward.1} parent=55 // pred_fallthru
          _
        // Predicated region
        $region165: #{forward.1} parent=55 // pred_check
          %p3443 = pneg %p277
        $region166: #{forward.1} parent=55 // pred_check_branch
          %3445 = sbr.rel (%p3443) target = $region168
        $region167: #{forward.1} parent=55 // pred_region
          %s3447 = ssub.s32 256, 256
          %3448 = vsyncadd [#allocation10], %s3447
          %s3449 = sshll.u32 [#allocation23], 4
          %s3450 = int_to_ptr.vmem [resolvable:$true] %s3449
          %3455 = dma.vmem_to_hbm [thread:$0]  %s3450, 256, %s11, [#allocation10], 128, 128, 8
        $region168: #{forward.1} parent=55 // pred_fallthru
          _
        // Predicated region
        $region169: #{forward.1} parent=55 // pred_check
          %p3456 = pneg %p277
        $region170: #{forward.1} parent=55 // pred_check_branch
          %3458 = sbr.rel (%p3456) target = $region172
        $region171: #{forward.1} parent=55 // pred_region
          %3459 = dma.done [#allocation10], 256
        $region172: #{forward.1} parent=55 // pred_fallthru
          _
      $region56: #{forward.1} parent=5 // pred_fallthru
        _
      %p3460 = scmp.le.s32.totalorder 2, %s35
      // Predicated region
      $region173: #{forward.1} parent=5 // pred_check
        %p3461 = pneg %p3460
      $region174: #{forward.1} parent=5 // pred_check_branch
        %3463 = sbr.rel (%p3461) target = $region176
      $region175: #{forward.1} parent=5 // pred_region
        %s3464 = ssub.s32 %s35, 2
      $region176: #{forward.1} parent=5 // pred_fallthru
        _
    $region6: #{forward.1} parent=1 // loop_footer
      %s39 = sadd.s32 1, %s35
    $region7: #{forward.1} parent=1 // loop_footer_branch
      %34 = sbr.rel target = $region3
    $region8: #{forward.1} parent=1 // loop_exit
      _
    %3465 = vsyncpa [#allocation9], 1
    %s3466 = scalar_lea.sflag [#allocation9], 1
    %3467 = vsyncpa %s3466, 1
    %3468 = vsyncpa [#allocation12], 1
    %s3469 = scalar_lea.sflag [#allocation12], 1
    %3470 = vsyncpa %s3469, 1
    %3471 = vsyncpa [#allocation15], 1
    %s3472 = scalar_lea.sflag [#allocation15], 1
    %3473 = vsyncpa %s3472, 1
    %3474 = vsyncpa [#allocation18], 1
    %s3475 = scalar_lea.sflag [#allocation18], 1
    %3476 = vsyncpa %s3475, 1
    %3477 = vsyncpa [#allocation21], 1
    %s3478 = scalar_lea.sflag [#allocation21], 1
    %3479 = vsyncpa %s3478, 1
    %3480 = vsyncpa [#allocation10], 1
    %s3481 = scalar_lea.sflag [#allocation10], 1
    %3482 = vsyncpa %s3481, 1
  %3483 = vsyncmov [#allocation5]
  %s3484 = vpop.sfrf %3483
  %p3485 = scmp.eq.s32.totalorder %s3484, 0
  %p3486 = pneg %p3485
  %3488 = shalt.err (%p3486)

</llo_original>
